<compile_context>
chip_gen: v7x
topology: tpu7x:2x2x1
jax: 0.10.0
libtpu: 0.0.40
codegen_flags: <defaults>
</compile_context>

<pallas_src>
import jax
import jax.numpy as jnp
from jax import lax
from jax.experimental import pallas as pl
from jax.experimental.pallas import tpu as pltpu

IN_CH = 3
HIDDEN = 768   # ViT-B/16 embedding dim (conv out_channels)
PATCH = 16     # kernel_size == stride

MXU_ROWS = 256  # MXU row granularity on v6e/v7x; multiple of bf16 sublane packing (16)


def _round_up(x, m):
    return ((x + m - 1) // m) * m


# ---------------------------------------------------------------------------
# Pallas kernel: (tm, K) @ (N, K)^T + bias, weight/bias resident in VMEM
# ---------------------------------------------------------------------------
def _patch_matmul_kernel(p_ref, w_ref, b_ref, o_ref):
    acc = lax.dot_general(
        p_ref[...], w_ref[...],
        dimension_numbers=(((1,), (1,)), ((), ())),   # contract K with K (rhs kept (N,K))
        preferred_element_type=jnp.float32)
    o_ref[...] = (acc + b_ref[...]).astype(o_ref.dtype)


def patch_embed_matmul(patches, weight_nk, bias, *, tm=1024):
    """patches: (M, K) bf16, weight_nk: (N, K) bf16, bias: (N,) f32 -> (M, N) bf16.

    Single fused MXU matmul: full K and N per step, 1-D grid over M tiles.
    f32 accumulation + f32 bias; bf16 output (halves HBM writeback).
    """
    M, K = patches.shape
    N, Kw = weight_nk.shape
    assert K == Kw
    assert K % 128 == 0 and N % 128 == 0

    # MXU-granular M tile, padded M.
    tm_eff = min(tm, _round_up(M, MXU_ROWS))
    # Guarantee >= 2 grid steps for mid/large M so ("parallel",) can shard across the
    # two TensorCores on v7x (no effect on single-TC v5e/v6e; tiny M stays 1 step).
    if _round_up(M, tm_eff) // tm_eff < 2 and M > 2 * MXU_ROWS:
        tm_eff = _round_up((M + 1) // 2, MXU_ROWS)
    M_pad = _round_up(M, tm_eff)
    if M_pad != M:
        patches = jnp.pad(patches, ((0, M_pad - M), (0, 0)))

    bias2d = bias.reshape(1, N).astype(jnp.float32)

    out = pl.pallas_call(
        _patch_matmul_kernel,
        out_shape=jax.ShapeDtypeStruct((M_pad, N), jnp.bfloat16),
        grid_spec=pltpu.PrefetchScalarGridSpec(
            num_scalar_prefetch=0,
            grid=(M_pad // tm_eff,),
            in_specs=[
                pl.BlockSpec((tm_eff, K), lambda i: (i, 0)),   # patch tile, streamed
                pl.BlockSpec((N, K), lambda i: (0, 0)),        # weight, resident
                pl.BlockSpec((1, N), lambda i: (0, 0)),        # bias, resident
            ],
            out_specs=pl.BlockSpec((tm_eff, N), lambda i: (i, 0)),
        ),
        compiler_params=pltpu.CompilerParams(
            dimension_semantics=("parallel",)),
    )(patches.astype(jnp.bfloat16), weight_nk.astype(jnp.bfloat16), bias2d)

    return out[:M] if M_pad != M else out


# ---------------------------------------------------------------------------
# conv_proj (Conv2d k=s=16) on all three inputs, via one shared Pallas matmul
# ---------------------------------------------------------------------------
def shared_transformer_forward(params, x1, x2, x3):
    """Equivalent of SharedTransformer.forward: same backbone (conv_proj) on x1/x2/x3,
    fused into a single Pallas matmul so the shared weight is loaded once.
    Returns f32 NCHW feature maps (bf16-precision compute, intentional)."""
    weight, bias = params
    O, C, KH, KW = weight.shape
    # (N, K), bf16, no transpose materialized (kernel contracts on dim 1 of both operands).
    w_nk = weight.astype(jnp.bfloat16).reshape(O, C * KH * KW)

    # Cast to bf16 BEFORE stacking / patchify transpose: all glue copies move half the bytes.
    xs = jnp.stack([x1.astype(jnp.bfloat16),
                    x2.astype(jnp.bfloat16),
                    x3.astype(jnp.bfloat16)], axis=0)            # (3, B, C, H, W)
    S, B, Cx, H, W = xs.shape
    assert Cx == C and H % KH == 0 and W % KW == 0
    Hp, Wp = H // KH, W // KW

    # Patchify: features flattened in (c, kh, kw) order to match the row-major
    # flattening of the conv weight (O, C, KH, KW).
    p = xs.reshape(S * B, C, Hp, KH, Wp, KW)
    p = p.transpose(0, 2, 4, 1, 3, 5).reshape(S * B * Hp * Wp, C * KH * KW)

    out = patch_embed_matmul(p, w_nk, bias)                      # (S*B*Hp*Wp, O) bf16

    # NHWC -> NCHW to preserve the PyTorch interface; done on bf16 and fused with the
    # final f32 convert (single copy). Consumers accepting NHWC/bf16 could skip this.
    out = out.reshape(S, B, Hp, Wp, O).transpose(0, 1, 4, 2, 3).astype(jnp.float32)
    return out[0], out[1], out[2]


# ---------------------------------------------------------------------------
# main
# ---------------------------------------------------------------------------
if __name__ == "__main__":
    key = jax.random.PRNGKey(0)
    kw_, kb_, k1, k2, k3 = jax.random.split(key, 5)

    # Deterministic, in-script parameter init (shapes from vit_b_16 conv_proj).
    # TODO(synk): pretrained .pth weight loading has no in-script equivalent; using random init.
    fan_in = IN_CH * PATCH * PATCH
    weight = jax.random.normal(kw_, (HIDDEN, IN_CH, PATCH, PATCH), jnp.float32) * (fan_in ** -0.5)
    bias = jax.random.normal(kb_, (HIDDEN,), jnp.float32) * 0.01
    params = (weight, bias)

    # Small inputs consistent with the module: NCHW, 3 channels, spatial multiple of 16.
    B, H, W = 2, 32, 32
    x1 = jax.random.normal(k1, (B, IN_CH, H, W), jnp.float32)
    x2 = jax.random.normal(k2, (B, IN_CH, H, W), jnp.float32)
    x3 = jax.random.normal(k3, (B, IN_CH, H, W), jnp.float32)

    y1, y2, y3 = jax.jit(shared_transformer_forward)(params, x1, x2, x3)
    jax.block_until_ready((y1, y2, y3))

    # Reference check (pure JAX, f32). bf16 MXU inputs / bf16 output => looser tolerance
    # (intentional precision change vs. the f32 PyTorch reference).
    def ref_conv(x):
        p = x.reshape(B, IN_CH, H // PATCH, PATCH, W // PATCH, PATCH)
        p = p.transpose(0, 2, 4, 1, 3, 5).reshape(-1, IN_CH * PATCH * PATCH)
        o = p @ weight.reshape(HIDDEN, -1).T + bias
        return o.reshape(B, H // PATCH, W // PATCH, HIDDEN).transpose(0, 3, 1, 2)

    Hp, Wp = H // PATCH, W // PATCH
    assert y1.shape == (B, HIDDEN, Hp, Wp) and y1.dtype == jnp.float32
    assert y2.shape == (B, HIDDEN, Hp, Wp)
    assert y3.shape == (B, HIDDEN, Hp, Wp)
    assert jnp.allclose(y1, ref_conv(x1), atol=3e-2, rtol=3e-2)
    assert jnp.allclose(y2, ref_conv(x2), atol=3e-2, rtol=3e-2)
    assert jnp.allclose(y3, ref_conv(x3), atol=3e-2, rtol=3e-2)

    print("KERNEL_OK")
</pallas_src>

<mosaic_0001>
module attributes {stable_mosaic.version = 11 : i64} {
  func.func @_patch_matmul_kernel(%arg0: i32, %arg1: memref<256x768xbf16, #tpu.memory_space<vmem>>, %arg2: memref<768x768xbf16, #tpu.memory_space<vmem>>, %arg3: memref<1x768xf32, #tpu.memory_space<vmem>>, %arg4: memref<256x768xbf16, #tpu.memory_space<vmem>>) attributes {dimension_semantics = [#tpu.dimension_semantics<parallel>], iteration_bounds = array<i64: 1>, scalar_prefetch = 0 : i64, scratch_operands = 0 : i64, tpu.core_type = #tpu.core_type<tc>, window_params = [{transform_indices = @transform_0, window_bounds = array<i64: 256, 768>}, {pipeline_mode = #tpu.pipeline_mode<synchronous>, transform_indices = @transform_1, window_bounds = array<i64: 768, 768>}, {pipeline_mode = #tpu.pipeline_mode<synchronous>, transform_indices = @transform_2, window_bounds = array<i64: 1, 768>}, {transform_indices = @transform_3, window_bounds = array<i64: 256, 768>}]} {
    %c0 = arith.constant 0 : index
    %c0_0 = arith.constant 0 : index
    %0 = vector.load %arg1[%c0, %c0_0] : memref<256x768xbf16, #tpu.memory_space<vmem>>, vector<256x768xbf16>
    %c0_1 = arith.constant 0 : index
    %c0_2 = arith.constant 0 : index
    %1 = vector.load %arg2[%c0_1, %c0_2] : memref<768x768xbf16, #tpu.memory_space<vmem>>, vector<768x768xbf16>
    %cst = arith.constant dense<0.000000e+00> : vector<256x768xf32>
    %2 = tpu.matmul %0, %1, %cst {dimension_numbers = #tpu.dot_dimension_numbers<[1], [1], [0], [0], [0, 0, 1, 0], [], []>} : vector<256x768xbf16>, vector<768x768xbf16>, vector<256x768xf32> -> vector<256x768xf32>
    %c0_3 = arith.constant 0 : index
    %c0_4 = arith.constant 0 : index
    %3 = vector.load %arg3[%c0_3, %c0_4] : memref<1x768xf32, #tpu.memory_space<vmem>>, vector<1x768xf32>
    %4 = vector.broadcast %3 : vector<1x768xf32> to vector<256x768xf32>
    %5 = arith.addf %2, %4 : vector<256x768xf32>
    %6 = arith.truncf %5 : vector<256x768xf32> to vector<256x768xbf16>
    %c0_5 = arith.constant 0 : index
    %c0_6 = arith.constant 0 : index
    %7 = vector.load %arg4[%c0_5, %c0_6] : memref<256x768xbf16, #tpu.memory_space<vmem>>, vector<256x768xbf16>
    tpu.vector_store %arg4[%c0_5, %c0_6], %6 {strides = array<i32>} : memref<256x768xbf16, #tpu.memory_space<vmem>>, vector<256x768xbf16>,
    return
  }
  func.func @transform_0(%arg0: i32) -> (i32, i32) {
    %c0_i32 = arith.constant 0 : i32
    %c0_i32_0 = arith.constant 0 : i32
    return %arg0, %c0_i32 : i32, i32
  }
  func.func @transform_1(%arg0: i32) -> (i32, i32) {
    %c0_i32 = arith.constant 0 : i32
    %c0_i32_0 = arith.constant 0 : i32
    %c0_i32_1 = arith.constant 0 : i32
    return %c0_i32, %c0_i32_0 : i32, i32
  }
  func.func @transform_2(%arg0: i32) -> (i32, i32) {
    %c0_i32 = arith.constant 0 : i32
    %c0_i32_0 = arith.constant 0 : i32
    %c0_i32_1 = arith.constant 0 : i32
    return %c0_i32, %c0_i32_0 : i32, i32
  }
  func.func @transform_3(%arg0: i32) -> (i32, i32) {
    %c0_i32 = arith.constant 0 : i32
    %c0_i32_0 = arith.constant 0 : i32
    return %arg0, %c0_i32 : i32, i32
  }
}

</mosaic_0001>

<llo_original>
// kernel: shared_transformer_forward.1
$region0: #{shared_transformer_forward.1}
  #allocation0 [shape = 'u32[]', space=smem, size = 0x4, offset = 0x4, fixed_abs, tag = 'smem constant byte address 0x4 - core index']
  #allocation1 [shape = 'u32[144,128]{1,0:T(1,128)}', space=vmem, size = 0x12000, scoped, tag = 'internal scratch']
  %s0 = inlined_call_operand.vmem [shape: bf16[256,768], index: 0, kind: input, shape index: {}]
  %s1 = inlined_call_operand.vmem [shape: bf16[768,768], index: 1, kind: input, shape index: {}]
  %s2 = inlined_call_operand.vmem [shape: f32[1,768], index: 2, kind: input, shape index: {}]
  %s3 = inlined_call_operand.vmem [shape: bf16[256,768], index: 3, kind: output, shape index: {}]
  %s4 = sld [smem:[#allocation0]]
  $region22: #{shared_transformer_forward.1} parent=0
    _
  %s6 = ssub.s32 1, %s4
  %s7 = scalar_select 0, %s6, %s4
  // Predicated region
  $region2: #{shared_transformer_forward.1} parent=0 // pred_check
    _
  $region3: #{shared_transformer_forward.1} parent=0 // pred_check_branch
    %9 = sbr.rel (0) target = $region5
  $region4: #{shared_transformer_forward.1} parent=0 // pred_region
    _
  $region5: #{shared_transformer_forward.1} parent=0 // pred_fallthru
    _
  // Predicated region
  $region6: #{shared_transformer_forward.1} parent=0 // pred_check
    _
  $region7: #{shared_transformer_forward.1} parent=0 // pred_check_branch
    %11 = sbr.rel (0) target = $region9
  $region8: #{shared_transformer_forward.1} parent=0 // pred_region
    _
  $region9: #{shared_transformer_forward.1} parent=0 // pred_fallthru
    _
  // Predicated region
  $region10: #{shared_transformer_forward.1} parent=0 // pred_check
    _
  $region11: #{shared_transformer_forward.1} parent=0 // pred_check_branch
    %13 = sbr.rel (0) target = $region13
  $region12: #{shared_transformer_forward.1} parent=0 // pred_region
    _
  $region13: #{shared_transformer_forward.1} parent=0 // pred_fallthru
    _
  %v14 = vld [vmem:[%s0] sm:$0xff]
  %v15 = vld [vmem:[%s0 + $0x8] sm:$0xff]
  %v16 = vld [vmem:[%s0 + $0x10] sm:$0xff]
  %v17 = vld [vmem:[%s0 + $0x18] sm:$0xff]
  %v18 = vld [vmem:[%s0 + $0x20] sm:$0xff]
  %v19 = vld [vmem:[%s0 + $0x28] sm:$0xff]
  %v20 = vld [vmem:[%s0 + $0x30] sm:$0xff]
  %v21 = vld [vmem:[%s0 + $0x38] sm:$0xff]
  %v22 = vld [vmem:[%s0 + $0x40] sm:$0xff]
  %v23 = vld [vmem:[%s0 + $0x48] sm:$0xff]
  %v24 = vld [vmem:[%s0 + $0x50] sm:$0xff]
  %v25 = vld [vmem:[%s0 + $0x58] sm:$0xff]
  %v26 = vld [vmem:[%s0 + $0x60] sm:$0xff]
  %v27 = vld [vmem:[%s0 + $0x68] sm:$0xff]
  %v28 = vld [vmem:[%s0 + $0x70] sm:$0xff]
  %v29 = vld [vmem:[%s0 + $0x78] sm:$0xff]
  %v30 = vld [vmem:[%s0 + $0x80] sm:$0xff]
  %v31 = vld [vmem:[%s0 + $0x88] sm:$0xff]
  %v32 = vld [vmem:[%s0 + $0x90] sm:$0xff]
  %v33 = vld [vmem:[%s0 + $0x98] sm:$0xff]
  %v34 = vld [vmem:[%s0 + $0xa0] sm:$0xff]
  %v35 = vld [vmem:[%s0 + $0xa8] sm:$0xff]
  %v36 = vld [vmem:[%s0 + $0xb0] sm:$0xff]
  %v37 = vld [vmem:[%s0 + $0xb8] sm:$0xff]
  %v38 = vld [vmem:[%s0 + $0xc0] sm:$0xff]
  %v39 = vld [vmem:[%s0 + $0xc8] sm:$0xff]
  %v40 = vld [vmem:[%s0 + $0xd0] sm:$0xff]
  %v41 = vld [vmem:[%s0 + $0xd8] sm:$0xff]
  %v42 = vld [vmem:[%s0 + $0xe0] sm:$0xff]
  %v43 = vld [vmem:[%s0 + $0xe8] sm:$0xff]
  %v44 = vld [vmem:[%s0 + $0xf0] sm:$0xff]
  %v45 = vld [vmem:[%s0 + $0xf8] sm:$0xff]
  %v46 = vld [vmem:[%s0 + $0x100] sm:$0xff]
  %v47 = vld [vmem:[%s0 + $0x108] sm:$0xff]
  %v48 = vld [vmem:[%s0 + $0x110] sm:$0xff]
  %v49 = vld [vmem:[%s0 + $0x118] sm:$0xff]
  %v50 = vld [vmem:[%s0 + $0x120] sm:$0xff]
  %v51 = vld [vmem:[%s0 + $0x128] sm:$0xff]
  %v52 = vld [vmem:[%s0 + $0x130] sm:$0xff]
  %v53 = vld [vmem:[%s0 + $0x138] sm:$0xff]
  %v54 = vld [vmem:[%s0 + $0x140] sm:$0xff]
  %v55 = vld [vmem:[%s0 + $0x148] sm:$0xff]
  %v56 = vld [vmem:[%s0 + $0x150] sm:$0xff]
  %v57 = vld [vmem:[%s0 + $0x158] sm:$0xff]
  %v58 = vld [vmem:[%s0 + $0x160] sm:$0xff]
  %v59 = vld [vmem:[%s0 + $0x168] sm:$0xff]
  %v60 = vld [vmem:[%s0 + $0x170] sm:$0xff]
  %v61 = vld [vmem:[%s0 + $0x178] sm:$0xff]
  %v62 = vld [vmem:[%s0 + $0x180] sm:$0xff]
  %v63 = vld [vmem:[%s0 + $0x188] sm:$0xff]
  %v64 = vld [vmem:[%s0 + $0x190] sm:$0xff]
  %v65 = vld [vmem:[%s0 + $0x198] sm:$0xff]
  %v66 = vld [vmem:[%s0 + $0x1a0] sm:$0xff]
  %v67 = vld [vmem:[%s0 + $0x1a8] sm:$0xff]
  %v68 = vld [vmem:[%s0 + $0x1b0] sm:$0xff]
  %v69 = vld [vmem:[%s0 + $0x1b8] sm:$0xff]
  %v70 = vld [vmem:[%s0 + $0x1c0] sm:$0xff]
  %v71 = vld [vmem:[%s0 + $0x1c8] sm:$0xff]
  %v72 = vld [vmem:[%s0 + $0x1d0] sm:$0xff]
  %v73 = vld [vmem:[%s0 + $0x1d8] sm:$0xff]
  %v74 = vld [vmem:[%s0 + $0x1e0] sm:$0xff]
  %v75 = vld [vmem:[%s0 + $0x1e8] sm:$0xff]
  %v76 = vld [vmem:[%s0 + $0x1f0] sm:$0xff]
  %v77 = vld [vmem:[%s0 + $0x1f8] sm:$0xff]
  %v78 = vld [vmem:[%s0 + $0x200] sm:$0xff]
  %v79 = vld [vmem:[%s0 + $0x208] sm:$0xff]
  %v80 = vld [vmem:[%s0 + $0x210] sm:$0xff]
  %v81 = vld [vmem:[%s0 + $0x218] sm:$0xff]
  %v82 = vld [vmem:[%s0 + $0x220] sm:$0xff]
  %v83 = vld [vmem:[%s0 + $0x228] sm:$0xff]
  %v84 = vld [vmem:[%s0 + $0x230] sm:$0xff]
  %v85 = vld [vmem:[%s0 + $0x238] sm:$0xff]
  %v86 = vld [vmem:[%s0 + $0x240] sm:$0xff]
  %v87 = vld [vmem:[%s0 + $0x248] sm:$0xff]
  %v88 = vld [vmem:[%s0 + $0x250] sm:$0xff]
  %v89 = vld [vmem:[%s0 + $0x258] sm:$0xff]
  %v90 = vld [vmem:[%s0 + $0x260] sm:$0xff]
  %v91 = vld [vmem:[%s0 + $0x268] sm:$0xff]
  %v92 = vld [vmem:[%s0 + $0x270] sm:$0xff]
  %v93 = vld [vmem:[%s0 + $0x278] sm:$0xff]
  %v94 = vld [vmem:[%s0 + $0x280] sm:$0xff]
  %v95 = vld [vmem:[%s0 + $0x288] sm:$0xff]
  %v96 = vld [vmem:[%s0 + $0x290] sm:$0xff]
  %v97 = vld [vmem:[%s0 + $0x298] sm:$0xff]
  %v98 = vld [vmem:[%s0 + $0x2a0] sm:$0xff]
  %v99 = vld [vmem:[%s0 + $0x2a8] sm:$0xff]
  %v100 = vld [vmem:[%s0 + $0x2b0] sm:$0xff]
  %v101 = vld [vmem:[%s0 + $0x2b8] sm:$0xff]
  %v102 = vld [vmem:[%s0 + $0x2c0] sm:$0xff]
  %v103 = vld [vmem:[%s0 + $0x2c8] sm:$0xff]
  %v104 = vld [vmem:[%s0 + $0x2d0] sm:$0xff]
  %v105 = vld [vmem:[%s0 + $0x2d8] sm:$0xff]
  %v106 = vld [vmem:[%s0 + $0x2e0] sm:$0xff]
  %v107 = vld [vmem:[%s0 + $0x2e8] sm:$0xff]
  %v108 = vld [vmem:[%s0 + $0x2f0] sm:$0xff]
  %v109 = vld [vmem:[%s0 + $0x2f8] sm:$0xff]
  %v110 = vld [vmem:[%s1] sm:$0xff]
  %v111 = vld [vmem:[%s1 + $0x8] sm:$0xff]
  %v112 = vld [vmem:[%s1 + $0x10] sm:$0xff]
  %v113 = vld [vmem:[%s1 + $0x18] sm:$0xff]
  %v114 = vld [vmem:[%s1 + $0x20] sm:$0xff]
  %v115 = vld [vmem:[%s1 + $0x28] sm:$0xff]
  %v116 = vld [vmem:[%s1 + $0x30] sm:$0xff]
  %v117 = vld [vmem:[%s1 + $0x38] sm:$0xff]
  %v118 = vld [vmem:[%s1 + $0x40] sm:$0xff]
  %v119 = vld [vmem:[%s1 + $0x48] sm:$0xff]
  %v120 = vld [vmem:[%s1 + $0x50] sm:$0xff]
  %v121 = vld [vmem:[%s1 + $0x58] sm:$0xff]
  %v122 = vld [vmem:[%s1 + $0x60] sm:$0xff]
  %v123 = vld [vmem:[%s1 + $0x68] sm:$0xff]
  %v124 = vld [vmem:[%s1 + $0x70] sm:$0xff]
  %v125 = vld [vmem:[%s1 + $0x78] sm:$0xff]
  %v126 = vld [vmem:[%s1 + $0x80] sm:$0xff]
  %v127 = vld [vmem:[%s1 + $0x88] sm:$0xff]
  %v128 = vld [vmem:[%s1 + $0x90] sm:$0xff]
  %v129 = vld [vmem:[%s1 + $0x98] sm:$0xff]
  %v130 = vld [vmem:[%s1 + $0xa0] sm:$0xff]
  %v131 = vld [vmem:[%s1 + $0xa8] sm:$0xff]
  %v132 = vld [vmem:[%s1 + $0xb0] sm:$0xff]
  %v133 = vld [vmem:[%s1 + $0xb8] sm:$0xff]
  %v134 = vld [vmem:[%s1 + $0xc0] sm:$0xff]
  %v135 = vld [vmem:[%s1 + $0xc8] sm:$0xff]
  %v136 = vld [vmem:[%s1 + $0xd0] sm:$0xff]
  %v137 = vld [vmem:[%s1 + $0xd8] sm:$0xff]
  %v138 = vld [vmem:[%s1 + $0xe0] sm:$0xff]
  %v139 = vld [vmem:[%s1 + $0xe8] sm:$0xff]
  %v140 = vld [vmem:[%s1 + $0xf0] sm:$0xff]
  %v141 = vld [vmem:[%s1 + $0xf8] sm:$0xff]
  %v142 = vld [vmem:[%s1 + $0x100] sm:$0xff]
  %v143 = vld [vmem:[%s1 + $0x108] sm:$0xff]
  %v144 = vld [vmem:[%s1 + $0x110] sm:$0xff]
  %v145 = vld [vmem:[%s1 + $0x118] sm:$0xff]
  %v146 = vld [vmem:[%s1 + $0x120] sm:$0xff]
  %v147 = vld [vmem:[%s1 + $0x128] sm:$0xff]
  %v148 = vld [vmem:[%s1 + $0x130] sm:$0xff]
  %v149 = vld [vmem:[%s1 + $0x138] sm:$0xff]
  %v150 = vld [vmem:[%s1 + $0x140] sm:$0xff]
  %v151 = vld [vmem:[%s1 + $0x148] sm:$0xff]
  %v152 = vld [vmem:[%s1 + $0x150] sm:$0xff]
  %v153 = vld [vmem:[%s1 + $0x158] sm:$0xff]
  %v154 = vld [vmem:[%s1 + $0x160] sm:$0xff]
  %v155 = vld [vmem:[%s1 + $0x168] sm:$0xff]
  %v156 = vld [vmem:[%s1 + $0x170] sm:$0xff]
  %v157 = vld [vmem:[%s1 + $0x178] sm:$0xff]
  %v158 = vld [vmem:[%s1 + $0x180] sm:$0xff]
  %v159 = vld [vmem:[%s1 + $0x188] sm:$0xff]
  %v160 = vld [vmem:[%s1 + $0x190] sm:$0xff]
  %v161 = vld [vmem:[%s1 + $0x198] sm:$0xff]
  %v162 = vld [vmem:[%s1 + $0x1a0] sm:$0xff]
  %v163 = vld [vmem:[%s1 + $0x1a8] sm:$0xff]
  %v164 = vld [vmem:[%s1 + $0x1b0] sm:$0xff]
  %v165 = vld [vmem:[%s1 + $0x1b8] sm:$0xff]
  %v166 = vld [vmem:[%s1 + $0x1c0] sm:$0xff]
  %v167 = vld [vmem:[%s1 + $0x1c8] sm:$0xff]
  %v168 = vld [vmem:[%s1 + $0x1d0] sm:$0xff]
  %v169 = vld [vmem:[%s1 + $0x1d8] sm:$0xff]
  %v170 = vld [vmem:[%s1 + $0x1e0] sm:$0xff]
  %v171 = vld [vmem:[%s1 + $0x1e8] sm:$0xff]
  %v172 = vld [vmem:[%s1 + $0x1f0] sm:$0xff]
  %v173 = vld [vmem:[%s1 + $0x1f8] sm:$0xff]
  %v174 = vld [vmem:[%s1 + $0x200] sm:$0xff]
  %v175 = vld [vmem:[%s1 + $0x208] sm:$0xff]
  %v176 = vld [vmem:[%s1 + $0x210] sm:$0xff]
  %v177 = vld [vmem:[%s1 + $0x218] sm:$0xff]
  %v178 = vld [vmem:[%s1 + $0x220] sm:$0xff]
  %v179 = vld [vmem:[%s1 + $0x228] sm:$0xff]
  %v180 = vld [vmem:[%s1 + $0x230] sm:$0xff]
  %v181 = vld [vmem:[%s1 + $0x238] sm:$0xff]
  %v182 = vld [vmem:[%s1 + $0x240] sm:$0xff]
  %v183 = vld [vmem:[%s1 + $0x248] sm:$0xff]
  %v184 = vld [vmem:[%s1 + $0x250] sm:$0xff]
  %v185 = vld [vmem:[%s1 + $0x258] sm:$0xff]
  %v186 = vld [vmem:[%s1 + $0x260] sm:$0xff]
  %v187 = vld [vmem:[%s1 + $0x268] sm:$0xff]
  %v188 = vld [vmem:[%s1 + $0x270] sm:$0xff]
  %v189 = vld [vmem:[%s1 + $0x278] sm:$0xff]
  %v190 = vld [vmem:[%s1 + $0x280] sm:$0xff]
  %v191 = vld [vmem:[%s1 + $0x288] sm:$0xff]
  %v192 = vld [vmem:[%s1 + $0x290] sm:$0xff]
  %v193 = vld [vmem:[%s1 + $0x298] sm:$0xff]
  %v194 = vld [vmem:[%s1 + $0x2a0] sm:$0xff]
  %v195 = vld [vmem:[%s1 + $0x2a8] sm:$0xff]
  %v196 = vld [vmem:[%s1 + $0x2b0] sm:$0xff]
  %v197 = vld [vmem:[%s1 + $0x2b8] sm:$0xff]
  %v198 = vld [vmem:[%s1 + $0x2c0] sm:$0xff]
  %v199 = vld [vmem:[%s1 + $0x2c8] sm:$0xff]
  %v200 = vld [vmem:[%s1 + $0x2d0] sm:$0xff]
  %v201 = vld [vmem:[%s1 + $0x2d8] sm:$0xff]
  %v202 = vld [vmem:[%s1 + $0x2e0] sm:$0xff]
  %v203 = vld [vmem:[%s1 + $0x2e8] sm:$0xff]
  %v204 = vld [vmem:[%s1 + $0x2f0] sm:$0xff]
  %v205 = vld [vmem:[%s1 + $0x2f8] sm:$0xff]
  %v206 = vld [vmem:[%s1 + $0x300] sm:$0xff]
  %v207 = vld [vmem:[%s1 + $0x308] sm:$0xff]
  %v208 = vld [vmem:[%s1 + $0x310] sm:$0xff]
  %v209 = vld [vmem:[%s1 + $0x318] sm:$0xff]
  %v210 = vld [vmem:[%s1 + $0x320] sm:$0xff]
  %v211 = vld [vmem:[%s1 + $0x328] sm:$0xff]
  %v212 = vld [vmem:[%s1 + $0x330] sm:$0xff]
  %v213 = vld [vmem:[%s1 + $0x338] sm:$0xff]
  %v214 = vld [vmem:[%s1 + $0x340] sm:$0xff]
  %v215 = vld [vmem:[%s1 + $0x348] sm:$0xff]
  %v216 = vld [vmem:[%s1 + $0x350] sm:$0xff]
  %v217 = vld [vmem:[%s1 + $0x358] sm:$0xff]
  %v218 = vld [vmem:[%s1 + $0x360] sm:$0xff]
  %v219 = vld [vmem:[%s1 + $0x368] sm:$0xff]
  %v220 = vld [vmem:[%s1 + $0x370] sm:$0xff]
  %v221 = vld [vmem:[%s1 + $0x378] sm:$0xff]
  %v222 = vld [vmem:[%s1 + $0x380] sm:$0xff]
  %v223 = vld [vmem:[%s1 + $0x388] sm:$0xff]
  %v224 = vld [vmem:[%s1 + $0x390] sm:$0xff]
  %v225 = vld [vmem:[%s1 + $0x398] sm:$0xff]
  %v226 = vld [vmem:[%s1 + $0x3a0] sm:$0xff]
  %v227 = vld [vmem:[%s1 + $0x3a8] sm:$0xff]
  %v228 = vld [vmem:[%s1 + $0x3b0] sm:$0xff]
  %v229 = vld [vmem:[%s1 + $0x3b8] sm:$0xff]
  %v230 = vld [vmem:[%s1 + $0x3c0] sm:$0xff]
  %v231 = vld [vmem:[%s1 + $0x3c8] sm:$0xff]
  %v232 = vld [vmem:[%s1 + $0x3d0] sm:$0xff]
  %v233 = vld [vmem:[%s1 + $0x3d8] sm:$0xff]
  %v234 = vld [vmem:[%s1 + $0x3e0] sm:$0xff]
  %v235 = vld [vmem:[%s1 + $0x3e8] sm:$0xff]
  %v236 = vld [vmem:[%s1 + $0x3f0] sm:$0xff]
  %v237 = vld [vmem:[%s1 + $0x3f8] sm:$0xff]
  %v238 = vld [vmem:[%s1 + $0x400] sm:$0xff]
  %v239 = vld [vmem:[%s1 + $0x408] sm:$0xff]
  %v240 = vld [vmem:[%s1 + $0x410] sm:$0xff]
  %v241 = vld [vmem:[%s1 + $0x418] sm:$0xff]
  %v242 = vld [vmem:[%s1 + $0x420] sm:$0xff]
  %v243 = vld [vmem:[%s1 + $0x428] sm:$0xff]
  %v244 = vld [vmem:[%s1 + $0x430] sm:$0xff]
  %v245 = vld [vmem:[%s1 + $0x438] sm:$0xff]
  %v246 = vld [vmem:[%s1 + $0x440] sm:$0xff]
  %v247 = vld [vmem:[%s1 + $0x448] sm:$0xff]
  %v248 = vld [vmem:[%s1 + $0x450] sm:$0xff]
  %v249 = vld [vmem:[%s1 + $0x458] sm:$0xff]
  %v250 = vld [vmem:[%s1 + $0x460] sm:$0xff]
  %v251 = vld [vmem:[%s1 + $0x468] sm:$0xff]
  %v252 = vld [vmem:[%s1 + $0x470] sm:$0xff]
  %v253 = vld [vmem:[%s1 + $0x478] sm:$0xff]
  %v254 = vld [vmem:[%s1 + $0x480] sm:$0xff]
  %v255 = vld [vmem:[%s1 + $0x488] sm:$0xff]
  %v256 = vld [vmem:[%s1 + $0x490] sm:$0xff]
  %v257 = vld [vmem:[%s1 + $0x498] sm:$0xff]
  %v258 = vld [vmem:[%s1 + $0x4a0] sm:$0xff]
  %v259 = vld [vmem:[%s1 + $0x4a8] sm:$0xff]
  %v260 = vld [vmem:[%s1 + $0x4b0] sm:$0xff]
  %v261 = vld [vmem:[%s1 + $0x4b8] sm:$0xff]
  %v262 = vld [vmem:[%s1 + $0x4c0] sm:$0xff]
  %v263 = vld [vmem:[%s1 + $0x4c8] sm:$0xff]
  %v264 = vld [vmem:[%s1 + $0x4d0] sm:$0xff]
  %v265 = vld [vmem:[%s1 + $0x4d8] sm:$0xff]
  %v266 = vld [vmem:[%s1 + $0x4e0] sm:$0xff]
  %v267 = vld [vmem:[%s1 + $0x4e8] sm:$0xff]
  %v268 = vld [vmem:[%s1 + $0x4f0] sm:$0xff]
  %v269 = vld [vmem:[%s1 + $0x4f8] sm:$0xff]
  %v270 = vld [vmem:[%s1 + $0x500] sm:$0xff]
  %v271 = vld [vmem:[%s1 + $0x508] sm:$0xff]
  %v272 = vld [vmem:[%s1 + $0x510] sm:$0xff]
  %v273 = vld [vmem:[%s1 + $0x518] sm:$0xff]
  %v274 = vld [vmem:[%s1 + $0x520] sm:$0xff]
  %v275 = vld [vmem:[%s1 + $0x528] sm:$0xff]
  %v276 = vld [vmem:[%s1 + $0x530] sm:$0xff]
  %v277 = vld [vmem:[%s1 + $0x538] sm:$0xff]
  %v278 = vld [vmem:[%s1 + $0x540] sm:$0xff]
  %v279 = vld [vmem:[%s1 + $0x548] sm:$0xff]
  %v280 = vld [vmem:[%s1 + $0x550] sm:$0xff]
  %v281 = vld [vmem:[%s1 + $0x558] sm:$0xff]
  %v282 = vld [vmem:[%s1 + $0x560] sm:$0xff]
  %v283 = vld [vmem:[%s1 + $0x568] sm:$0xff]
  %v284 = vld [vmem:[%s1 + $0x570] sm:$0xff]
  %v285 = vld [vmem:[%s1 + $0x578] sm:$0xff]
  %v286 = vld [vmem:[%s1 + $0x580] sm:$0xff]
  %v287 = vld [vmem:[%s1 + $0x588] sm:$0xff]
  %v288 = vld [vmem:[%s1 + $0x590] sm:$0xff]
  %v289 = vld [vmem:[%s1 + $0x598] sm:$0xff]
  %v290 = vld [vmem:[%s1 + $0x5a0] sm:$0xff]
  %v291 = vld [vmem:[%s1 + $0x5a8] sm:$0xff]
  %v292 = vld [vmem:[%s1 + $0x5b0] sm:$0xff]
  %v293 = vld [vmem:[%s1 + $0x5b8] sm:$0xff]
  %v294 = vld [vmem:[%s1 + $0x5c0] sm:$0xff]
  %v295 = vld [vmem:[%s1 + $0x5c8] sm:$0xff]
  %v296 = vld [vmem:[%s1 + $0x5d0] sm:$0xff]
  %v297 = vld [vmem:[%s1 + $0x5d8] sm:$0xff]
  %v298 = vld [vmem:[%s1 + $0x5e0] sm:$0xff]
  %v299 = vld [vmem:[%s1 + $0x5e8] sm:$0xff]
  %v300 = vld [vmem:[%s1 + $0x5f0] sm:$0xff]
  %v301 = vld [vmem:[%s1 + $0x5f8] sm:$0xff]
  %v302 = vld [vmem:[%s1 + $0x600] sm:$0xff]
  %v303 = vld [vmem:[%s1 + $0x608] sm:$0xff]
  %v304 = vld [vmem:[%s1 + $0x610] sm:$0xff]
  %v305 = vld [vmem:[%s1 + $0x618] sm:$0xff]
  %v306 = vld [vmem:[%s1 + $0x620] sm:$0xff]
  %v307 = vld [vmem:[%s1 + $0x628] sm:$0xff]
  %v308 = vld [vmem:[%s1 + $0x630] sm:$0xff]
  %v309 = vld [vmem:[%s1 + $0x638] sm:$0xff]
  %v310 = vld [vmem:[%s1 + $0x640] sm:$0xff]
  %v311 = vld [vmem:[%s1 + $0x648] sm:$0xff]
  %v312 = vld [vmem:[%s1 + $0x650] sm:$0xff]
  %v313 = vld [vmem:[%s1 + $0x658] sm:$0xff]
  %v314 = vld [vmem:[%s1 + $0x660] sm:$0xff]
  %v315 = vld [vmem:[%s1 + $0x668] sm:$0xff]
  %v316 = vld [vmem:[%s1 + $0x670] sm:$0xff]
  %v317 = vld [vmem:[%s1 + $0x678] sm:$0xff]
  %v318 = vld [vmem:[%s1 + $0x680] sm:$0xff]
  %v319 = vld [vmem:[%s1 + $0x688] sm:$0xff]
  %v320 = vld [vmem:[%s1 + $0x690] sm:$0xff]
  %v321 = vld [vmem:[%s1 + $0x698] sm:$0xff]
  %v322 = vld [vmem:[%s1 + $0x6a0] sm:$0xff]
  %v323 = vld [vmem:[%s1 + $0x6a8] sm:$0xff]
  %v324 = vld [vmem:[%s1 + $0x6b0] sm:$0xff]
  %v325 = vld [vmem:[%s1 + $0x6b8] sm:$0xff]
  %v326 = vld [vmem:[%s1 + $0x6c0] sm:$0xff]
  %v327 = vld [vmem:[%s1 + $0x6c8] sm:$0xff]
  %v328 = vld [vmem:[%s1 + $0x6d0] sm:$0xff]
  %v329 = vld [vmem:[%s1 + $0x6d8] sm:$0xff]
  %v330 = vld [vmem:[%s1 + $0x6e0] sm:$0xff]
  %v331 = vld [vmem:[%s1 + $0x6e8] sm:$0xff]
  %v332 = vld [vmem:[%s1 + $0x6f0] sm:$0xff]
  %v333 = vld [vmem:[%s1 + $0x6f8] sm:$0xff]
  %v334 = vld [vmem:[%s1 + $0x700] sm:$0xff]
  %v335 = vld [vmem:[%s1 + $0x708] sm:$0xff]
  %v336 = vld [vmem:[%s1 + $0x710] sm:$0xff]
  %v337 = vld [vmem:[%s1 + $0x718] sm:$0xff]
  %v338 = vld [vmem:[%s1 + $0x720] sm:$0xff]
  %v339 = vld [vmem:[%s1 + $0x728] sm:$0xff]
  %v340 = vld [vmem:[%s1 + $0x730] sm:$0xff]
  %v341 = vld [vmem:[%s1 + $0x738] sm:$0xff]
  %v342 = vld [vmem:[%s1 + $0x740] sm:$0xff]
  %v343 = vld [vmem:[%s1 + $0x748] sm:$0xff]
  %v344 = vld [vmem:[%s1 + $0x750] sm:$0xff]
  %v345 = vld [vmem:[%s1 + $0x758] sm:$0xff]
  %v346 = vld [vmem:[%s1 + $0x760] sm:$0xff]
  %v347 = vld [vmem:[%s1 + $0x768] sm:$0xff]
  %v348 = vld [vmem:[%s1 + $0x770] sm:$0xff]
  %v349 = vld [vmem:[%s1 + $0x778] sm:$0xff]
  %v350 = vld [vmem:[%s1 + $0x780] sm:$0xff]
  %v351 = vld [vmem:[%s1 + $0x788] sm:$0xff]
  %v352 = vld [vmem:[%s1 + $0x790] sm:$0xff]
  %v353 = vld [vmem:[%s1 + $0x798] sm:$0xff]
  %v354 = vld [vmem:[%s1 + $0x7a0] sm:$0xff]
  %v355 = vld [vmem:[%s1 + $0x7a8] sm:$0xff]
  %v356 = vld [vmem:[%s1 + $0x7b0] sm:$0xff]
  %v357 = vld [vmem:[%s1 + $0x7b8] sm:$0xff]
  %v358 = vld [vmem:[%s1 + $0x7c0] sm:$0xff]
  %v359 = vld [vmem:[%s1 + $0x7c8] sm:$0xff]
  %v360 = vld [vmem:[%s1 + $0x7d0] sm:$0xff]
  %v361 = vld [vmem:[%s1 + $0x7d8] sm:$0xff]
  %v362 = vld [vmem:[%s1 + $0x7e0] sm:$0xff]
  %v363 = vld [vmem:[%s1 + $0x7e8] sm:$0xff]
  %v364 = vld [vmem:[%s1 + $0x7f0] sm:$0xff]
  %v365 = vld [vmem:[%s1 + $0x7f8] sm:$0xff]
  %v366 = vld [vmem:[%s1 + $0x800] sm:$0xff]
  %v367 = vld [vmem:[%s1 + $0x808] sm:$0xff]
  %v368 = vld [vmem:[%s1 + $0x810] sm:$0xff]
  %v369 = vld [vmem:[%s1 + $0x818] sm:$0xff]
  %v370 = vld [vmem:[%s1 + $0x820] sm:$0xff]
  %v371 = vld [vmem:[%s1 + $0x828] sm:$0xff]
  %v372 = vld [vmem:[%s1 + $0x830] sm:$0xff]
  %v373 = vld [vmem:[%s1 + $0x838] sm:$0xff]
  %v374 = vld [vmem:[%s1 + $0x840] sm:$0xff]
  %v375 = vld [vmem:[%s1 + $0x848] sm:$0xff]
  %v376 = vld [vmem:[%s1 + $0x850] sm:$0xff]
  %v377 = vld [vmem:[%s1 + $0x858] sm:$0xff]
  %v378 = vld [vmem:[%s1 + $0x860] sm:$0xff]
  %v379 = vld [vmem:[%s1 + $0x868] sm:$0xff]
  %v380 = vld [vmem:[%s1 + $0x870] sm:$0xff]
  %v381 = vld [vmem:[%s1 + $0x878] sm:$0xff]
  %v382 = vld [vmem:[%s1 + $0x880] sm:$0xff]
  %v383 = vld [vmem:[%s1 + $0x888] sm:$0xff]
  %v384 = vld [vmem:[%s1 + $0x890] sm:$0xff]
  %v385 = vld [vmem:[%s1 + $0x898] sm:$0xff]
  %v386 = vld [vmem:[%s1 + $0x8a0] sm:$0xff]
  %v387 = vld [vmem:[%s1 + $0x8a8] sm:$0xff]
  %v388 = vld [vmem:[%s1 + $0x8b0] sm:$0xff]
  %v389 = vld [vmem:[%s1 + $0x8b8] sm:$0xff]
  %v390 = vld [vmem:[%s1 + $0x8c0] sm:$0xff]
  %v391 = vld [vmem:[%s1 + $0x8c8] sm:$0xff]
  %v392 = vld [vmem:[%s1 + $0x8d0] sm:$0xff]
  %v393 = vld [vmem:[%s1 + $0x8d8] sm:$0xff]
  %v394 = vld [vmem:[%s1 + $0x8e0] sm:$0xff]
  %v395 = vld [vmem:[%s1 + $0x8e8] sm:$0xff]
  %v396 = vld [vmem:[%s1 + $0x8f0] sm:$0xff]
  %v397 = vld [vmem:[%s1 + $0x8f8] sm:$0xff]
  %v398 = vld [vmem:[%s2] sm:$0x3f]
  %v400 = vlaneseq
  %v401 = vshrl.u32 %v400, 7
  %v402 = vsub.s32 0, %v401
  %v403 = vrot.slane %v398, %v402
  %v404 = vlaneseq
  %v405 = vshrl.u32 %v404, 7
  %v406 = vsub.s32 1, %v405
  %v407 = vrot.slane %v398, %v406
  %v408 = vlaneseq
  %v409 = vshrl.u32 %v408, 7
  %v410 = vsub.s32 2, %v409
  %v411 = vrot.slane %v398, %v410
  %v412 = vlaneseq
  %v413 = vshrl.u32 %v412, 7
  %v414 = vsub.s32 3, %v413
  %v415 = vrot.slane %v398, %v414
  %v416 = vlaneseq
  %v417 = vshrl.u32 %v416, 7
  %v418 = vsub.s32 4, %v417
  %v419 = vrot.slane %v398, %v418
  %v420 = vlaneseq
  %v421 = vshrl.u32 %v420, 7
  %v422 = vsub.s32 5, %v421
  %v423 = vrot.slane %v398, %v422
  %v526 = vunpack.c.l.b16 %v14
  %v527 = vunpack.c.h.b16 %v14
  %v528 = vunpack.c.l.b16 %v15
  %v529 = vunpack.c.h.b16 %v15
  %v530 = vunpack.c.l.b16 %v16
  %v531 = vunpack.c.h.b16 %v16
  %v532 = vunpack.c.l.b16 %v17
  %v533 = vunpack.c.h.b16 %v17
  %v534 = vunpack.c.l.b16 %v18
  %v535 = vunpack.c.h.b16 %v18
  %v536 = vunpack.c.l.b16 %v19
  %v537 = vunpack.c.h.b16 %v19
  %v538 = vunpack.c.l.b16 %v20
  %v539 = vunpack.c.h.b16 %v20
  %v540 = vunpack.c.l.b16 %v21
  %v541 = vunpack.c.h.b16 %v21
  %v542 = vunpack.c.l.b16 %v22
  %v543 = vunpack.c.h.b16 %v22
  %v544 = vunpack.c.l.b16 %v23
  %v545 = vunpack.c.h.b16 %v23
  %v546 = vunpack.c.l.b16 %v24
  %v547 = vunpack.c.h.b16 %v24
  %v548 = vunpack.c.l.b16 %v25
  %v549 = vunpack.c.h.b16 %v25
  %v550 = vunpack.c.l.b16 %v26
  %v551 = vunpack.c.h.b16 %v26
  %v552 = vunpack.c.l.b16 %v27
  %v553 = vunpack.c.h.b16 %v27
  %v554 = vunpack.c.l.b16 %v28
  %v555 = vunpack.c.h.b16 %v28
  %v556 = vunpack.c.l.b16 %v29
  %v557 = vunpack.c.h.b16 %v29
  %v558 = vunpack.c.l.b16 %v30
  %v559 = vunpack.c.h.b16 %v30
  %v560 = vunpack.c.l.b16 %v31
  %v561 = vunpack.c.h.b16 %v31
  %v562 = vunpack.c.l.b16 %v32
  %v563 = vunpack.c.h.b16 %v32
  %v564 = vunpack.c.l.b16 %v33
  %v565 = vunpack.c.h.b16 %v33
  %v566 = vunpack.c.l.b16 %v34
  %v567 = vunpack.c.h.b16 %v34
  %v568 = vunpack.c.l.b16 %v35
  %v569 = vunpack.c.h.b16 %v35
  %v570 = vunpack.c.l.b16 %v36
  %v571 = vunpack.c.h.b16 %v36
  %v572 = vunpack.c.l.b16 %v37
  %v573 = vunpack.c.h.b16 %v37
  %v574 = vunpack.c.l.b16 %v38
  %v575 = vunpack.c.h.b16 %v38
  %v576 = vunpack.c.l.b16 %v39
  %v577 = vunpack.c.h.b16 %v39
  %v578 = vunpack.c.l.b16 %v40
  %v579 = vunpack.c.h.b16 %v40
  %v580 = vunpack.c.l.b16 %v41
  %v581 = vunpack.c.h.b16 %v41
  %v582 = vunpack.c.l.b16 %v42
  %v583 = vunpack.c.h.b16 %v42
  %v584 = vunpack.c.l.b16 %v43
  %v585 = vunpack.c.h.b16 %v43
  %v586 = vunpack.c.l.b16 %v44
  %v587 = vunpack.c.h.b16 %v44
  %v588 = vunpack.c.l.b16 %v45
  %v589 = vunpack.c.h.b16 %v45
  %v590 = vunpack.c.l.b16 %v46
  %v591 = vunpack.c.h.b16 %v46
  %v592 = vunpack.c.l.b16 %v47
  %v593 = vunpack.c.h.b16 %v47
  %v594 = vunpack.c.l.b16 %v48
  %v595 = vunpack.c.h.b16 %v48
  %v596 = vunpack.c.l.b16 %v49
  %v597 = vunpack.c.h.b16 %v49
  %v598 = vunpack.c.l.b16 %v50
  %v599 = vunpack.c.h.b16 %v50
  %v600 = vunpack.c.l.b16 %v51
  %v601 = vunpack.c.h.b16 %v51
  %v602 = vunpack.c.l.b16 %v52
  %v603 = vunpack.c.h.b16 %v52
  %v604 = vunpack.c.l.b16 %v53
  %v605 = vunpack.c.h.b16 %v53
  %v606 = vunpack.c.l.b16 %v54
  %v607 = vunpack.c.h.b16 %v54
  %v608 = vunpack.c.l.b16 %v55
  %v609 = vunpack.c.h.b16 %v55
  %v610 = vunpack.c.l.b16 %v56
  %v611 = vunpack.c.h.b16 %v56
  %v612 = vunpack.c.l.b16 %v57
  %v613 = vunpack.c.h.b16 %v57
  %v614 = vunpack.c.l.b16 %v58
  %v615 = vunpack.c.h.b16 %v58
  %v616 = vunpack.c.l.b16 %v59
  %v617 = vunpack.c.h.b16 %v59
  %v618 = vunpack.c.l.b16 %v60
  %v619 = vunpack.c.h.b16 %v60
  %v620 = vunpack.c.l.b16 %v61
  %v621 = vunpack.c.h.b16 %v61
  %v622 = vunpack.c.l.b16 %v62
  %v623 = vunpack.c.h.b16 %v62
  %v624 = vunpack.c.l.b16 %v63
  %v625 = vunpack.c.h.b16 %v63
  %v626 = vunpack.c.l.b16 %v64
  %v627 = vunpack.c.h.b16 %v64
  %v628 = vunpack.c.l.b16 %v65
  %v629 = vunpack.c.h.b16 %v65
  %v630 = vunpack.c.l.b16 %v66
  %v631 = vunpack.c.h.b16 %v66
  %v632 = vunpack.c.l.b16 %v67
  %v633 = vunpack.c.h.b16 %v67
  %v634 = vunpack.c.l.b16 %v68
  %v635 = vunpack.c.h.b16 %v68
  %v636 = vunpack.c.l.b16 %v69
  %v637 = vunpack.c.h.b16 %v69
  %v638 = vunpack.c.l.b16 %v70
  %v639 = vunpack.c.h.b16 %v70
  %v640 = vunpack.c.l.b16 %v71
  %v641 = vunpack.c.h.b16 %v71
  %v642 = vunpack.c.l.b16 %v72
  %v643 = vunpack.c.h.b16 %v72
  %v644 = vunpack.c.l.b16 %v73
  %v645 = vunpack.c.h.b16 %v73
  %v646 = vunpack.c.l.b16 %v74
  %v647 = vunpack.c.h.b16 %v74
  %v648 = vunpack.c.l.b16 %v75
  %v649 = vunpack.c.h.b16 %v75
  %v650 = vunpack.c.l.b16 %v76
  %v651 = vunpack.c.h.b16 %v76
  %v652 = vunpack.c.l.b16 %v77
  %v653 = vunpack.c.h.b16 %v77
  %v654 = vunpack.c.l.b16 %v78
  %v655 = vunpack.c.h.b16 %v78
  %v656 = vunpack.c.l.b16 %v79
  %v657 = vunpack.c.h.b16 %v79
  %v658 = vunpack.c.l.b16 %v80
  %v659 = vunpack.c.h.b16 %v80
  %v660 = vunpack.c.l.b16 %v81
  %v661 = vunpack.c.h.b16 %v81
  %v662 = vunpack.c.l.b16 %v82
  %v663 = vunpack.c.h.b16 %v82
  %v664 = vunpack.c.l.b16 %v83
  %v665 = vunpack.c.h.b16 %v83
  %v666 = vunpack.c.l.b16 %v84
  %v667 = vunpack.c.h.b16 %v84
  %v668 = vunpack.c.l.b16 %v85
  %v669 = vunpack.c.h.b16 %v85
  %v670 = vunpack.c.l.b16 %v86
  %v671 = vunpack.c.h.b16 %v86
  %v672 = vunpack.c.l.b16 %v87
  %v673 = vunpack.c.h.b16 %v87
  %v674 = vunpack.c.l.b16 %v88
  %v675 = vunpack.c.h.b16 %v88
  %v676 = vunpack.c.l.b16 %v89
  %v677 = vunpack.c.h.b16 %v89
  %v678 = vunpack.c.l.b16 %v90
  %v679 = vunpack.c.h.b16 %v90
  %v680 = vunpack.c.l.b16 %v91
  %v681 = vunpack.c.h.b16 %v91
  %v682 = vunpack.c.l.b16 %v92
  %v683 = vunpack.c.h.b16 %v92
  %v684 = vunpack.c.l.b16 %v93
  %v685 = vunpack.c.h.b16 %v93
  %v686 = vunpack.c.l.b16 %v94
  %v687 = vunpack.c.h.b16 %v94
  %v688 = vunpack.c.l.b16 %v95
  %v689 = vunpack.c.h.b16 %v95
  %v690 = vunpack.c.l.b16 %v96
  %v691 = vunpack.c.h.b16 %v96
  %v692 = vunpack.c.l.b16 %v97
  %v693 = vunpack.c.h.b16 %v97
  %v694 = vunpack.c.l.b16 %v98
  %v695 = vunpack.c.h.b16 %v98
  %v696 = vunpack.c.l.b16 %v99
  %v697 = vunpack.c.h.b16 %v99
  %v698 = vunpack.c.l.b16 %v100
  %v699 = vunpack.c.h.b16 %v100
  %v700 = vunpack.c.l.b16 %v101
  %v701 = vunpack.c.h.b16 %v101
  %v702 = vunpack.c.l.b16 %v102
  %v703 = vunpack.c.h.b16 %v102
  %v704 = vunpack.c.l.b16 %v103
  %v705 = vunpack.c.h.b16 %v103
  %v706 = vunpack.c.l.b16 %v104
  %v707 = vunpack.c.h.b16 %v104
  %v708 = vunpack.c.l.b16 %v105
  %v709 = vunpack.c.h.b16 %v105
  %v710 = vunpack.c.l.b16 %v106
  %v711 = vunpack.c.h.b16 %v106
  %v712 = vunpack.c.l.b16 %v107
  %v713 = vunpack.c.h.b16 %v107
  %v714 = vunpack.c.l.b16 %v108
  %v715 = vunpack.c.h.b16 %v108
  %v716 = vunpack.c.l.b16 %v109
  %v717 = vunpack.c.h.b16 %v109
  %v718 = vpack.c.b16 %v532, %v526
  %v719 = vpack.c.b16 %v533, %v527
  %v720 = vpack.c.b16 %v534, %v528
  %v721 = vpack.c.b16 %v535, %v529
  %v722 = vpack.c.b16 %v536, %v530
  %v723 = vpack.c.b16 %v537, %v531
  %v724 = vpack.c.b16 %v544, %v538
  %v725 = vpack.c.b16 %v545, %v539
  %v726 = vpack.c.b16 %v546, %v540
  %v727 = vpack.c.b16 %v547, %v541
  %v728 = vpack.c.b16 %v548, %v542
  %v729 = vpack.c.b16 %v549, %v543
  %v730 = vpack.c.b16 %v556, %v550
  %v731 = vpack.c.b16 %v557, %v551
  %v732 = vpack.c.b16 %v558, %v552
  %v733 = vpack.c.b16 %v559, %v553
  %v734 = vpack.c.b16 %v560, %v554
  %v735 = vpack.c.b16 %v561, %v555
  %v736 = vpack.c.b16 %v568, %v562
  %v737 = vpack.c.b16 %v569, %v563
  %v738 = vpack.c.b16 %v570, %v564
  %v739 = vpack.c.b16 %v571, %v565
  %v740 = vpack.c.b16 %v572, %v566
  %v741 = vpack.c.b16 %v573, %v567
  %v742 = vpack.c.b16 %v580, %v574
  %v743 = vpack.c.b16 %v581, %v575
  %v744 = vpack.c.b16 %v582, %v576
  %v745 = vpack.c.b16 %v583, %v577
  %v746 = vpack.c.b16 %v584, %v578
  %v747 = vpack.c.b16 %v585, %v579
  %v748 = vpack.c.b16 %v592, %v586
  %v749 = vpack.c.b16 %v593, %v587
  %v750 = vpack.c.b16 %v594, %v588
  %v751 = vpack.c.b16 %v595, %v589
  %v752 = vpack.c.b16 %v596, %v590
  %v753 = vpack.c.b16 %v597, %v591
  %v754 = vpack.c.b16 %v604, %v598
  %v755 = vpack.c.b16 %v605, %v599
  %v756 = vpack.c.b16 %v606, %v600
  %v757 = vpack.c.b16 %v607, %v601
  %v758 = vpack.c.b16 %v608, %v602
  %v759 = vpack.c.b16 %v609, %v603
  %v760 = vpack.c.b16 %v616, %v610
  %v761 = vpack.c.b16 %v617, %v611
  %v762 = vpack.c.b16 %v618, %v612
  %v763 = vpack.c.b16 %v619, %v613
  %v764 = vpack.c.b16 %v620, %v614
  %v765 = vpack.c.b16 %v621, %v615
  %v766 = vpack.c.b16 %v628, %v622
  %v767 = vpack.c.b16 %v629, %v623
  %v768 = vpack.c.b16 %v630, %v624
  %v769 = vpack.c.b16 %v631, %v625
  %v770 = vpack.c.b16 %v632, %v626
  %v771 = vpack.c.b16 %v633, %v627
  %v772 = vpack.c.b16 %v640, %v634
  %v773 = vpack.c.b16 %v641, %v635
  %v774 = vpack.c.b16 %v642, %v636
  %v775 = vpack.c.b16 %v643, %v637
  %v776 = vpack.c.b16 %v644, %v638
  %v777 = vpack.c.b16 %v645, %v639
  %v778 = vpack.c.b16 %v652, %v646
  %v779 = vpack.c.b16 %v653, %v647
  %v780 = vpack.c.b16 %v654, %v648
  %v781 = vpack.c.b16 %v655, %v649
  %v782 = vpack.c.b16 %v656, %v650
  %v783 = vpack.c.b16 %v657, %v651
  %v784 = vpack.c.b16 %v664, %v658
  %v785 = vpack.c.b16 %v665, %v659
  %v786 = vpack.c.b16 %v666, %v660
  %v787 = vpack.c.b16 %v667, %v661
  %v788 = vpack.c.b16 %v668, %v662
  %v789 = vpack.c.b16 %v669, %v663
  %v790 = vpack.c.b16 %v676, %v670
  %v791 = vpack.c.b16 %v677, %v671
  %v792 = vpack.c.b16 %v678, %v672
  %v793 = vpack.c.b16 %v679, %v673
  %v794 = vpack.c.b16 %v680, %v674
  %v795 = vpack.c.b16 %v681, %v675
  %v796 = vpack.c.b16 %v688, %v682
  %v797 = vpack.c.b16 %v689, %v683
  %v798 = vpack.c.b16 %v690, %v684
  %v799 = vpack.c.b16 %v691, %v685
  %v800 = vpack.c.b16 %v692, %v686
  %v801 = vpack.c.b16 %v693, %v687
  %v802 = vpack.c.b16 %v700, %v694
  %v803 = vpack.c.b16 %v701, %v695
  %v804 = vpack.c.b16 %v702, %v696
  %v805 = vpack.c.b16 %v703, %v697
  %v806 = vpack.c.b16 %v704, %v698
  %v807 = vpack.c.b16 %v705, %v699
  %v808 = vpack.c.b16 %v712, %v706
  %v809 = vpack.c.b16 %v713, %v707
  %v810 = vpack.c.b16 %v714, %v708
  %v811 = vpack.c.b16 %v715, %v709
  %v812 = vpack.c.b16 %v716, %v710
  %v813 = vpack.c.b16 %v717, %v711
  %v1198 = vunpack.c.l.b16 %v110
  %v1199 = vunpack.c.h.b16 %v110
  %v1200 = vunpack.c.l.b16 %v111
  %v1201 = vunpack.c.h.b16 %v111
  %v1202 = vunpack.c.l.b16 %v112
  %v1203 = vunpack.c.h.b16 %v112
  %v1204 = vunpack.c.l.b16 %v113
  %v1205 = vunpack.c.h.b16 %v113
  %v1206 = vunpack.c.l.b16 %v114
  %v1207 = vunpack.c.h.b16 %v114
  %v1208 = vunpack.c.l.b16 %v115
  %v1209 = vunpack.c.h.b16 %v115
  %v1210 = vunpack.c.l.b16 %v116
  %v1211 = vunpack.c.h.b16 %v116
  %v1212 = vunpack.c.l.b16 %v117
  %v1213 = vunpack.c.h.b16 %v117
  %v1214 = vunpack.c.l.b16 %v118
  %v1215 = vunpack.c.h.b16 %v118
  %v1216 = vunpack.c.l.b16 %v119
  %v1217 = vunpack.c.h.b16 %v119
  %v1218 = vunpack.c.l.b16 %v120
  %v1219 = vunpack.c.h.b16 %v120
  %v1220 = vunpack.c.l.b16 %v121
  %v1221 = vunpack.c.h.b16 %v121
  %v1222 = vunpack.c.l.b16 %v122
  %v1223 = vunpack.c.h.b16 %v122
  %v1224 = vunpack.c.l.b16 %v123
  %v1225 = vunpack.c.h.b16 %v123
  %v1226 = vunpack.c.l.b16 %v124
  %v1227 = vunpack.c.h.b16 %v124
  %v1228 = vunpack.c.l.b16 %v125
  %v1229 = vunpack.c.h.b16 %v125
  %v1230 = vunpack.c.l.b16 %v126
  %v1231 = vunpack.c.h.b16 %v126
  %v1232 = vunpack.c.l.b16 %v127
  %v1233 = vunpack.c.h.b16 %v127
  %v1234 = vunpack.c.l.b16 %v128
  %v1235 = vunpack.c.h.b16 %v128
  %v1236 = vunpack.c.l.b16 %v129
  %v1237 = vunpack.c.h.b16 %v129
  %v1238 = vunpack.c.l.b16 %v130
  %v1239 = vunpack.c.h.b16 %v130
  %v1240 = vunpack.c.l.b16 %v131
  %v1241 = vunpack.c.h.b16 %v131
  %v1242 = vunpack.c.l.b16 %v132
  %v1243 = vunpack.c.h.b16 %v132
  %v1244 = vunpack.c.l.b16 %v133
  %v1245 = vunpack.c.h.b16 %v133
  %v1246 = vunpack.c.l.b16 %v134
  %v1247 = vunpack.c.h.b16 %v134
  %v1248 = vunpack.c.l.b16 %v135
  %v1249 = vunpack.c.h.b16 %v135
  %v1250 = vunpack.c.l.b16 %v136
  %v1251 = vunpack.c.h.b16 %v136
  %v1252 = vunpack.c.l.b16 %v137
  %v1253 = vunpack.c.h.b16 %v137
  %v1254 = vunpack.c.l.b16 %v138
  %v1255 = vunpack.c.h.b16 %v138
  %v1256 = vunpack.c.l.b16 %v139
  %v1257 = vunpack.c.h.b16 %v139
  %v1258 = vunpack.c.l.b16 %v140
  %v1259 = vunpack.c.h.b16 %v140
  %v1260 = vunpack.c.l.b16 %v141
  %v1261 = vunpack.c.h.b16 %v141
  %v1262 = vunpack.c.l.b16 %v142
  %v1263 = vunpack.c.h.b16 %v142
  %v1264 = vunpack.c.l.b16 %v143
  %v1265 = vunpack.c.h.b16 %v143
  %v1266 = vunpack.c.l.b16 %v144
  %v1267 = vunpack.c.h.b16 %v144
  %v1268 = vunpack.c.l.b16 %v145
  %v1269 = vunpack.c.h.b16 %v145
  %v1270 = vunpack.c.l.b16 %v146
  %v1271 = vunpack.c.h.b16 %v146
  %v1272 = vunpack.c.l.b16 %v147
  %v1273 = vunpack.c.h.b16 %v147
  %v1274 = vunpack.c.l.b16 %v148
  %v1275 = vunpack.c.h.b16 %v148
  %v1276 = vunpack.c.l.b16 %v149
  %v1277 = vunpack.c.h.b16 %v149
  %v1278 = vunpack.c.l.b16 %v150
  %v1279 = vunpack.c.h.b16 %v150
  %v1280 = vunpack.c.l.b16 %v151
  %v1281 = vunpack.c.h.b16 %v151
  %v1282 = vunpack.c.l.b16 %v152
  %v1283 = vunpack.c.h.b16 %v152
  %v1284 = vunpack.c.l.b16 %v153
  %v1285 = vunpack.c.h.b16 %v153
  %v1286 = vunpack.c.l.b16 %v154
  %v1287 = vunpack.c.h.b16 %v154
  %v1288 = vunpack.c.l.b16 %v155
  %v1289 = vunpack.c.h.b16 %v155
  %v1290 = vunpack.c.l.b16 %v156
  %v1291 = vunpack.c.h.b16 %v156
  %v1292 = vunpack.c.l.b16 %v157
  %v1293 = vunpack.c.h.b16 %v157
  %v1294 = vunpack.c.l.b16 %v158
  %v1295 = vunpack.c.h.b16 %v158
  %v1296 = vunpack.c.l.b16 %v159
  %v1297 = vunpack.c.h.b16 %v159
  %v1298 = vunpack.c.l.b16 %v160
  %v1299 = vunpack.c.h.b16 %v160
  %v1300 = vunpack.c.l.b16 %v161
  %v1301 = vunpack.c.h.b16 %v161
  %v1302 = vunpack.c.l.b16 %v162
  %v1303 = vunpack.c.h.b16 %v162
  %v1304 = vunpack.c.l.b16 %v163
  %v1305 = vunpack.c.h.b16 %v163
  %v1306 = vunpack.c.l.b16 %v164
  %v1307 = vunpack.c.h.b16 %v164
  %v1308 = vunpack.c.l.b16 %v165
  %v1309 = vunpack.c.h.b16 %v165
  %v1310 = vunpack.c.l.b16 %v166
  %v1311 = vunpack.c.h.b16 %v166
  %v1312 = vunpack.c.l.b16 %v167
  %v1313 = vunpack.c.h.b16 %v167
  %v1314 = vunpack.c.l.b16 %v168
  %v1315 = vunpack.c.h.b16 %v168
  %v1316 = vunpack.c.l.b16 %v169
  %v1317 = vunpack.c.h.b16 %v169
  %v1318 = vunpack.c.l.b16 %v170
  %v1319 = vunpack.c.h.b16 %v170
  %v1320 = vunpack.c.l.b16 %v171
  %v1321 = vunpack.c.h.b16 %v171
  %v1322 = vunpack.c.l.b16 %v172
  %v1323 = vunpack.c.h.b16 %v172
  %v1324 = vunpack.c.l.b16 %v173
  %v1325 = vunpack.c.h.b16 %v173
  %v1326 = vunpack.c.l.b16 %v174
  %v1327 = vunpack.c.h.b16 %v174
  %v1328 = vunpack.c.l.b16 %v175
  %v1329 = vunpack.c.h.b16 %v175
  %v1330 = vunpack.c.l.b16 %v176
  %v1331 = vunpack.c.h.b16 %v176
  %v1332 = vunpack.c.l.b16 %v177
  %v1333 = vunpack.c.h.b16 %v177
  %v1334 = vunpack.c.l.b16 %v178
  %v1335 = vunpack.c.h.b16 %v178
  %v1336 = vunpack.c.l.b16 %v179
  %v1337 = vunpack.c.h.b16 %v179
  %v1338 = vunpack.c.l.b16 %v180
  %v1339 = vunpack.c.h.b16 %v180
  %v1340 = vunpack.c.l.b16 %v181
  %v1341 = vunpack.c.h.b16 %v181
  %v1342 = vunpack.c.l.b16 %v182
  %v1343 = vunpack.c.h.b16 %v182
  %v1344 = vunpack.c.l.b16 %v183
  %v1345 = vunpack.c.h.b16 %v183
  %v1346 = vunpack.c.l.b16 %v184
  %v1347 = vunpack.c.h.b16 %v184
  %v1348 = vunpack.c.l.b16 %v185
  %v1349 = vunpack.c.h.b16 %v185
  %v1350 = vunpack.c.l.b16 %v186
  %v1351 = vunpack.c.h.b16 %v186
  %v1352 = vunpack.c.l.b16 %v187
  %v1353 = vunpack.c.h.b16 %v187
  %v1354 = vunpack.c.l.b16 %v188
  %v1355 = vunpack.c.h.b16 %v188
  %v1356 = vunpack.c.l.b16 %v189
  %v1357 = vunpack.c.h.b16 %v189
  %v1358 = vunpack.c.l.b16 %v190
  %v1359 = vunpack.c.h.b16 %v190
  %v1360 = vunpack.c.l.b16 %v191
  %v1361 = vunpack.c.h.b16 %v191
  %v1362 = vunpack.c.l.b16 %v192
  %v1363 = vunpack.c.h.b16 %v192
  %v1364 = vunpack.c.l.b16 %v193
  %v1365 = vunpack.c.h.b16 %v193
  %v1366 = vunpack.c.l.b16 %v194
  %v1367 = vunpack.c.h.b16 %v194
  %v1368 = vunpack.c.l.b16 %v195
  %v1369 = vunpack.c.h.b16 %v195
  %v1370 = vunpack.c.l.b16 %v196
  %v1371 = vunpack.c.h.b16 %v196
  %v1372 = vunpack.c.l.b16 %v197
  %v1373 = vunpack.c.h.b16 %v197
  %v1374 = vunpack.c.l.b16 %v198
  %v1375 = vunpack.c.h.b16 %v198
  %v1376 = vunpack.c.l.b16 %v199
  %v1377 = vunpack.c.h.b16 %v199
  %v1378 = vunpack.c.l.b16 %v200
  %v1379 = vunpack.c.h.b16 %v200
  %v1380 = vunpack.c.l.b16 %v201
  %v1381 = vunpack.c.h.b16 %v201
  %v1382 = vunpack.c.l.b16 %v202
  %v1383 = vunpack.c.h.b16 %v202
  %v1384 = vunpack.c.l.b16 %v203
  %v1385 = vunpack.c.h.b16 %v203
  %v1386 = vunpack.c.l.b16 %v204
  %v1387 = vunpack.c.h.b16 %v204
  %v1388 = vunpack.c.l.b16 %v205
  %v1389 = vunpack.c.h.b16 %v205
  %v1390 = vunpack.c.l.b16 %v206
  %v1391 = vunpack.c.h.b16 %v206
  %v1392 = vunpack.c.l.b16 %v207
  %v1393 = vunpack.c.h.b16 %v207
  %v1394 = vunpack.c.l.b16 %v208
  %v1395 = vunpack.c.h.b16 %v208
  %v1396 = vunpack.c.l.b16 %v209
  %v1397 = vunpack.c.h.b16 %v209
  %v1398 = vunpack.c.l.b16 %v210
  %v1399 = vunpack.c.h.b16 %v210
  %v1400 = vunpack.c.l.b16 %v211
  %v1401 = vunpack.c.h.b16 %v211
  %v1402 = vunpack.c.l.b16 %v212
  %v1403 = vunpack.c.h.b16 %v212
  %v1404 = vunpack.c.l.b16 %v213
  %v1405 = vunpack.c.h.b16 %v213
  %v1406 = vunpack.c.l.b16 %v214
  %v1407 = vunpack.c.h.b16 %v214
  %v1408 = vunpack.c.l.b16 %v215
  %v1409 = vunpack.c.h.b16 %v215
  %v1410 = vunpack.c.l.b16 %v216
  %v1411 = vunpack.c.h.b16 %v216
  %v1412 = vunpack.c.l.b16 %v217
  %v1413 = vunpack.c.h.b16 %v217
  %v1414 = vunpack.c.l.b16 %v218
  %v1415 = vunpack.c.h.b16 %v218
  %v1416 = vunpack.c.l.b16 %v219
  %v1417 = vunpack.c.h.b16 %v219
  %v1418 = vunpack.c.l.b16 %v220
  %v1419 = vunpack.c.h.b16 %v220
  %v1420 = vunpack.c.l.b16 %v221
  %v1421 = vunpack.c.h.b16 %v221
  %v1422 = vunpack.c.l.b16 %v222
  %v1423 = vunpack.c.h.b16 %v222
  %v1424 = vunpack.c.l.b16 %v223
  %v1425 = vunpack.c.h.b16 %v223
  %v1426 = vunpack.c.l.b16 %v224
  %v1427 = vunpack.c.h.b16 %v224
  %v1428 = vunpack.c.l.b16 %v225
  %v1429 = vunpack.c.h.b16 %v225
  %v1430 = vunpack.c.l.b16 %v226
  %v1431 = vunpack.c.h.b16 %v226
  %v1432 = vunpack.c.l.b16 %v227
  %v1433 = vunpack.c.h.b16 %v227
  %v1434 = vunpack.c.l.b16 %v228
  %v1435 = vunpack.c.h.b16 %v228
  %v1436 = vunpack.c.l.b16 %v229
  %v1437 = vunpack.c.h.b16 %v229
  %v1438 = vunpack.c.l.b16 %v230
  %v1439 = vunpack.c.h.b16 %v230
  %v1440 = vunpack.c.l.b16 %v231
  %v1441 = vunpack.c.h.b16 %v231
  %v1442 = vunpack.c.l.b16 %v232
  %v1443 = vunpack.c.h.b16 %v232
  %v1444 = vunpack.c.l.b16 %v233
  %v1445 = vunpack.c.h.b16 %v233
  %v1446 = vunpack.c.l.b16 %v234
  %v1447 = vunpack.c.h.b16 %v234
  %v1448 = vunpack.c.l.b16 %v235
  %v1449 = vunpack.c.h.b16 %v235
  %v1450 = vunpack.c.l.b16 %v236
  %v1451 = vunpack.c.h.b16 %v236
  %v1452 = vunpack.c.l.b16 %v237
  %v1453 = vunpack.c.h.b16 %v237
  %v1454 = vunpack.c.l.b16 %v238
  %v1455 = vunpack.c.h.b16 %v238
  %v1456 = vunpack.c.l.b16 %v239
  %v1457 = vunpack.c.h.b16 %v239
  %v1458 = vunpack.c.l.b16 %v240
  %v1459 = vunpack.c.h.b16 %v240
  %v1460 = vunpack.c.l.b16 %v241
  %v1461 = vunpack.c.h.b16 %v241
  %v1462 = vunpack.c.l.b16 %v242
  %v1463 = vunpack.c.h.b16 %v242
  %v1464 = vunpack.c.l.b16 %v243
  %v1465 = vunpack.c.h.b16 %v243
  %v1466 = vunpack.c.l.b16 %v244
  %v1467 = vunpack.c.h.b16 %v244
  %v1468 = vunpack.c.l.b16 %v245
  %v1469 = vunpack.c.h.b16 %v245
  %v1470 = vunpack.c.l.b16 %v246
  %v1471 = vunpack.c.h.b16 %v246
  %v1472 = vunpack.c.l.b16 %v247
  %v1473 = vunpack.c.h.b16 %v247
  %v1474 = vunpack.c.l.b16 %v248
  %v1475 = vunpack.c.h.b16 %v248
  %v1476 = vunpack.c.l.b16 %v249
  %v1477 = vunpack.c.h.b16 %v249
  %v1478 = vunpack.c.l.b16 %v250
  %v1479 = vunpack.c.h.b16 %v250
  %v1480 = vunpack.c.l.b16 %v251
  %v1481 = vunpack.c.h.b16 %v251
  %v1482 = vunpack.c.l.b16 %v252
  %v1483 = vunpack.c.h.b16 %v252
  %v1484 = vunpack.c.l.b16 %v253
  %v1485 = vunpack.c.h.b16 %v253
  %v1486 = vunpack.c.l.b16 %v254
  %v1487 = vunpack.c.h.b16 %v254
  %v1488 = vunpack.c.l.b16 %v255
  %v1489 = vunpack.c.h.b16 %v255
  %v1490 = vunpack.c.l.b16 %v256
  %v1491 = vunpack.c.h.b16 %v256
  %v1492 = vunpack.c.l.b16 %v257
  %v1493 = vunpack.c.h.b16 %v257
  %v1494 = vunpack.c.l.b16 %v258
  %v1495 = vunpack.c.h.b16 %v258
  %v1496 = vunpack.c.l.b16 %v259
  %v1497 = vunpack.c.h.b16 %v259
  %v1498 = vunpack.c.l.b16 %v260
  %v1499 = vunpack.c.h.b16 %v260
  %v1500 = vunpack.c.l.b16 %v261
  %v1501 = vunpack.c.h.b16 %v261
  %v1502 = vunpack.c.l.b16 %v262
  %v1503 = vunpack.c.h.b16 %v262
  %v1504 = vunpack.c.l.b16 %v263
  %v1505 = vunpack.c.h.b16 %v263
  %v1506 = vunpack.c.l.b16 %v264
  %v1507 = vunpack.c.h.b16 %v264
  %v1508 = vunpack.c.l.b16 %v265
  %v1509 = vunpack.c.h.b16 %v265
  %v1510 = vunpack.c.l.b16 %v266
  %v1511 = vunpack.c.h.b16 %v266
  %v1512 = vunpack.c.l.b16 %v267
  %v1513 = vunpack.c.h.b16 %v267
  %v1514 = vunpack.c.l.b16 %v268
  %v1515 = vunpack.c.h.b16 %v268
  %v1516 = vunpack.c.l.b16 %v269
  %v1517 = vunpack.c.h.b16 %v269
  %v1518 = vunpack.c.l.b16 %v270
  %v1519 = vunpack.c.h.b16 %v270
  %v1520 = vunpack.c.l.b16 %v271
  %v1521 = vunpack.c.h.b16 %v271
  %v1522 = vunpack.c.l.b16 %v272
  %v1523 = vunpack.c.h.b16 %v272
  %v1524 = vunpack.c.l.b16 %v273
  %v1525 = vunpack.c.h.b16 %v273
  %v1526 = vunpack.c.l.b16 %v274
  %v1527 = vunpack.c.h.b16 %v274
  %v1528 = vunpack.c.l.b16 %v275
  %v1529 = vunpack.c.h.b16 %v275
  %v1530 = vunpack.c.l.b16 %v276
  %v1531 = vunpack.c.h.b16 %v276
  %v1532 = vunpack.c.l.b16 %v277
  %v1533 = vunpack.c.h.b16 %v277
  %v1534 = vunpack.c.l.b16 %v278
  %v1535 = vunpack.c.h.b16 %v278
  %v1536 = vunpack.c.l.b16 %v279
  %v1537 = vunpack.c.h.b16 %v279
  %v1538 = vunpack.c.l.b16 %v280
  %v1539 = vunpack.c.h.b16 %v280
  %v1540 = vunpack.c.l.b16 %v281
  %v1541 = vunpack.c.h.b16 %v281
  %v1542 = vunpack.c.l.b16 %v282
  %v1543 = vunpack.c.h.b16 %v282
  %v1544 = vunpack.c.l.b16 %v283
  %v1545 = vunpack.c.h.b16 %v283
  %v1546 = vunpack.c.l.b16 %v284
  %v1547 = vunpack.c.h.b16 %v284
  %v1548 = vunpack.c.l.b16 %v285
  %v1549 = vunpack.c.h.b16 %v285
  %v1550 = vunpack.c.l.b16 %v286
  %v1551 = vunpack.c.h.b16 %v286
  %v1552 = vunpack.c.l.b16 %v287
  %v1553 = vunpack.c.h.b16 %v287
  %v1554 = vunpack.c.l.b16 %v288
  %v1555 = vunpack.c.h.b16 %v288
  %v1556 = vunpack.c.l.b16 %v289
  %v1557 = vunpack.c.h.b16 %v289
  %v1558 = vunpack.c.l.b16 %v290
  %v1559 = vunpack.c.h.b16 %v290
  %v1560 = vunpack.c.l.b16 %v291
  %v1561 = vunpack.c.h.b16 %v291
  %v1562 = vunpack.c.l.b16 %v292
  %v1563 = vunpack.c.h.b16 %v292
  %v1564 = vunpack.c.l.b16 %v293
  %v1565 = vunpack.c.h.b16 %v293
  %v1566 = vunpack.c.l.b16 %v294
  %v1567 = vunpack.c.h.b16 %v294
  %v1568 = vunpack.c.l.b16 %v295
  %v1569 = vunpack.c.h.b16 %v295
  %v1570 = vunpack.c.l.b16 %v296
  %v1571 = vunpack.c.h.b16 %v296
  %v1572 = vunpack.c.l.b16 %v297
  %v1573 = vunpack.c.h.b16 %v297
  %v1574 = vunpack.c.l.b16 %v298
  %v1575 = vunpack.c.h.b16 %v298
  %v1576 = vunpack.c.l.b16 %v299
  %v1577 = vunpack.c.h.b16 %v299
  %v1578 = vunpack.c.l.b16 %v300
  %v1579 = vunpack.c.h.b16 %v300
  %v1580 = vunpack.c.l.b16 %v301
  %v1581 = vunpack.c.h.b16 %v301
  %v1582 = vunpack.c.l.b16 %v302
  %v1583 = vunpack.c.h.b16 %v302
  %v1584 = vunpack.c.l.b16 %v303
  %v1585 = vunpack.c.h.b16 %v303
  %v1586 = vunpack.c.l.b16 %v304
  %v1587 = vunpack.c.h.b16 %v304
  %v1588 = vunpack.c.l.b16 %v305
  %v1589 = vunpack.c.h.b16 %v305
  %v1590 = vunpack.c.l.b16 %v306
  %v1591 = vunpack.c.h.b16 %v306
  %v1592 = vunpack.c.l.b16 %v307
  %v1593 = vunpack.c.h.b16 %v307
  %v1594 = vunpack.c.l.b16 %v308
  %v1595 = vunpack.c.h.b16 %v308
  %v1596 = vunpack.c.l.b16 %v309
  %v1597 = vunpack.c.h.b16 %v309
  %v1598 = vunpack.c.l.b16 %v310
  %v1599 = vunpack.c.h.b16 %v310
  %v1600 = vunpack.c.l.b16 %v311
  %v1601 = vunpack.c.h.b16 %v311
  %v1602 = vunpack.c.l.b16 %v312
  %v1603 = vunpack.c.h.b16 %v312
  %v1604 = vunpack.c.l.b16 %v313
  %v1605 = vunpack.c.h.b16 %v313
  %v1606 = vunpack.c.l.b16 %v314
  %v1607 = vunpack.c.h.b16 %v314
  %v1608 = vunpack.c.l.b16 %v315
  %v1609 = vunpack.c.h.b16 %v315
  %v1610 = vunpack.c.l.b16 %v316
  %v1611 = vunpack.c.h.b16 %v316
  %v1612 = vunpack.c.l.b16 %v317
  %v1613 = vunpack.c.h.b16 %v317
  %v1614 = vunpack.c.l.b16 %v318
  %v1615 = vunpack.c.h.b16 %v318
  %v1616 = vunpack.c.l.b16 %v319
  %v1617 = vunpack.c.h.b16 %v319
  %v1618 = vunpack.c.l.b16 %v320
  %v1619 = vunpack.c.h.b16 %v320
  %v1620 = vunpack.c.l.b16 %v321
  %v1621 = vunpack.c.h.b16 %v321
  %v1622 = vunpack.c.l.b16 %v322
  %v1623 = vunpack.c.h.b16 %v322
  %v1624 = vunpack.c.l.b16 %v323
  %v1625 = vunpack.c.h.b16 %v323
  %v1626 = vunpack.c.l.b16 %v324
  %v1627 = vunpack.c.h.b16 %v324
  %v1628 = vunpack.c.l.b16 %v325
  %v1629 = vunpack.c.h.b16 %v325
  %v1630 = vunpack.c.l.b16 %v326
  %v1631 = vunpack.c.h.b16 %v326
  %v1632 = vunpack.c.l.b16 %v327
  %v1633 = vunpack.c.h.b16 %v327
  %v1634 = vunpack.c.l.b16 %v328
  %v1635 = vunpack.c.h.b16 %v328
  %v1636 = vunpack.c.l.b16 %v329
  %v1637 = vunpack.c.h.b16 %v329
  %v1638 = vunpack.c.l.b16 %v330
  %v1639 = vunpack.c.h.b16 %v330
  %v1640 = vunpack.c.l.b16 %v331
  %v1641 = vunpack.c.h.b16 %v331
  %v1642 = vunpack.c.l.b16 %v332
  %v1643 = vunpack.c.h.b16 %v332
  %v1644 = vunpack.c.l.b16 %v333
  %v1645 = vunpack.c.h.b16 %v333
  %v1646 = vunpack.c.l.b16 %v334
  %v1647 = vunpack.c.h.b16 %v334
  %v1648 = vunpack.c.l.b16 %v335
  %v1649 = vunpack.c.h.b16 %v335
  %v1650 = vunpack.c.l.b16 %v336
  %v1651 = vunpack.c.h.b16 %v336
  %v1652 = vunpack.c.l.b16 %v337
  %v1653 = vunpack.c.h.b16 %v337
  %v1654 = vunpack.c.l.b16 %v338
  %v1655 = vunpack.c.h.b16 %v338
  %v1656 = vunpack.c.l.b16 %v339
  %v1657 = vunpack.c.h.b16 %v339
  %v1658 = vunpack.c.l.b16 %v340
  %v1659 = vunpack.c.h.b16 %v340
  %v1660 = vunpack.c.l.b16 %v341
  %v1661 = vunpack.c.h.b16 %v341
  %v1662 = vunpack.c.l.b16 %v342
  %v1663 = vunpack.c.h.b16 %v342
  %v1664 = vunpack.c.l.b16 %v343
  %v1665 = vunpack.c.h.b16 %v343
  %v1666 = vunpack.c.l.b16 %v344
  %v1667 = vunpack.c.h.b16 %v344
  %v1668 = vunpack.c.l.b16 %v345
  %v1669 = vunpack.c.h.b16 %v345
  %v1670 = vunpack.c.l.b16 %v346
  %v1671 = vunpack.c.h.b16 %v346
  %v1672 = vunpack.c.l.b16 %v347
  %v1673 = vunpack.c.h.b16 %v347
  %v1674 = vunpack.c.l.b16 %v348
  %v1675 = vunpack.c.h.b16 %v348
  %v1676 = vunpack.c.l.b16 %v349
  %v1677 = vunpack.c.h.b16 %v349
  %v1678 = vunpack.c.l.b16 %v350
  %v1679 = vunpack.c.h.b16 %v350
  %v1680 = vunpack.c.l.b16 %v351
  %v1681 = vunpack.c.h.b16 %v351
  %v1682 = vunpack.c.l.b16 %v352
  %v1683 = vunpack.c.h.b16 %v352
  %v1684 = vunpack.c.l.b16 %v353
  %v1685 = vunpack.c.h.b16 %v353
  %v1686 = vunpack.c.l.b16 %v354
  %v1687 = vunpack.c.h.b16 %v354
  %v1688 = vunpack.c.l.b16 %v355
  %v1689 = vunpack.c.h.b16 %v355
  %v1690 = vunpack.c.l.b16 %v356
  %v1691 = vunpack.c.h.b16 %v356
  %v1692 = vunpack.c.l.b16 %v357
  %v1693 = vunpack.c.h.b16 %v357
  %v1694 = vunpack.c.l.b16 %v358
  %v1695 = vunpack.c.h.b16 %v358
  %v1696 = vunpack.c.l.b16 %v359
  %v1697 = vunpack.c.h.b16 %v359
  %v1698 = vunpack.c.l.b16 %v360
  %v1699 = vunpack.c.h.b16 %v360
  %v1700 = vunpack.c.l.b16 %v361
  %v1701 = vunpack.c.h.b16 %v361
  %v1702 = vunpack.c.l.b16 %v362
  %v1703 = vunpack.c.h.b16 %v362
  %v1704 = vunpack.c.l.b16 %v363
  %v1705 = vunpack.c.h.b16 %v363
  %v1706 = vunpack.c.l.b16 %v364
  %v1707 = vunpack.c.h.b16 %v364
  %v1708 = vunpack.c.l.b16 %v365
  %v1709 = vunpack.c.h.b16 %v365
  %v1710 = vunpack.c.l.b16 %v366
  %v1711 = vunpack.c.h.b16 %v366
  %v1712 = vunpack.c.l.b16 %v367
  %v1713 = vunpack.c.h.b16 %v367
  %v1714 = vunpack.c.l.b16 %v368
  %v1715 = vunpack.c.h.b16 %v368
  %v1716 = vunpack.c.l.b16 %v369
  %v1717 = vunpack.c.h.b16 %v369
  %v1718 = vunpack.c.l.b16 %v370
  %v1719 = vunpack.c.h.b16 %v370
  %v1720 = vunpack.c.l.b16 %v371
  %v1721 = vunpack.c.h.b16 %v371
  %v1722 = vunpack.c.l.b16 %v372
  %v1723 = vunpack.c.h.b16 %v372
  %v1724 = vunpack.c.l.b16 %v373
  %v1725 = vunpack.c.h.b16 %v373
  %v1726 = vunpack.c.l.b16 %v374
  %v1727 = vunpack.c.h.b16 %v374
  %v1728 = vunpack.c.l.b16 %v375
  %v1729 = vunpack.c.h.b16 %v375
  %v1730 = vunpack.c.l.b16 %v376
  %v1731 = vunpack.c.h.b16 %v376
  %v1732 = vunpack.c.l.b16 %v377
  %v1733 = vunpack.c.h.b16 %v377
  %v1734 = vunpack.c.l.b16 %v378
  %v1735 = vunpack.c.h.b16 %v378
  %v1736 = vunpack.c.l.b16 %v379
  %v1737 = vunpack.c.h.b16 %v379
  %v1738 = vunpack.c.l.b16 %v380
  %v1739 = vunpack.c.h.b16 %v380
  %v1740 = vunpack.c.l.b16 %v381
  %v1741 = vunpack.c.h.b16 %v381
  %v1742 = vunpack.c.l.b16 %v382
  %v1743 = vunpack.c.h.b16 %v382
  %v1744 = vunpack.c.l.b16 %v383
  %v1745 = vunpack.c.h.b16 %v383
  %v1746 = vunpack.c.l.b16 %v384
  %v1747 = vunpack.c.h.b16 %v384
  %v1748 = vunpack.c.l.b16 %v385
  %v1749 = vunpack.c.h.b16 %v385
  %v1750 = vunpack.c.l.b16 %v386
  %v1751 = vunpack.c.h.b16 %v386
  %v1752 = vunpack.c.l.b16 %v387
  %v1753 = vunpack.c.h.b16 %v387
  %v1754 = vunpack.c.l.b16 %v388
  %v1755 = vunpack.c.h.b16 %v388
  %v1756 = vunpack.c.l.b16 %v389
  %v1757 = vunpack.c.h.b16 %v389
  %v1758 = vunpack.c.l.b16 %v390
  %v1759 = vunpack.c.h.b16 %v390
  %v1760 = vunpack.c.l.b16 %v391
  %v1761 = vunpack.c.h.b16 %v391
  %v1762 = vunpack.c.l.b16 %v392
  %v1763 = vunpack.c.h.b16 %v392
  %v1764 = vunpack.c.l.b16 %v393
  %v1765 = vunpack.c.h.b16 %v393
  %v1766 = vunpack.c.l.b16 %v394
  %v1767 = vunpack.c.h.b16 %v394
  %v1768 = vunpack.c.l.b16 %v395
  %v1769 = vunpack.c.h.b16 %v395
  %v1770 = vunpack.c.l.b16 %v396
  %v1771 = vunpack.c.h.b16 %v396
  %v1772 = vunpack.c.l.b16 %v397
  %v1773 = vunpack.c.h.b16 %v397
  %v1774 = vpack.c.b16 %v1204, %v1198
  %v1775 = vpack.c.b16 %v1205, %v1199
  %v1776 = vpack.c.b16 %v1206, %v1200
  %v1777 = vpack.c.b16 %v1207, %v1201
  %v1778 = vpack.c.b16 %v1208, %v1202
  %v1779 = vpack.c.b16 %v1209, %v1203
  %v1780 = vpack.c.b16 %v1216, %v1210
  %v1781 = vpack.c.b16 %v1217, %v1211
  %v1782 = vpack.c.b16 %v1218, %v1212
  %v1783 = vpack.c.b16 %v1219, %v1213
  %v1784 = vpack.c.b16 %v1220, %v1214
  %v1785 = vpack.c.b16 %v1221, %v1215
  %v1786 = vpack.c.b16 %v1228, %v1222
  %v1787 = vpack.c.b16 %v1229, %v1223
  %v1788 = vpack.c.b16 %v1230, %v1224
  %v1789 = vpack.c.b16 %v1231, %v1225
  %v1790 = vpack.c.b16 %v1232, %v1226
  %v1791 = vpack.c.b16 %v1233, %v1227
  %v1792 = vpack.c.b16 %v1240, %v1234
  %v1793 = vpack.c.b16 %v1241, %v1235
  %v1794 = vpack.c.b16 %v1242, %v1236
  %v1795 = vpack.c.b16 %v1243, %v1237
  %v1796 = vpack.c.b16 %v1244, %v1238
  %v1797 = vpack.c.b16 %v1245, %v1239
  %v1798 = vpack.c.b16 %v1252, %v1246
  %v1799 = vpack.c.b16 %v1253, %v1247
  %v1800 = vpack.c.b16 %v1254, %v1248
  %v1801 = vpack.c.b16 %v1255, %v1249
  %v1802 = vpack.c.b16 %v1256, %v1250
  %v1803 = vpack.c.b16 %v1257, %v1251
  %v1804 = vpack.c.b16 %v1264, %v1258
  %v1805 = vpack.c.b16 %v1265, %v1259
  %v1806 = vpack.c.b16 %v1266, %v1260
  %v1807 = vpack.c.b16 %v1267, %v1261
  %v1808 = vpack.c.b16 %v1268, %v1262
  %v1809 = vpack.c.b16 %v1269, %v1263
  %v1810 = vpack.c.b16 %v1276, %v1270
  %v1811 = vpack.c.b16 %v1277, %v1271
  %v1812 = vpack.c.b16 %v1278, %v1272
  %v1813 = vpack.c.b16 %v1279, %v1273
  %v1814 = vpack.c.b16 %v1280, %v1274
  %v1815 = vpack.c.b16 %v1281, %v1275
  %v1816 = vpack.c.b16 %v1288, %v1282
  %v1817 = vpack.c.b16 %v1289, %v1283
  %v1818 = vpack.c.b16 %v1290, %v1284
  %v1819 = vpack.c.b16 %v1291, %v1285
  %v1820 = vpack.c.b16 %v1292, %v1286
  %v1821 = vpack.c.b16 %v1293, %v1287
  %v1822 = vpack.c.b16 %v1300, %v1294
  %v1823 = vpack.c.b16 %v1301, %v1295
  %v1824 = vpack.c.b16 %v1302, %v1296
  %v1825 = vpack.c.b16 %v1303, %v1297
  %v1826 = vpack.c.b16 %v1304, %v1298
  %v1827 = vpack.c.b16 %v1305, %v1299
  %v1828 = vpack.c.b16 %v1312, %v1306
  %v1829 = vpack.c.b16 %v1313, %v1307
  %v1830 = vpack.c.b16 %v1314, %v1308
  %v1831 = vpack.c.b16 %v1315, %v1309
  %v1832 = vpack.c.b16 %v1316, %v1310
  %v1833 = vpack.c.b16 %v1317, %v1311
  %v1834 = vpack.c.b16 %v1324, %v1318
  %v1835 = vpack.c.b16 %v1325, %v1319
  %v1836 = vpack.c.b16 %v1326, %v1320
  %v1837 = vpack.c.b16 %v1327, %v1321
  %v1838 = vpack.c.b16 %v1328, %v1322
  %v1839 = vpack.c.b16 %v1329, %v1323
  %v1840 = vpack.c.b16 %v1336, %v1330
  %v1841 = vpack.c.b16 %v1337, %v1331
  %v1842 = vpack.c.b16 %v1338, %v1332
  %v1843 = vpack.c.b16 %v1339, %v1333
  %v1844 = vpack.c.b16 %v1340, %v1334
  %v1845 = vpack.c.b16 %v1341, %v1335
  %v1846 = vpack.c.b16 %v1348, %v1342
  %v1847 = vpack.c.b16 %v1349, %v1343
  %v1848 = vpack.c.b16 %v1350, %v1344
  %v1849 = vpack.c.b16 %v1351, %v1345
  %v1850 = vpack.c.b16 %v1352, %v1346
  %v1851 = vpack.c.b16 %v1353, %v1347
  %v1852 = vpack.c.b16 %v1360, %v1354
  %v1853 = vpack.c.b16 %v1361, %v1355
  %v1854 = vpack.c.b16 %v1362, %v1356
  %v1855 = vpack.c.b16 %v1363, %v1357
  %v1856 = vpack.c.b16 %v1364, %v1358
  %v1857 = vpack.c.b16 %v1365, %v1359
  %v1858 = vpack.c.b16 %v1372, %v1366
  %v1859 = vpack.c.b16 %v1373, %v1367
  %v1860 = vpack.c.b16 %v1374, %v1368
  %v1861 = vpack.c.b16 %v1375, %v1369
  %v1862 = vpack.c.b16 %v1376, %v1370
  %v1863 = vpack.c.b16 %v1377, %v1371
  %v1864 = vpack.c.b16 %v1384, %v1378
  %v1865 = vpack.c.b16 %v1385, %v1379
  %v1866 = vpack.c.b16 %v1386, %v1380
  %v1867 = vpack.c.b16 %v1387, %v1381
  %v1868 = vpack.c.b16 %v1388, %v1382
  %v1869 = vpack.c.b16 %v1389, %v1383
  %v1870 = vpack.c.b16 %v1396, %v1390
  %v1871 = vpack.c.b16 %v1397, %v1391
  %v1872 = vpack.c.b16 %v1398, %v1392
  %v1873 = vpack.c.b16 %v1399, %v1393
  %v1874 = vpack.c.b16 %v1400, %v1394
  %v1875 = vpack.c.b16 %v1401, %v1395
  %v1876 = vpack.c.b16 %v1408, %v1402
  %v1877 = vpack.c.b16 %v1409, %v1403
  %v1878 = vpack.c.b16 %v1410, %v1404
  %v1879 = vpack.c.b16 %v1411, %v1405
  %v1880 = vpack.c.b16 %v1412, %v1406
  %v1881 = vpack.c.b16 %v1413, %v1407
  %v1882 = vpack.c.b16 %v1420, %v1414
  %v1883 = vpack.c.b16 %v1421, %v1415
  %v1884 = vpack.c.b16 %v1422, %v1416
  %v1885 = vpack.c.b16 %v1423, %v1417
  %v1886 = vpack.c.b16 %v1424, %v1418
  %v1887 = vpack.c.b16 %v1425, %v1419
  %v1888 = vpack.c.b16 %v1432, %v1426
  %v1889 = vpack.c.b16 %v1433, %v1427
  %v1890 = vpack.c.b16 %v1434, %v1428
  %v1891 = vpack.c.b16 %v1435, %v1429
  %v1892 = vpack.c.b16 %v1436, %v1430
  %v1893 = vpack.c.b16 %v1437, %v1431
  %v1894 = vpack.c.b16 %v1444, %v1438
  %v1895 = vpack.c.b16 %v1445, %v1439
  %v1896 = vpack.c.b16 %v1446, %v1440
  %v1897 = vpack.c.b16 %v1447, %v1441
  %v1898 = vpack.c.b16 %v1448, %v1442
  %v1899 = vpack.c.b16 %v1449, %v1443
  %v1900 = vpack.c.b16 %v1456, %v1450
  %v1901 = vpack.c.b16 %v1457, %v1451
  %v1902 = vpack.c.b16 %v1458, %v1452
  %v1903 = vpack.c.b16 %v1459, %v1453
  %v1904 = vpack.c.b16 %v1460, %v1454
  %v1905 = vpack.c.b16 %v1461, %v1455
  %v1906 = vpack.c.b16 %v1468, %v1462
  %v1907 = vpack.c.b16 %v1469, %v1463
  %v1908 = vpack.c.b16 %v1470, %v1464
  %v1909 = vpack.c.b16 %v1471, %v1465
  %v1910 = vpack.c.b16 %v1472, %v1466
  %v1911 = vpack.c.b16 %v1473, %v1467
  %v1912 = vpack.c.b16 %v1480, %v1474
  %v1913 = vpack.c.b16 %v1481, %v1475
  %v1914 = vpack.c.b16 %v1482, %v1476
  %v1915 = vpack.c.b16 %v1483, %v1477
  %v1916 = vpack.c.b16 %v1484, %v1478
  %v1917 = vpack.c.b16 %v1485, %v1479
  %v1918 = vpack.c.b16 %v1492, %v1486
  %v1919 = vpack.c.b16 %v1493, %v1487
  %v1920 = vpack.c.b16 %v1494, %v1488
  %v1921 = vpack.c.b16 %v1495, %v1489
  %v1922 = vpack.c.b16 %v1496, %v1490
  %v1923 = vpack.c.b16 %v1497, %v1491
  %v1924 = vpack.c.b16 %v1504, %v1498
  %v1925 = vpack.c.b16 %v1505, %v1499
  %v1926 = vpack.c.b16 %v1506, %v1500
  %v1927 = vpack.c.b16 %v1507, %v1501
  %v1928 = vpack.c.b16 %v1508, %v1502
  %v1929 = vpack.c.b16 %v1509, %v1503
  %v1930 = vpack.c.b16 %v1516, %v1510
  %v1931 = vpack.c.b16 %v1517, %v1511
  %v1932 = vpack.c.b16 %v1518, %v1512
  %v1933 = vpack.c.b16 %v1519, %v1513
  %v1934 = vpack.c.b16 %v1520, %v1514
  %v1935 = vpack.c.b16 %v1521, %v1515
  %v1936 = vpack.c.b16 %v1528, %v1522
  %v1937 = vpack.c.b16 %v1529, %v1523
  %v1938 = vpack.c.b16 %v1530, %v1524
  %v1939 = vpack.c.b16 %v1531, %v1525
  %v1940 = vpack.c.b16 %v1532, %v1526
  %v1941 = vpack.c.b16 %v1533, %v1527
  %v1942 = vpack.c.b16 %v1540, %v1534
  %v1943 = vpack.c.b16 %v1541, %v1535
  %v1944 = vpack.c.b16 %v1542, %v1536
  %v1945 = vpack.c.b16 %v1543, %v1537
  %v1946 = vpack.c.b16 %v1544, %v1538
  %v1947 = vpack.c.b16 %v1545, %v1539
  %v1948 = vpack.c.b16 %v1552, %v1546
  %v1949 = vpack.c.b16 %v1553, %v1547
  %v1950 = vpack.c.b16 %v1554, %v1548
  %v1951 = vpack.c.b16 %v1555, %v1549
  %v1952 = vpack.c.b16 %v1556, %v1550
  %v1953 = vpack.c.b16 %v1557, %v1551
  %v1954 = vpack.c.b16 %v1564, %v1558
  %v1955 = vpack.c.b16 %v1565, %v1559
  %v1956 = vpack.c.b16 %v1566, %v1560
  %v1957 = vpack.c.b16 %v1567, %v1561
  %v1958 = vpack.c.b16 %v1568, %v1562
  %v1959 = vpack.c.b16 %v1569, %v1563
  %v1960 = vpack.c.b16 %v1576, %v1570
  %v1961 = vpack.c.b16 %v1577, %v1571
  %v1962 = vpack.c.b16 %v1578, %v1572
  %v1963 = vpack.c.b16 %v1579, %v1573
  %v1964 = vpack.c.b16 %v1580, %v1574
  %v1965 = vpack.c.b16 %v1581, %v1575
  %v1966 = vpack.c.b16 %v1588, %v1582
  %v1967 = vpack.c.b16 %v1589, %v1583
  %v1968 = vpack.c.b16 %v1590, %v1584
  %v1969 = vpack.c.b16 %v1591, %v1585
  %v1970 = vpack.c.b16 %v1592, %v1586
  %v1971 = vpack.c.b16 %v1593, %v1587
  %v1972 = vpack.c.b16 %v1600, %v1594
  %v1973 = vpack.c.b16 %v1601, %v1595
  %v1974 = vpack.c.b16 %v1602, %v1596
  %v1975 = vpack.c.b16 %v1603, %v1597
  %v1976 = vpack.c.b16 %v1604, %v1598
  %v1977 = vpack.c.b16 %v1605, %v1599
  %v1978 = vpack.c.b16 %v1612, %v1606
  %v1979 = vpack.c.b16 %v1613, %v1607
  %v1980 = vpack.c.b16 %v1614, %v1608
  %v1981 = vpack.c.b16 %v1615, %v1609
  %v1982 = vpack.c.b16 %v1616, %v1610
  %v1983 = vpack.c.b16 %v1617, %v1611
  %v1984 = vpack.c.b16 %v1624, %v1618
  %v1985 = vpack.c.b16 %v1625, %v1619
  %v1986 = vpack.c.b16 %v1626, %v1620
  %v1987 = vpack.c.b16 %v1627, %v1621
  %v1988 = vpack.c.b16 %v1628, %v1622
  %v1989 = vpack.c.b16 %v1629, %v1623
  %v1990 = vpack.c.b16 %v1636, %v1630
  %v1991 = vpack.c.b16 %v1637, %v1631
  %v1992 = vpack.c.b16 %v1638, %v1632
  %v1993 = vpack.c.b16 %v1639, %v1633
  %v1994 = vpack.c.b16 %v1640, %v1634
  %v1995 = vpack.c.b16 %v1641, %v1635
  %v1996 = vpack.c.b16 %v1648, %v1642
  %v1997 = vpack.c.b16 %v1649, %v1643
  %v1998 = vpack.c.b16 %v1650, %v1644
  %v1999 = vpack.c.b16 %v1651, %v1645
  %v2000 = vpack.c.b16 %v1652, %v1646
  %v2001 = vpack.c.b16 %v1653, %v1647
  %v2002 = vpack.c.b16 %v1660, %v1654
  %v2003 = vpack.c.b16 %v1661, %v1655
  %v2004 = vpack.c.b16 %v1662, %v1656
  %v2005 = vpack.c.b16 %v1663, %v1657
  %v2006 = vpack.c.b16 %v1664, %v1658
  %v2007 = vpack.c.b16 %v1665, %v1659
  %v2008 = vpack.c.b16 %v1672, %v1666
  %v2009 = vpack.c.b16 %v1673, %v1667
  %v2010 = vpack.c.b16 %v1674, %v1668
  %v2011 = vpack.c.b16 %v1675, %v1669
  %v2012 = vpack.c.b16 %v1676, %v1670
  %v2013 = vpack.c.b16 %v1677, %v1671
  %v2014 = vpack.c.b16 %v1684, %v1678
  %v2015 = vpack.c.b16 %v1685, %v1679
  %v2016 = vpack.c.b16 %v1686, %v1680
  %v2017 = vpack.c.b16 %v1687, %v1681
  %v2018 = vpack.c.b16 %v1688, %v1682
  %v2019 = vpack.c.b16 %v1689, %v1683
  %v2020 = vpack.c.b16 %v1696, %v1690
  %v2021 = vpack.c.b16 %v1697, %v1691
  %v2022 = vpack.c.b16 %v1698, %v1692
  %v2023 = vpack.c.b16 %v1699, %v1693
  %v2024 = vpack.c.b16 %v1700, %v1694
  %v2025 = vpack.c.b16 %v1701, %v1695
  %v2026 = vpack.c.b16 %v1708, %v1702
  %v2027 = vpack.c.b16 %v1709, %v1703
  %v2028 = vpack.c.b16 %v1710, %v1704
  %v2029 = vpack.c.b16 %v1711, %v1705
  %v2030 = vpack.c.b16 %v1712, %v1706
  %v2031 = vpack.c.b16 %v1713, %v1707
  %v2032 = vpack.c.b16 %v1720, %v1714
  %v2033 = vpack.c.b16 %v1721, %v1715
  %v2034 = vpack.c.b16 %v1722, %v1716
  %v2035 = vpack.c.b16 %v1723, %v1717
  %v2036 = vpack.c.b16 %v1724, %v1718
  %v2037 = vpack.c.b16 %v1725, %v1719
  %v2038 = vpack.c.b16 %v1732, %v1726
  %v2039 = vpack.c.b16 %v1733, %v1727
  %v2040 = vpack.c.b16 %v1734, %v1728
  %v2041 = vpack.c.b16 %v1735, %v1729
  %v2042 = vpack.c.b16 %v1736, %v1730
  %v2043 = vpack.c.b16 %v1737, %v1731
  %v2044 = vpack.c.b16 %v1744, %v1738
  %v2045 = vpack.c.b16 %v1745, %v1739
  %v2046 = vpack.c.b16 %v1746, %v1740
  %v2047 = vpack.c.b16 %v1747, %v1741
  %v2048 = vpack.c.b16 %v1748, %v1742
  %v2049 = vpack.c.b16 %v1749, %v1743
  %v2050 = vpack.c.b16 %v1756, %v1750
  %v2051 = vpack.c.b16 %v1757, %v1751
  %v2052 = vpack.c.b16 %v1758, %v1752
  %v2053 = vpack.c.b16 %v1759, %v1753
  %v2054 = vpack.c.b16 %v1760, %v1754
  %v2055 = vpack.c.b16 %v1761, %v1755
  %v2056 = vpack.c.b16 %v1768, %v1762
  %v2057 = vpack.c.b16 %v1769, %v1763
  %v2058 = vpack.c.b16 %v1770, %v1764
  %v2059 = vpack.c.b16 %v1771, %v1765
  %v2060 = vpack.c.b16 %v1772, %v1766
  %v2061 = vpack.c.b16 %v1773, %v1767
  %2350 = vmatprep.subr.bf16.mxu0 %v1775
  %2351 = vmatpush1.bf16.xpose.msra.mxu0 %v1774
  %2352 = vmatprep.subr.bf16.mxu0 %v1781
  %2353 = vmatpush1.bf16.xpose.msra.mxu0 %v1780
  %2354 = vmatprep.subr.bf16.mxu0 %v1787
  %2355 = vmatpush1.bf16.xpose.msra.mxu0 %v1786
  %2356 = vmatprep.subr.bf16.mxu0 %v1793
  %2357 = vmatpush1.bf16.xpose.msra.mxu0 %v1792
  %2358 = vmatprep.subr.bf16.mxu0 %v1799
  %2359 = vmatpush1.bf16.xpose.msra.mxu0 %v1798
  %2360 = vmatprep.subr.bf16.mxu0 %v1805
  %2361 = vmatpush1.bf16.xpose.msra.mxu0 %v1804
  %2362 = vmatprep.subr.bf16.mxu0 %v1811
  %2363 = vmatpush1.bf16.xpose.msra.mxu0 %v1810
  %2364 = vmatprep.subr.bf16.mxu0 %v1817
  %2365 = vmatpush1.bf16.xpose.msra.mxu0 %v1816
  %2366 = vmatprep.subr.bf16.mxu0 %v1823
  %2367 = vmatpush1.bf16.xpose.msra.mxu0 %v1822
  %2368 = vmatprep.subr.bf16.mxu0 %v1829
  %2369 = vmatpush1.bf16.xpose.msra.mxu0 %v1828
  %2370 = vmatprep.subr.bf16.mxu0 %v1835
  %2371 = vmatpush1.bf16.xpose.msra.mxu0 %v1834
  %2372 = vmatprep.subr.bf16.mxu0 %v1841
  %2373 = vmatpush1.bf16.xpose.msra.mxu0 %v1840
  %2374 = vmatprep.subr.bf16.mxu0 %v1847
  %2375 = vmatpush1.bf16.xpose.msra.mxu0 %v1846
  %2376 = vmatprep.subr.bf16.mxu0 %v1853
  %2377 = vmatpush1.bf16.xpose.msra.mxu0 %v1852
  %2378 = vmatprep.subr.bf16.mxu0 %v1859
  %2379 = vmatpush1.bf16.xpose.msra.mxu0 %v1858
  %2380 = vmatprep.subr.bf16.mxu0 %v1865
  %2381 = vmatpush1.bf16.xpose.msra.mxu0 %v1864
  %2382 = vmatprep.mubr.bf16.mxu0 %v719
  %2383 = vmatmul.mubr.bf16.gmra.mrb[0].mxu0 %v718
  %v2384 = vpop.f32.mrb[0].mxu0
  %v2385 = vadd.f32 %v403, %v2384
  %v2386 = vpop.f32.mrb[0].mxu0
  %v2387 = vadd.f32 %v407, %v2386
  %v2388 = vpop.f32.mrb[0].mxu0
  %v2389 = vadd.f32 %v403, %v2388
  %v2390 = vpop.f32.mrb[0].mxu0
  %v2391 = vadd.f32 %v407, %v2390
  %2392 = vmatprep.mubr.bf16.mxu0 %v725
  %2393 = vmatmul.mubr.bf16.gmra.mrb[0].mxu0 %v724
  %v2394 = vpop.f32.mrb[0].mxu0
  %v2395 = vadd.f32 %v403, %v2394
  %v2396 = vpop.f32.mrb[0].mxu0
  %v2397 = vadd.f32 %v407, %v2396
  %v2398 = vpop.f32.mrb[0].mxu0
  %v2399 = vadd.f32 %v403, %v2398
  %v2400 = vpop.f32.mrb[0].mxu0
  %v2401 = vadd.f32 %v407, %v2400
  %2402 = vmatprep.mubr.bf16.mxu0 %v731
  %2403 = vmatmul.mubr.bf16.gmra.mrb[0].mxu0 %v730
  %v2404 = vpop.f32.mrb[0].mxu0
  %v2405 = vadd.f32 %v403, %v2404
  %v2406 = vpop.f32.mrb[0].mxu0
  %v2407 = vadd.f32 %v407, %v2406
  %v2408 = vpop.f32.mrb[0].mxu0
  %v2409 = vadd.f32 %v403, %v2408
  %v2410 = vpop.f32.mrb[0].mxu0
  %v2411 = vadd.f32 %v407, %v2410
  %2412 = vmatprep.mubr.bf16.mxu0 %v737
  %2413 = vmatmul.mubr.bf16.gmra.mrb[0].mxu0 %v736
  %v2414 = vpop.f32.mrb[0].mxu0
  %v2415 = vadd.f32 %v403, %v2414
  %v2416 = vpop.f32.mrb[0].mxu0
  %v2417 = vadd.f32 %v407, %v2416
  %v2418 = vpop.f32.mrb[0].mxu0
  %v2419 = vadd.f32 %v403, %v2418
  %v2420 = vpop.f32.mrb[0].mxu0
  %v2421 = vadd.f32 %v407, %v2420
  %2422 = vmatprep.mubr.bf16.mxu0 %v743
  %2423 = vmatmul.mubr.bf16.gmra.mrb[0].mxu0 %v742
  %v2424 = vpop.f32.mrb[0].mxu0
  %v2425 = vadd.f32 %v403, %v2424
  %v2426 = vpop.f32.mrb[0].mxu0
  %v2427 = vadd.f32 %v407, %v2426
  %v2428 = vpop.f32.mrb[0].mxu0
  %v2429 = vadd.f32 %v403, %v2428
  %v2430 = vpop.f32.mrb[0].mxu0
  %v2431 = vadd.f32 %v407, %v2430
  %2432 = vmatprep.mubr.bf16.mxu0 %v749
  %2433 = vmatmul.mubr.bf16.gmra.mrb[0].mxu0 %v748
  %v2434 = vpop.f32.mrb[0].mxu0
  %v2435 = vadd.f32 %v403, %v2434
  %v2436 = vpop.f32.mrb[0].mxu0
  %v2437 = vadd.f32 %v407, %v2436
  %v2438 = vpop.f32.mrb[0].mxu0
  %v2439 = vadd.f32 %v403, %v2438
  %v2440 = vpop.f32.mrb[0].mxu0
  %v2441 = vadd.f32 %v407, %v2440
  %2442 = vmatprep.mubr.bf16.mxu0 %v755
  %2443 = vmatmul.mubr.bf16.gmra.mrb[0].mxu0 %v754
  %v2444 = vpop.f32.mrb[0].mxu0
  %v2445 = vadd.f32 %v403, %v2444
  %v2446 = vpop.f32.mrb[0].mxu0
  %v2447 = vadd.f32 %v407, %v2446
  %v2448 = vpop.f32.mrb[0].mxu0
  %v2449 = vadd.f32 %v403, %v2448
  %v2450 = vpop.f32.mrb[0].mxu0
  %v2451 = vadd.f32 %v407, %v2450
  %2452 = vmatprep.mubr.bf16.mxu0 %v761
  %2453 = vmatmul.mubr.bf16.gmra.mrb[0].mxu0 %v760
  %v2454 = vpop.f32.mrb[0].mxu0
  %v2455 = vadd.f32 %v403, %v2454
  %v2456 = vpop.f32.mrb[0].mxu0
  %v2457 = vadd.f32 %v407, %v2456
  %v2458 = vpop.f32.mrb[0].mxu0
  %v2459 = vadd.f32 %v403, %v2458
  %v2460 = vpop.f32.mrb[0].mxu0
  %v2461 = vadd.f32 %v407, %v2460
  %2462 = vmatprep.mubr.bf16.mxu0 %v767
  %2463 = vmatmul.mubr.bf16.gmra.mrb[0].mxu0 %v766
  %v2464 = vpop.f32.mrb[0].mxu0
  %v2465 = vadd.f32 %v403, %v2464
  %v2466 = vpop.f32.mrb[0].mxu0
  %v2467 = vadd.f32 %v407, %v2466
  %v2468 = vpop.f32.mrb[0].mxu0
  %v2469 = vadd.f32 %v403, %v2468
  %v2470 = vpop.f32.mrb[0].mxu0
  %v2471 = vadd.f32 %v407, %v2470
  %2472 = vmatprep.mubr.bf16.mxu0 %v773
  %2473 = vmatmul.mubr.bf16.gmra.mrb[0].mxu0 %v772
  %v2474 = vpop.f32.mrb[0].mxu0
  %v2475 = vadd.f32 %v403, %v2474
  %v2476 = vpop.f32.mrb[0].mxu0
  %v2477 = vadd.f32 %v407, %v2476
  %v2478 = vpop.f32.mrb[0].mxu0
  %v2479 = vadd.f32 %v403, %v2478
  %v2480 = vpop.f32.mrb[0].mxu0
  %v2481 = vadd.f32 %v407, %v2480
  %2482 = vmatprep.mubr.bf16.mxu0 %v779
  %2483 = vmatmul.mubr.bf16.gmra.mrb[0].mxu0 %v778
  %v2484 = vpop.f32.mrb[0].mxu0
  %v2485 = vadd.f32 %v403, %v2484
  %v2486 = vpop.f32.mrb[0].mxu0
  %v2487 = vadd.f32 %v407, %v2486
  %v2488 = vpop.f32.mrb[0].mxu0
  %v2489 = vadd.f32 %v403, %v2488
  %v2490 = vpop.f32.mrb[0].mxu0
  %v2491 = vadd.f32 %v407, %v2490
  %2492 = vmatprep.mubr.bf16.mxu0 %v785
  %2493 = vmatmul.mubr.bf16.gmra.mrb[0].mxu0 %v784
  %v2494 = vpop.f32.mrb[0].mxu0
  %v2495 = vadd.f32 %v403, %v2494
  %v2496 = vpop.f32.mrb[0].mxu0
  %v2497 = vadd.f32 %v407, %v2496
  %v2498 = vpop.f32.mrb[0].mxu0
  %v2499 = vadd.f32 %v403, %v2498
  %v2500 = vpop.f32.mrb[0].mxu0
  %v2501 = vadd.f32 %v407, %v2500
  %2502 = vmatprep.mubr.bf16.mxu0 %v791
  %2503 = vmatmul.mubr.bf16.gmra.mrb[0].mxu0 %v790
  %v2504 = vpop.f32.mrb[0].mxu0
  %v2505 = vadd.f32 %v403, %v2504
  %v2506 = vpop.f32.mrb[0].mxu0
  %v2507 = vadd.f32 %v407, %v2506
  %v2508 = vpop.f32.mrb[0].mxu0
  %v2509 = vadd.f32 %v403, %v2508
  %v2510 = vpop.f32.mrb[0].mxu0
  %v2511 = vadd.f32 %v407, %v2510
  %2512 = vmatprep.mubr.bf16.mxu0 %v797
  %2513 = vmatmul.mubr.bf16.gmra.mrb[0].mxu0 %v796
  %v2514 = vpop.f32.mrb[0].mxu0
  %v2515 = vadd.f32 %v403, %v2514
  %v2516 = vpop.f32.mrb[0].mxu0
  %v2517 = vadd.f32 %v407, %v2516
  %v2518 = vpop.f32.mrb[0].mxu0
  %v2519 = vadd.f32 %v403, %v2518
  %v2520 = vpop.f32.mrb[0].mxu0
  %v2521 = vadd.f32 %v407, %v2520
  %2522 = vmatprep.mubr.bf16.mxu0 %v803
  %2523 = vmatmul.mubr.bf16.gmra.mrb[0].mxu0 %v802
  %v2524 = vpop.f32.mrb[0].mxu0
  %v2525 = vadd.f32 %v403, %v2524
  %v2526 = vpop.f32.mrb[0].mxu0
  %v2527 = vadd.f32 %v407, %v2526
  %v2528 = vpop.f32.mrb[0].mxu0
  %v2529 = vadd.f32 %v403, %v2528
  %v2530 = vpop.f32.mrb[0].mxu0
  %v2531 = vadd.f32 %v407, %v2530
  %2532 = vmatprep.mubr.bf16.mxu0 %v809
  %2533 = vmatmul.mubr.bf16.gmra.mrb[0].mxu0 %v808
  %v2534 = vpop.f32.mrb[0].mxu0
  %v2535 = vadd.f32 %v403, %v2534
  %v2536 = vpop.f32.mrb[0].mxu0
  %v2537 = vadd.f32 %v407, %v2536
  %v2538 = vpop.f32.mrb[0].mxu0
  %v2539 = vadd.f32 %v403, %v2538
  %v2540 = vpop.f32.mrb[0].mxu0
  %v2541 = vadd.f32 %v407, %v2540
  %2542 = vdwg.mxu0
  %2543 = vmatprep.subr.bf16.mxu0 %v1777
  %2544 = vmatpush1.bf16.xpose.msra.mxu0 %v1776
  %2545 = vmatprep.subr.bf16.mxu0 %v1783
  %2546 = vmatpush1.bf16.xpose.msra.mxu0 %v1782
  %2547 = vmatprep.subr.bf16.mxu0 %v1789
  %2548 = vmatpush1.bf16.xpose.msra.mxu0 %v1788
  %2549 = vmatprep.subr.bf16.mxu0 %v1795
  %2550 = vmatpush1.bf16.xpose.msra.mxu0 %v1794
  %2551 = vmatprep.subr.bf16.mxu0 %v1801
  %2552 = vmatpush1.bf16.xpose.msra.mxu0 %v1800
  %2553 = vmatprep.subr.bf16.mxu0 %v1807
  %2554 = vmatpush1.bf16.xpose.msra.mxu0 %v1806
  %2555 = vmatprep.subr.bf16.mxu0 %v1813
  %2556 = vmatpush1.bf16.xpose.msra.mxu0 %v1812
  %2557 = vmatprep.subr.bf16.mxu0 %v1819
  %2558 = vmatpush1.bf16.xpose.msra.mxu0 %v1818
  %2559 = vmatprep.subr.bf16.mxu0 %v1825
  %2560 = vmatpush1.bf16.xpose.msra.mxu0 %v1824
  %2561 = vmatprep.subr.bf16.mxu0 %v1831
  %2562 = vmatpush1.bf16.xpose.msra.mxu0 %v1830
  %2563 = vmatprep.subr.bf16.mxu0 %v1837
  %2564 = vmatpush1.bf16.xpose.msra.mxu0 %v1836
  %2565 = vmatprep.subr.bf16.mxu0 %v1843
  %2566 = vmatpush1.bf16.xpose.msra.mxu0 %v1842
  %2567 = vmatprep.subr.bf16.mxu0 %v1849
  %2568 = vmatpush1.bf16.xpose.msra.mxu0 %v1848
  %2569 = vmatprep.subr.bf16.mxu0 %v1855
  %2570 = vmatpush1.bf16.xpose.msra.mxu0 %v1854
  %2571 = vmatprep.subr.bf16.mxu0 %v1861
  %2572 = vmatpush1.bf16.xpose.msra.mxu0 %v1860
  %2573 = vmatprep.subr.bf16.mxu0 %v1867
  %2574 = vmatpush1.bf16.xpose.msra.mxu0 %v1866
  %2575 = vmatprep.mubr.bf16.mxu0 %v721
  %2576 = vmatmul.mubr.bf16.gmra.mrb[0].mxu0 %v720
  %v2577 = vpop.f32.mrb[0].mxu0
  %v2578 = vadd.f32 %v2385, %v2577
  %v2579 = vpop.f32.mrb[0].mxu0
  %v2580 = vadd.f32 %v2387, %v2579
  %v2581 = vpop.f32.mrb[0].mxu0
  %v2582 = vadd.f32 %v2389, %v2581
  %v2583 = vpop.f32.mrb[0].mxu0
  %v2584 = vadd.f32 %v2391, %v2583
  %2585 = vmatprep.mubr.bf16.mxu0 %v727
  %2586 = vmatmul.mubr.bf16.gmra.mrb[0].mxu0 %v726
  %v2587 = vpop.f32.mrb[0].mxu0
  %v2588 = vadd.f32 %v2395, %v2587
  %v2589 = vpop.f32.mrb[0].mxu0
  %v2590 = vadd.f32 %v2397, %v2589
  %v2591 = vpop.f32.mrb[0].mxu0
  %v2592 = vadd.f32 %v2399, %v2591
  %v2593 = vpop.f32.mrb[0].mxu0
  %v2594 = vadd.f32 %v2401, %v2593
  %2595 = vmatprep.mubr.bf16.mxu0 %v733
  %2596 = vmatmul.mubr.bf16.gmra.mrb[0].mxu0 %v732
  %v2597 = vpop.f32.mrb[0].mxu0
  %v2598 = vadd.f32 %v2405, %v2597
  %v2599 = vpop.f32.mrb[0].mxu0
  %v2600 = vadd.f32 %v2407, %v2599
  %v2601 = vpop.f32.mrb[0].mxu0
  %v2602 = vadd.f32 %v2409, %v2601
  %v2603 = vpop.f32.mrb[0].mxu0
  %v2604 = vadd.f32 %v2411, %v2603
  %2605 = vmatprep.mubr.bf16.mxu0 %v739
  %2606 = vmatmul.mubr.bf16.gmra.mrb[0].mxu0 %v738
  %v2607 = vpop.f32.mrb[0].mxu0
  %v2608 = vadd.f32 %v2415, %v2607
  %v2609 = vpop.f32.mrb[0].mxu0
  %v2610 = vadd.f32 %v2417, %v2609
  %v2611 = vpop.f32.mrb[0].mxu0
  %v2612 = vadd.f32 %v2419, %v2611
  %v2613 = vpop.f32.mrb[0].mxu0
  %v2614 = vadd.f32 %v2421, %v2613
  %2615 = vmatprep.mubr.bf16.mxu0 %v745
  %2616 = vmatmul.mubr.bf16.gmra.mrb[0].mxu0 %v744
  %v2617 = vpop.f32.mrb[0].mxu0
  %v2618 = vadd.f32 %v2425, %v2617
  %v2619 = vpop.f32.mrb[0].mxu0
  %v2620 = vadd.f32 %v2427, %v2619
  %v2621 = vpop.f32.mrb[0].mxu0
  %v2622 = vadd.f32 %v2429, %v2621
  %v2623 = vpop.f32.mrb[0].mxu0
  %v2624 = vadd.f32 %v2431, %v2623
  %2625 = vmatprep.mubr.bf16.mxu0 %v751
  %2626 = vmatmul.mubr.bf16.gmra.mrb[0].mxu0 %v750
  %v2627 = vpop.f32.mrb[0].mxu0
  %v2628 = vadd.f32 %v2435, %v2627
  %v2629 = vpop.f32.mrb[0].mxu0
  %v2630 = vadd.f32 %v2437, %v2629
  %v2631 = vpop.f32.mrb[0].mxu0
  %v2632 = vadd.f32 %v2439, %v2631
  %v2633 = vpop.f32.mrb[0].mxu0
  %v2634 = vadd.f32 %v2441, %v2633
  %2635 = vmatprep.mubr.bf16.mxu0 %v757
  %2636 = vmatmul.mubr.bf16.gmra.mrb[0].mxu0 %v756
  %v2637 = vpop.f32.mrb[0].mxu0
  %v2638 = vadd.f32 %v2445, %v2637
  %v2639 = vpop.f32.mrb[0].mxu0
  %v2640 = vadd.f32 %v2447, %v2639
  %v2641 = vpop.f32.mrb[0].mxu0
  %v2642 = vadd.f32 %v2449, %v2641
  %v2643 = vpop.f32.mrb[0].mxu0
  %v2644 = vadd.f32 %v2451, %v2643
  %2645 = vmatprep.mubr.bf16.mxu0 %v763
  %2646 = vmatmul.mubr.bf16.gmra.mrb[0].mxu0 %v762
  %v2647 = vpop.f32.mrb[0].mxu0
  %v2648 = vadd.f32 %v2455, %v2647
  %v2649 = vpop.f32.mrb[0].mxu0
  %v2650 = vadd.f32 %v2457, %v2649
  %v2651 = vpop.f32.mrb[0].mxu0
  %v2652 = vadd.f32 %v2459, %v2651
  %v2653 = vpop.f32.mrb[0].mxu0
  %v2654 = vadd.f32 %v2461, %v2653
  %2655 = vmatprep.mubr.bf16.mxu0 %v769
  %2656 = vmatmul.mubr.bf16.gmra.mrb[0].mxu0 %v768
  %v2657 = vpop.f32.mrb[0].mxu0
  %v2658 = vadd.f32 %v2465, %v2657
  %v2659 = vpop.f32.mrb[0].mxu0
  %v2660 = vadd.f32 %v2467, %v2659
  %v2661 = vpop.f32.mrb[0].mxu0
  %v2662 = vadd.f32 %v2469, %v2661
  %v2663 = vpop.f32.mrb[0].mxu0
  %v2664 = vadd.f32 %v2471, %v2663
  %2665 = vmatprep.mubr.bf16.mxu0 %v775
  %2666 = vmatmul.mubr.bf16.gmra.mrb[0].mxu0 %v774
  %v2667 = vpop.f32.mrb[0].mxu0
  %v2668 = vadd.f32 %v2475, %v2667
  %v2669 = vpop.f32.mrb[0].mxu0
  %v2670 = vadd.f32 %v2477, %v2669
  %v2671 = vpop.f32.mrb[0].mxu0
  %v2672 = vadd.f32 %v2479, %v2671
  %v2673 = vpop.f32.mrb[0].mxu0
  %v2674 = vadd.f32 %v2481, %v2673
  %2675 = vmatprep.mubr.bf16.mxu0 %v781
  %2676 = vmatmul.mubr.bf16.gmra.mrb[0].mxu0 %v780
  %v2677 = vpop.f32.mrb[0].mxu0
  %v2678 = vadd.f32 %v2485, %v2677
  %v2679 = vpop.f32.mrb[0].mxu0
  %v2680 = vadd.f32 %v2487, %v2679
  %v2681 = vpop.f32.mrb[0].mxu0
  %v2682 = vadd.f32 %v2489, %v2681
  %v2683 = vpop.f32.mrb[0].mxu0
  %v2684 = vadd.f32 %v2491, %v2683
  %2685 = vmatprep.mubr.bf16.mxu0 %v787
  %2686 = vmatmul.mubr.bf16.gmra.mrb[0].mxu0 %v786
  %v2687 = vpop.f32.mrb[0].mxu0
  %v2688 = vadd.f32 %v2495, %v2687
  %v2689 = vpop.f32.mrb[0].mxu0
  %v2690 = vadd.f32 %v2497, %v2689
  %v2691 = vpop.f32.mrb[0].mxu0
  %v2692 = vadd.f32 %v2499, %v2691
  %v2693 = vpop.f32.mrb[0].mxu0
  %v2694 = vadd.f32 %v2501, %v2693
  %2695 = vmatprep.mubr.bf16.mxu0 %v793
  %2696 = vmatmul.mubr.bf16.gmra.mrb[0].mxu0 %v792
  %v2697 = vpop.f32.mrb[0].mxu0
  %v2698 = vadd.f32 %v2505, %v2697
  %v2699 = vpop.f32.mrb[0].mxu0
  %v2700 = vadd.f32 %v2507, %v2699
  %v2701 = vpop.f32.mrb[0].mxu0
  %v2702 = vadd.f32 %v2509, %v2701
  %v2703 = vpop.f32.mrb[0].mxu0
  %v2704 = vadd.f32 %v2511, %v2703
  %2705 = vmatprep.mubr.bf16.mxu0 %v799
  %2706 = vmatmul.mubr.bf16.gmra.mrb[0].mxu0 %v798
  %v2707 = vpop.f32.mrb[0].mxu0
  %v2708 = vadd.f32 %v2515, %v2707
  %v2709 = vpop.f32.mrb[0].mxu0
  %v2710 = vadd.f32 %v2517, %v2709
  %v2711 = vpop.f32.mrb[0].mxu0
  %v2712 = vadd.f32 %v2519, %v2711
  %v2713 = vpop.f32.mrb[0].mxu0
  %v2714 = vadd.f32 %v2521, %v2713
  %2715 = vmatprep.mubr.bf16.mxu0 %v805
  %2716 = vmatmul.mubr.bf16.gmra.mrb[0].mxu0 %v804
  %v2717 = vpop.f32.mrb[0].mxu0
  %v2718 = vadd.f32 %v2525, %v2717
  %v2719 = vpop.f32.mrb[0].mxu0
  %v2720 = vadd.f32 %v2527, %v2719
  %v2721 = vpop.f32.mrb[0].mxu0
  %v2722 = vadd.f32 %v2529, %v2721
  %v2723 = vpop.f32.mrb[0].mxu0
  %v2724 = vadd.f32 %v2531, %v2723
  %2725 = vmatprep.mubr.bf16.mxu0 %v811
  %2726 = vmatmul.mubr.bf16.gmra.mrb[0].mxu0 %v810
  %v2727 = vpop.f32.mrb[0].mxu0
  %v2728 = vadd.f32 %v2535, %v2727
  %v2729 = vpop.f32.mrb[0].mxu0
  %v2730 = vadd.f32 %v2537, %v2729
  %v2731 = vpop.f32.mrb[0].mxu0
  %v2732 = vadd.f32 %v2539, %v2731
  %v2733 = vpop.f32.mrb[0].mxu0
  %v2734 = vadd.f32 %v2541, %v2733
  %2735 = vdwg.mxu0
  %2736 = vmatprep.subr.bf16.mxu0 %v1779
  %2737 = vmatpush1.bf16.xpose.msra.mxu0 %v1778
  %2738 = vmatprep.subr.bf16.mxu0 %v1785
  %2739 = vmatpush1.bf16.xpose.msra.mxu0 %v1784
  %2740 = vmatprep.subr.bf16.mxu0 %v1791
  %2741 = vmatpush1.bf16.xpose.msra.mxu0 %v1790
  %2742 = vmatprep.subr.bf16.mxu0 %v1797
  %2743 = vmatpush1.bf16.xpose.msra.mxu0 %v1796
  %2744 = vmatprep.subr.bf16.mxu0 %v1803
  %2745 = vmatpush1.bf16.xpose.msra.mxu0 %v1802
  %2746 = vmatprep.subr.bf16.mxu0 %v1809
  %2747 = vmatpush1.bf16.xpose.msra.mxu0 %v1808
  %2748 = vmatprep.subr.bf16.mxu0 %v1815
  %2749 = vmatpush1.bf16.xpose.msra.mxu0 %v1814
  %2750 = vmatprep.subr.bf16.mxu0 %v1821
  %2751 = vmatpush1.bf16.xpose.msra.mxu0 %v1820
  %2752 = vmatprep.subr.bf16.mxu0 %v1827
  %2753 = vmatpush1.bf16.xpose.msra.mxu0 %v1826
  %2754 = vmatprep.subr.bf16.mxu0 %v1833
  %2755 = vmatpush1.bf16.xpose.msra.mxu0 %v1832
  %2756 = vmatprep.subr.bf16.mxu0 %v1839
  %2757 = vmatpush1.bf16.xpose.msra.mxu0 %v1838
  %2758 = vmatprep.subr.bf16.mxu0 %v1845
  %2759 = vmatpush1.bf16.xpose.msra.mxu0 %v1844
  %2760 = vmatprep.subr.bf16.mxu0 %v1851
  %2761 = vmatpush1.bf16.xpose.msra.mxu0 %v1850
  %2762 = vmatprep.subr.bf16.mxu0 %v1857
  %2763 = vmatpush1.bf16.xpose.msra.mxu0 %v1856
  %2764 = vmatprep.subr.bf16.mxu0 %v1863
  %2765 = vmatpush1.bf16.xpose.msra.mxu0 %v1862
  %2766 = vmatprep.subr.bf16.mxu0 %v1869
  %2767 = vmatpush1.bf16.xpose.msra.mxu0 %v1868
  %2768 = vmatprep.mubr.bf16.mxu0 %v723
  %2769 = vmatmul.mubr.bf16.gmra.mrb[0].mxu0 %v722
  %v2770 = vpop.f32.mrb[0].mxu0
  %v2771 = vadd.f32 %v2578, %v2770
  %v2772 = vpop.f32.mrb[0].mxu0
  %v2773 = vadd.f32 %v2580, %v2772
  %v2774 = vpop.f32.mrb[0].mxu0
  %v2775 = vadd.f32 %v2582, %v2774
  %v2776 = vpop.f32.mrb[0].mxu0
  %v2777 = vadd.f32 %v2584, %v2776
  %2778 = vmatprep.mubr.bf16.mxu0 %v729
  %2779 = vmatmul.mubr.bf16.gmra.mrb[0].mxu0 %v728
  %v2780 = vpop.f32.mrb[0].mxu0
  %v2781 = vadd.f32 %v2588, %v2780
  %v2782 = vpop.f32.mrb[0].mxu0
  %v2783 = vadd.f32 %v2590, %v2782
  %v2784 = vpop.f32.mrb[0].mxu0
  %v2785 = vadd.f32 %v2592, %v2784
  %v2786 = vpop.f32.mrb[0].mxu0
  %v2787 = vadd.f32 %v2594, %v2786
  %2788 = vmatprep.mubr.bf16.mxu0 %v735
  %2789 = vmatmul.mubr.bf16.gmra.mrb[0].mxu0 %v734
  %v2790 = vpop.f32.mrb[0].mxu0
  %v2791 = vadd.f32 %v2598, %v2790
  %v2792 = vpop.f32.mrb[0].mxu0
  %v2793 = vadd.f32 %v2600, %v2792
  %v2794 = vpop.f32.mrb[0].mxu0
  %v2795 = vadd.f32 %v2602, %v2794
  %v2796 = vpop.f32.mrb[0].mxu0
  %v2797 = vadd.f32 %v2604, %v2796
  %2798 = vmatprep.mubr.bf16.mxu0 %v741
  %2799 = vmatmul.mubr.bf16.gmra.mrb[0].mxu0 %v740
  %v2800 = vpop.f32.mrb[0].mxu0
  %v2801 = vadd.f32 %v2608, %v2800
  %v2802 = vpop.f32.mrb[0].mxu0
  %v2803 = vadd.f32 %v2610, %v2802
  %v2804 = vpop.f32.mrb[0].mxu0
  %v2805 = vadd.f32 %v2612, %v2804
  %v2806 = vpop.f32.mrb[0].mxu0
  %v2807 = vadd.f32 %v2614, %v2806
  %2808 = vmatprep.mubr.bf16.mxu0 %v747
  %2809 = vmatmul.mubr.bf16.gmra.mrb[0].mxu0 %v746
  %v2810 = vpop.f32.mrb[0].mxu0
  %v2811 = vadd.f32 %v2618, %v2810
  %v2812 = vpop.f32.mrb[0].mxu0
  %v2813 = vadd.f32 %v2620, %v2812
  %v2814 = vpop.f32.mrb[0].mxu0
  %v2815 = vadd.f32 %v2622, %v2814
  %v2816 = vpop.f32.mrb[0].mxu0
  %v2817 = vadd.f32 %v2624, %v2816
  %2818 = vmatprep.mubr.bf16.mxu0 %v753
  %2819 = vmatmul.mubr.bf16.gmra.mrb[0].mxu0 %v752
  %v2820 = vpop.f32.mrb[0].mxu0
  %v2821 = vadd.f32 %v2628, %v2820
  %v2822 = vpop.f32.mrb[0].mxu0
  %v2823 = vadd.f32 %v2630, %v2822
  %v2824 = vpop.f32.mrb[0].mxu0
  %v2825 = vadd.f32 %v2632, %v2824
  %v2826 = vpop.f32.mrb[0].mxu0
  %v2827 = vadd.f32 %v2634, %v2826
  %2828 = vmatprep.mubr.bf16.mxu0 %v759
  %2829 = vmatmul.mubr.bf16.gmra.mrb[0].mxu0 %v758
  %v2830 = vpop.f32.mrb[0].mxu0
  %v2831 = vadd.f32 %v2638, %v2830
  %v2832 = vpop.f32.mrb[0].mxu0
  %v2833 = vadd.f32 %v2640, %v2832
  %v2834 = vpop.f32.mrb[0].mxu0
  %v2835 = vadd.f32 %v2642, %v2834
  %v2836 = vpop.f32.mrb[0].mxu0
  %v2837 = vadd.f32 %v2644, %v2836
  %2838 = vmatprep.mubr.bf16.mxu0 %v765
  %2839 = vmatmul.mubr.bf16.gmra.mrb[0].mxu0 %v764
  %v2840 = vpop.f32.mrb[0].mxu0
  %v2841 = vadd.f32 %v2648, %v2840
  %v2842 = vpop.f32.mrb[0].mxu0
  %v2843 = vadd.f32 %v2650, %v2842
  %v2844 = vpop.f32.mrb[0].mxu0
  %v2845 = vadd.f32 %v2652, %v2844
  %v2846 = vpop.f32.mrb[0].mxu0
  %v2847 = vadd.f32 %v2654, %v2846
  %2848 = vmatprep.mubr.bf16.mxu0 %v771
  %2849 = vmatmul.mubr.bf16.gmra.mrb[0].mxu0 %v770
  %v2850 = vpop.f32.mrb[0].mxu0
  %v2851 = vadd.f32 %v2658, %v2850
  %v2852 = vpop.f32.mrb[0].mxu0
  %v2853 = vadd.f32 %v2660, %v2852
  %v2854 = vpop.f32.mrb[0].mxu0
  %v2855 = vadd.f32 %v2662, %v2854
  %v2856 = vpop.f32.mrb[0].mxu0
  %v2857 = vadd.f32 %v2664, %v2856
  %2858 = vmatprep.mubr.bf16.mxu0 %v777
  %2859 = vmatmul.mubr.bf16.gmra.mrb[0].mxu0 %v776
  %v2860 = vpop.f32.mrb[0].mxu0
  %v2861 = vadd.f32 %v2668, %v2860
  %v2862 = vpop.f32.mrb[0].mxu0
  %v2863 = vadd.f32 %v2670, %v2862
  %v2864 = vpop.f32.mrb[0].mxu0
  %v2865 = vadd.f32 %v2672, %v2864
  %v2866 = vpop.f32.mrb[0].mxu0
  %v2867 = vadd.f32 %v2674, %v2866
  %2868 = vmatprep.mubr.bf16.mxu0 %v783
  %2869 = vmatmul.mubr.bf16.gmra.mrb[0].mxu0 %v782
  %v2870 = vpop.f32.mrb[0].mxu0
  %v2871 = vadd.f32 %v2678, %v2870
  %v2872 = vpop.f32.mrb[0].mxu0
  %v2873 = vadd.f32 %v2680, %v2872
  %v2874 = vpop.f32.mrb[0].mxu0
  %v2875 = vadd.f32 %v2682, %v2874
  %v2876 = vpop.f32.mrb[0].mxu0
  %v2877 = vadd.f32 %v2684, %v2876
  %2878 = vmatprep.mubr.bf16.mxu0 %v789
  %2879 = vmatmul.mubr.bf16.gmra.mrb[0].mxu0 %v788
  %v2880 = vpop.f32.mrb[0].mxu0
  %v2881 = vadd.f32 %v2688, %v2880
  %v2882 = vpop.f32.mrb[0].mxu0
  %v2883 = vadd.f32 %v2690, %v2882
  %v2884 = vpop.f32.mrb[0].mxu0
  %v2885 = vadd.f32 %v2692, %v2884
  %v2886 = vpop.f32.mrb[0].mxu0
  %v2887 = vadd.f32 %v2694, %v2886
  %2888 = vmatprep.mubr.bf16.mxu0 %v795
  %2889 = vmatmul.mubr.bf16.gmra.mrb[0].mxu0 %v794
  %v2890 = vpop.f32.mrb[0].mxu0
  %v2891 = vadd.f32 %v2698, %v2890
  %v2892 = vpop.f32.mrb[0].mxu0
  %v2893 = vadd.f32 %v2700, %v2892
  %v2894 = vpop.f32.mrb[0].mxu0
  %v2895 = vadd.f32 %v2702, %v2894
  %v2896 = vpop.f32.mrb[0].mxu0
  %v2897 = vadd.f32 %v2704, %v2896
  %2898 = vmatprep.mubr.bf16.mxu0 %v801
  %2899 = vmatmul.mubr.bf16.gmra.mrb[0].mxu0 %v800
  %v2900 = vpop.f32.mrb[0].mxu0
  %v2901 = vadd.f32 %v2708, %v2900
  %v2902 = vpop.f32.mrb[0].mxu0
  %v2903 = vadd.f32 %v2710, %v2902
  %v2904 = vpop.f32.mrb[0].mxu0
  %v2905 = vadd.f32 %v2712, %v2904
  %v2906 = vpop.f32.mrb[0].mxu0
  %v2907 = vadd.f32 %v2714, %v2906
  %2908 = vmatprep.mubr.bf16.mxu0 %v807
  %2909 = vmatmul.mubr.bf16.gmra.mrb[0].mxu0 %v806
  %v2910 = vpop.f32.mrb[0].mxu0
  %v2911 = vadd.f32 %v2718, %v2910
  %v2912 = vpop.f32.mrb[0].mxu0
  %v2913 = vadd.f32 %v2720, %v2912
  %v2914 = vpop.f32.mrb[0].mxu0
  %v2915 = vadd.f32 %v2722, %v2914
  %v2916 = vpop.f32.mrb[0].mxu0
  %v2917 = vadd.f32 %v2724, %v2916
  %2918 = vmatprep.mubr.bf16.mxu0 %v813
  %2919 = vmatmul.mubr.bf16.gmra.mrb[0].mxu0 %v812
  %v2920 = vpop.f32.mrb[0].mxu0
  %v2921 = vadd.f32 %v2728, %v2920
  %v2922 = vpop.f32.mrb[0].mxu0
  %v2923 = vadd.f32 %v2730, %v2922
  %v2924 = vpop.f32.mrb[0].mxu0
  %v2925 = vadd.f32 %v2732, %v2924
  %v2926 = vpop.f32.mrb[0].mxu0
  %v2927 = vadd.f32 %v2734, %v2926
  %2928 = vdwg.mxu0
  %2929 = vmatprep.subr.bf16.mxu0 %v1871
  %2930 = vmatpush1.bf16.xpose.msra.mxu0 %v1870
  %2931 = vmatprep.subr.bf16.mxu0 %v1877
  %2932 = vmatpush1.bf16.xpose.msra.mxu0 %v1876
  %2933 = vmatprep.subr.bf16.mxu0 %v1883
  %2934 = vmatpush1.bf16.xpose.msra.mxu0 %v1882
  %2935 = vmatprep.subr.bf16.mxu0 %v1889
  %2936 = vmatpush1.bf16.xpose.msra.mxu0 %v1888
  %2937 = vmatprep.subr.bf16.mxu0 %v1895
  %2938 = vmatpush1.bf16.xpose.msra.mxu0 %v1894
  %2939 = vmatprep.subr.bf16.mxu0 %v1901
  %2940 = vmatpush1.bf16.xpose.msra.mxu0 %v1900
  %2941 = vmatprep.subr.bf16.mxu0 %v1907
  %2942 = vmatpush1.bf16.xpose.msra.mxu0 %v1906
  %2943 = vmatprep.subr.bf16.mxu0 %v1913
  %2944 = vmatpush1.bf16.xpose.msra.mxu0 %v1912
  %2945 = vmatprep.subr.bf16.mxu0 %v1919
  %2946 = vmatpush1.bf16.xpose.msra.mxu0 %v1918
  %2947 = vmatprep.subr.bf16.mxu0 %v1925
  %2948 = vmatpush1.bf16.xpose.msra.mxu0 %v1924
  %2949 = vmatprep.subr.bf16.mxu0 %v1931
  %2950 = vmatpush1.bf16.xpose.msra.mxu0 %v1930
  %2951 = vmatprep.subr.bf16.mxu0 %v1937
  %2952 = vmatpush1.bf16.xpose.msra.mxu0 %v1936
  %2953 = vmatprep.subr.bf16.mxu0 %v1943
  %2954 = vmatpush1.bf16.xpose.msra.mxu0 %v1942
  %2955 = vmatprep.subr.bf16.mxu0 %v1949
  %2956 = vmatpush1.bf16.xpose.msra.mxu0 %v1948
  %2957 = vmatprep.subr.bf16.mxu0 %v1955
  %2958 = vmatpush1.bf16.xpose.msra.mxu0 %v1954
  %2959 = vmatprep.subr.bf16.mxu0 %v1961
  %2960 = vmatpush1.bf16.xpose.msra.mxu0 %v1960
  %2961 = vmatprep.mubr.bf16.mxu0 %v719
  %2962 = vmatmul.mubr.bf16.gmra.mrb[0].mxu0 %v718
  %v2963 = vpop.f32.mrb[0].mxu0
  %v2964 = vadd.f32 %v411, %v2963
  %v2965 = vpop.f32.mrb[0].mxu0
  %v2966 = vadd.f32 %v415, %v2965
  %v2967 = vpop.f32.mrb[0].mxu0
  %v2968 = vadd.f32 %v411, %v2967
  %v2969 = vpop.f32.mrb[0].mxu0
  %v2970 = vadd.f32 %v415, %v2969
  %2971 = vmatprep.mubr.bf16.mxu0 %v725
  %2972 = vmatmul.mubr.bf16.gmra.mrb[0].mxu0 %v724
  %v2973 = vpop.f32.mrb[0].mxu0
  %v2974 = vadd.f32 %v411, %v2973
  %v2975 = vpop.f32.mrb[0].mxu0
  %v2976 = vadd.f32 %v415, %v2975
  %v2977 = vpop.f32.mrb[0].mxu0
  %v2978 = vadd.f32 %v411, %v2977
  %v2979 = vpop.f32.mrb[0].mxu0
  %v2980 = vadd.f32 %v415, %v2979
  %2981 = vmatprep.mubr.bf16.mxu0 %v731
  %2982 = vmatmul.mubr.bf16.gmra.mrb[0].mxu0 %v730
  %v2983 = vpop.f32.mrb[0].mxu0
  %v2984 = vadd.f32 %v411, %v2983
  %v2985 = vpop.f32.mrb[0].mxu0
  %v2986 = vadd.f32 %v415, %v2985
  %v2987 = vpop.f32.mrb[0].mxu0
  %v2988 = vadd.f32 %v411, %v2987
  %v2989 = vpop.f32.mrb[0].mxu0
  %v2990 = vadd.f32 %v415, %v2989
  %2991 = vmatprep.mubr.bf16.mxu0 %v737
  %2992 = vmatmul.mubr.bf16.gmra.mrb[0].mxu0 %v736
  %v2993 = vpop.f32.mrb[0].mxu0
  %v2994 = vadd.f32 %v411, %v2993
  %v2995 = vpop.f32.mrb[0].mxu0
  %v2996 = vadd.f32 %v415, %v2995
  %v2997 = vpop.f32.mrb[0].mxu0
  %v2998 = vadd.f32 %v411, %v2997
  %v2999 = vpop.f32.mrb[0].mxu0
  %v3000 = vadd.f32 %v415, %v2999
  %3001 = vmatprep.mubr.bf16.mxu0 %v743
  %3002 = vmatmul.mubr.bf16.gmra.mrb[0].mxu0 %v742
  %v3003 = vpop.f32.mrb[0].mxu0
  %v3004 = vadd.f32 %v411, %v3003
  %v3005 = vpop.f32.mrb[0].mxu0
  %v3006 = vadd.f32 %v415, %v3005
  %v3007 = vpop.f32.mrb[0].mxu0
  %v3008 = vadd.f32 %v411, %v3007
  %v3009 = vpop.f32.mrb[0].mxu0
  %v3010 = vadd.f32 %v415, %v3009
  %3011 = vmatprep.mubr.bf16.mxu0 %v749
  %3012 = vmatmul.mubr.bf16.gmra.mrb[0].mxu0 %v748
  %v3013 = vpop.f32.mrb[0].mxu0
  %v3014 = vadd.f32 %v411, %v3013
  %v3015 = vpop.f32.mrb[0].mxu0
  %v3016 = vadd.f32 %v415, %v3015
  %v3017 = vpop.f32.mrb[0].mxu0
  %v3018 = vadd.f32 %v411, %v3017
  %v3019 = vpop.f32.mrb[0].mxu0
  %v3020 = vadd.f32 %v415, %v3019
  %3021 = vmatprep.mubr.bf16.mxu0 %v755
  %3022 = vmatmul.mubr.bf16.gmra.mrb[0].mxu0 %v754
  %v3023 = vpop.f32.mrb[0].mxu0
  %v3024 = vadd.f32 %v411, %v3023
  %v3025 = vpop.f32.mrb[0].mxu0
  %v3026 = vadd.f32 %v415, %v3025
  %v3027 = vpop.f32.mrb[0].mxu0
  %v3028 = vadd.f32 %v411, %v3027
  %v3029 = vpop.f32.mrb[0].mxu0
  %v3030 = vadd.f32 %v415, %v3029
  %3031 = vmatprep.mubr.bf16.mxu0 %v761
  %3032 = vmatmul.mubr.bf16.gmra.mrb[0].mxu0 %v760
  %v3033 = vpop.f32.mrb[0].mxu0
  %v3034 = vadd.f32 %v411, %v3033
  %v3035 = vpop.f32.mrb[0].mxu0
  %v3036 = vadd.f32 %v415, %v3035
  %v3037 = vpop.f32.mrb[0].mxu0
  %v3038 = vadd.f32 %v411, %v3037
  %v3039 = vpop.f32.mrb[0].mxu0
  %v3040 = vadd.f32 %v415, %v3039
  %3041 = vmatprep.mubr.bf16.mxu0 %v767
  %3042 = vmatmul.mubr.bf16.gmra.mrb[0].mxu0 %v766
  %v3043 = vpop.f32.mrb[0].mxu0
  %v3044 = vadd.f32 %v411, %v3043
  %v3045 = vpop.f32.mrb[0].mxu0
  %v3046 = vadd.f32 %v415, %v3045
  %v3047 = vpop.f32.mrb[0].mxu0
  %v3048 = vadd.f32 %v411, %v3047
  %v3049 = vpop.f32.mrb[0].mxu0
  %v3050 = vadd.f32 %v415, %v3049
  %3051 = vmatprep.mubr.bf16.mxu0 %v773
  %3052 = vmatmul.mubr.bf16.gmra.mrb[0].mxu0 %v772
  %v3053 = vpop.f32.mrb[0].mxu0
  %v3054 = vadd.f32 %v411, %v3053
  %v3055 = vpop.f32.mrb[0].mxu0
  %v3056 = vadd.f32 %v415, %v3055
  %v3057 = vpop.f32.mrb[0].mxu0
  %v3058 = vadd.f32 %v411, %v3057
  %v3059 = vpop.f32.mrb[0].mxu0
  %v3060 = vadd.f32 %v415, %v3059
  %3061 = vmatprep.mubr.bf16.mxu0 %v779
  %3062 = vmatmul.mubr.bf16.gmra.mrb[0].mxu0 %v778
  %v3063 = vpop.f32.mrb[0].mxu0
  %v3064 = vadd.f32 %v411, %v3063
  %v3065 = vpop.f32.mrb[0].mxu0
  %v3066 = vadd.f32 %v415, %v3065
  %v3067 = vpop.f32.mrb[0].mxu0
  %v3068 = vadd.f32 %v411, %v3067
  %v3069 = vpop.f32.mrb[0].mxu0
  %v3070 = vadd.f32 %v415, %v3069
  %3071 = vmatprep.mubr.bf16.mxu0 %v785
  %3072 = vmatmul.mubr.bf16.gmra.mrb[0].mxu0 %v784
  %v3073 = vpop.f32.mrb[0].mxu0
  %v3074 = vadd.f32 %v411, %v3073
  %v3075 = vpop.f32.mrb[0].mxu0
  %v3076 = vadd.f32 %v415, %v3075
  %v3077 = vpop.f32.mrb[0].mxu0
  %v3078 = vadd.f32 %v411, %v3077
  %v3079 = vpop.f32.mrb[0].mxu0
  %v3080 = vadd.f32 %v415, %v3079
  %3081 = vmatprep.mubr.bf16.mxu0 %v791
  %3082 = vmatmul.mubr.bf16.gmra.mrb[0].mxu0 %v790
  %v3083 = vpop.f32.mrb[0].mxu0
  %v3084 = vadd.f32 %v411, %v3083
  %v3085 = vpop.f32.mrb[0].mxu0
  %v3086 = vadd.f32 %v415, %v3085
  %v3087 = vpop.f32.mrb[0].mxu0
  %v3088 = vadd.f32 %v411, %v3087
  %v3089 = vpop.f32.mrb[0].mxu0
  %v3090 = vadd.f32 %v415, %v3089
  %3091 = vmatprep.mubr.bf16.mxu0 %v797
  %3092 = vmatmul.mubr.bf16.gmra.mrb[0].mxu0 %v796
  %v3093 = vpop.f32.mrb[0].mxu0
  %v3094 = vadd.f32 %v411, %v3093
  %v3095 = vpop.f32.mrb[0].mxu0
  %v3096 = vadd.f32 %v415, %v3095
  %v3097 = vpop.f32.mrb[0].mxu0
  %v3098 = vadd.f32 %v411, %v3097
  %v3099 = vpop.f32.mrb[0].mxu0
  %v3100 = vadd.f32 %v415, %v3099
  %3101 = vmatprep.mubr.bf16.mxu0 %v803
  %3102 = vmatmul.mubr.bf16.gmra.mrb[0].mxu0 %v802
  %v3103 = vpop.f32.mrb[0].mxu0
  %v3104 = vadd.f32 %v411, %v3103
  %v3105 = vpop.f32.mrb[0].mxu0
  %v3106 = vadd.f32 %v415, %v3105
  %v3107 = vpop.f32.mrb[0].mxu0
  %v3108 = vadd.f32 %v411, %v3107
  %v3109 = vpop.f32.mrb[0].mxu0
  %v3110 = vadd.f32 %v415, %v3109
  %3111 = vmatprep.mubr.bf16.mxu0 %v809
  %3112 = vmatmul.mubr.bf16.gmra.mrb[0].mxu0 %v808
  %v3113 = vpop.f32.mrb[0].mxu0
  %v3114 = vadd.f32 %v411, %v3113
  %v3115 = vpop.f32.mrb[0].mxu0
  %v3116 = vadd.f32 %v415, %v3115
  %v3117 = vpop.f32.mrb[0].mxu0
  %v3118 = vadd.f32 %v411, %v3117
  %v3119 = vpop.f32.mrb[0].mxu0
  %v3120 = vadd.f32 %v415, %v3119
  %3121 = vdwg.mxu0
  %3122 = vmatprep.subr.bf16.mxu0 %v1873
  %3123 = vmatpush1.bf16.xpose.msra.mxu0 %v1872
  %3124 = vmatprep.subr.bf16.mxu0 %v1879
  %3125 = vmatpush1.bf16.xpose.msra.mxu0 %v1878
  %3126 = vmatprep.subr.bf16.mxu0 %v1885
  %3127 = vmatpush1.bf16.xpose.msra.mxu0 %v1884
  %3128 = vmatprep.subr.bf16.mxu0 %v1891
  %3129 = vmatpush1.bf16.xpose.msra.mxu0 %v1890
  %3130 = vmatprep.subr.bf16.mxu0 %v1897
  %3131 = vmatpush1.bf16.xpose.msra.mxu0 %v1896
  %3132 = vmatprep.subr.bf16.mxu0 %v1903
  %3133 = vmatpush1.bf16.xpose.msra.mxu0 %v1902
  %3134 = vmatprep.subr.bf16.mxu0 %v1909
  %3135 = vmatpush1.bf16.xpose.msra.mxu0 %v1908
  %3136 = vmatprep.subr.bf16.mxu0 %v1915
  %3137 = vmatpush1.bf16.xpose.msra.mxu0 %v1914
  %3138 = vmatprep.subr.bf16.mxu0 %v1921
  %3139 = vmatpush1.bf16.xpose.msra.mxu0 %v1920
  %3140 = vmatprep.subr.bf16.mxu0 %v1927
  %3141 = vmatpush1.bf16.xpose.msra.mxu0 %v1926
  %3142 = vmatprep.subr.bf16.mxu0 %v1933
  %3143 = vmatpush1.bf16.xpose.msra.mxu0 %v1932
  %3144 = vmatprep.subr.bf16.mxu0 %v1939
  %3145 = vmatpush1.bf16.xpose.msra.mxu0 %v1938
  %3146 = vmatprep.subr.bf16.mxu0 %v1945
  %3147 = vmatpush1.bf16.xpose.msra.mxu0 %v1944
  %3148 = vmatprep.subr.bf16.mxu0 %v1951
  %3149 = vmatpush1.bf16.xpose.msra.mxu0 %v1950
  %3150 = vmatprep.subr.bf16.mxu0 %v1957
  %3151 = vmatpush1.bf16.xpose.msra.mxu0 %v1956
  %3152 = vmatprep.subr.bf16.mxu0 %v1963
  %3153 = vmatpush1.bf16.xpose.msra.mxu0 %v1962
  %3154 = vmatprep.mubr.bf16.mxu0 %v721
  %3155 = vmatmul.mubr.bf16.gmra.mrb[0].mxu0 %v720
  %v3156 = vpop.f32.mrb[0].mxu0
  %v3157 = vadd.f32 %v2964, %v3156
  %v3158 = vpop.f32.mrb[0].mxu0
  %v3159 = vadd.f32 %v2966, %v3158
  %v3160 = vpop.f32.mrb[0].mxu0
  %v3161 = vadd.f32 %v2968, %v3160
  %v3162 = vpop.f32.mrb[0].mxu0
  %v3163 = vadd.f32 %v2970, %v3162
  %3164 = vmatprep.mubr.bf16.mxu0 %v727
  %3165 = vmatmul.mubr.bf16.gmra.mrb[0].mxu0 %v726
  %v3166 = vpop.f32.mrb[0].mxu0
  %v3167 = vadd.f32 %v2974, %v3166
  %v3168 = vpop.f32.mrb[0].mxu0
  %v3169 = vadd.f32 %v2976, %v3168
  %v3170 = vpop.f32.mrb[0].mxu0
  %v3171 = vadd.f32 %v2978, %v3170
  %v3172 = vpop.f32.mrb[0].mxu0
  %v3173 = vadd.f32 %v2980, %v3172
  %3174 = vmatprep.mubr.bf16.mxu0 %v733
  %3175 = vmatmul.mubr.bf16.gmra.mrb[0].mxu0 %v732
  %v3176 = vpop.f32.mrb[0].mxu0
  %v3177 = vadd.f32 %v2984, %v3176
  %v3178 = vpop.f32.mrb[0].mxu0
  %v3179 = vadd.f32 %v2986, %v3178
  %v3180 = vpop.f32.mrb[0].mxu0
  %v3181 = vadd.f32 %v2988, %v3180
  %v3182 = vpop.f32.mrb[0].mxu0
  %v3183 = vadd.f32 %v2990, %v3182
  %3184 = vmatprep.mubr.bf16.mxu0 %v739
  %3185 = vmatmul.mubr.bf16.gmra.mrb[0].mxu0 %v738
  %v3186 = vpop.f32.mrb[0].mxu0
  %v3187 = vadd.f32 %v2994, %v3186
  %v3188 = vpop.f32.mrb[0].mxu0
  %v3189 = vadd.f32 %v2996, %v3188
  %v3190 = vpop.f32.mrb[0].mxu0
  %v3191 = vadd.f32 %v2998, %v3190
  %v3192 = vpop.f32.mrb[0].mxu0
  %v3193 = vadd.f32 %v3000, %v3192
  %3194 = vmatprep.mubr.bf16.mxu0 %v745
  %3195 = vmatmul.mubr.bf16.gmra.mrb[0].mxu0 %v744
  %v3196 = vpop.f32.mrb[0].mxu0
  %v3197 = vadd.f32 %v3004, %v3196
  %v3198 = vpop.f32.mrb[0].mxu0
  %v3199 = vadd.f32 %v3006, %v3198
  %v3200 = vpop.f32.mrb[0].mxu0
  %v3201 = vadd.f32 %v3008, %v3200
  %v3202 = vpop.f32.mrb[0].mxu0
  %v3203 = vadd.f32 %v3010, %v3202
  %3204 = vmatprep.mubr.bf16.mxu0 %v751
  %3205 = vmatmul.mubr.bf16.gmra.mrb[0].mxu0 %v750
  %v3206 = vpop.f32.mrb[0].mxu0
  %v3207 = vadd.f32 %v3014, %v3206
  %v3208 = vpop.f32.mrb[0].mxu0
  %v3209 = vadd.f32 %v3016, %v3208
  %v3210 = vpop.f32.mrb[0].mxu0
  %v3211 = vadd.f32 %v3018, %v3210
  %v3212 = vpop.f32.mrb[0].mxu0
  %v3213 = vadd.f32 %v3020, %v3212
  %3214 = vmatprep.mubr.bf16.mxu0 %v757
  %3215 = vmatmul.mubr.bf16.gmra.mrb[0].mxu0 %v756
  %v3216 = vpop.f32.mrb[0].mxu0
  %v3217 = vadd.f32 %v3024, %v3216
  %v3218 = vpop.f32.mrb[0].mxu0
  %v3219 = vadd.f32 %v3026, %v3218
  %v3220 = vpop.f32.mrb[0].mxu0
  %v3221 = vadd.f32 %v3028, %v3220
  %v3222 = vpop.f32.mrb[0].mxu0
  %v3223 = vadd.f32 %v3030, %v3222
  %3224 = vmatprep.mubr.bf16.mxu0 %v763
  %3225 = vmatmul.mubr.bf16.gmra.mrb[0].mxu0 %v762
  %v3226 = vpop.f32.mrb[0].mxu0
  %v3227 = vadd.f32 %v3034, %v3226
  %v3228 = vpop.f32.mrb[0].mxu0
  %v3229 = vadd.f32 %v3036, %v3228
  %v3230 = vpop.f32.mrb[0].mxu0
  %v3231 = vadd.f32 %v3038, %v3230
  %v3232 = vpop.f32.mrb[0].mxu0
  %v3233 = vadd.f32 %v3040, %v3232
  %3234 = vmatprep.mubr.bf16.mxu0 %v769
  %3235 = vmatmul.mubr.bf16.gmra.mrb[0].mxu0 %v768
  %v3236 = vpop.f32.mrb[0].mxu0
  %v3237 = vadd.f32 %v3044, %v3236
  %v3238 = vpop.f32.mrb[0].mxu0
  %v3239 = vadd.f32 %v3046, %v3238
  %v3240 = vpop.f32.mrb[0].mxu0
  %v3241 = vadd.f32 %v3048, %v3240
  %v3242 = vpop.f32.mrb[0].mxu0
  %v3243 = vadd.f32 %v3050, %v3242
  %3244 = vmatprep.mubr.bf16.mxu0 %v775
  %3245 = vmatmul.mubr.bf16.gmra.mrb[0].mxu0 %v774
  %v3246 = vpop.f32.mrb[0].mxu0
  %v3247 = vadd.f32 %v3054, %v3246
  %v3248 = vpop.f32.mrb[0].mxu0
  %v3249 = vadd.f32 %v3056, %v3248
  %v3250 = vpop.f32.mrb[0].mxu0
  %v3251 = vadd.f32 %v3058, %v3250
  %v3252 = vpop.f32.mrb[0].mxu0
  %v3253 = vadd.f32 %v3060, %v3252
  %3254 = vmatprep.mubr.bf16.mxu0 %v781
  %3255 = vmatmul.mubr.bf16.gmra.mrb[0].mxu0 %v780
  %v3256 = vpop.f32.mrb[0].mxu0
  %v3257 = vadd.f32 %v3064, %v3256
  %v3258 = vpop.f32.mrb[0].mxu0
  %v3259 = vadd.f32 %v3066, %v3258
  %v3260 = vpop.f32.mrb[0].mxu0
  %v3261 = vadd.f32 %v3068, %v3260
  %v3262 = vpop.f32.mrb[0].mxu0
  %v3263 = vadd.f32 %v3070, %v3262
  %3264 = vmatprep.mubr.bf16.mxu0 %v787
  %3265 = vmatmul.mubr.bf16.gmra.mrb[0].mxu0 %v786
  %v3266 = vpop.f32.mrb[0].mxu0
  %v3267 = vadd.f32 %v3074, %v3266
  %v3268 = vpop.f32.mrb[0].mxu0
  %v3269 = vadd.f32 %v3076, %v3268
  %v3270 = vpop.f32.mrb[0].mxu0
  %v3271 = vadd.f32 %v3078, %v3270
  %v3272 = vpop.f32.mrb[0].mxu0
  %v3273 = vadd.f32 %v3080, %v3272
  %3274 = vmatprep.mubr.bf16.mxu0 %v793
  %3275 = vmatmul.mubr.bf16.gmra.mrb[0].mxu0 %v792
  %v3276 = vpop.f32.mrb[0].mxu0
  %v3277 = vadd.f32 %v3084, %v3276
  %v3278 = vpop.f32.mrb[0].mxu0
  %v3279 = vadd.f32 %v3086, %v3278
  %v3280 = vpop.f32.mrb[0].mxu0
  %v3281 = vadd.f32 %v3088, %v3280
  %v3282 = vpop.f32.mrb[0].mxu0
  %v3283 = vadd.f32 %v3090, %v3282
  %3284 = vmatprep.mubr.bf16.mxu0 %v799
  %3285 = vmatmul.mubr.bf16.gmra.mrb[0].mxu0 %v798
  %v3286 = vpop.f32.mrb[0].mxu0
  %v3287 = vadd.f32 %v3094, %v3286
  %v3288 = vpop.f32.mrb[0].mxu0
  %v3289 = vadd.f32 %v3096, %v3288
  %v3290 = vpop.f32.mrb[0].mxu0
  %v3291 = vadd.f32 %v3098, %v3290
  %v3292 = vpop.f32.mrb[0].mxu0
  %v3293 = vadd.f32 %v3100, %v3292
  %3294 = vmatprep.mubr.bf16.mxu0 %v805
  %3295 = vmatmul.mubr.bf16.gmra.mrb[0].mxu0 %v804
  %v3296 = vpop.f32.mrb[0].mxu0
  %v3297 = vadd.f32 %v3104, %v3296
  %v3298 = vpop.f32.mrb[0].mxu0
  %v3299 = vadd.f32 %v3106, %v3298
  %v3300 = vpop.f32.mrb[0].mxu0
  %v3301 = vadd.f32 %v3108, %v3300
  %v3302 = vpop.f32.mrb[0].mxu0
  %v3303 = vadd.f32 %v3110, %v3302
  %3304 = vmatprep.mubr.bf16.mxu0 %v811
  %3305 = vmatmul.mubr.bf16.gmra.mrb[0].mxu0 %v810
  %v3306 = vpop.f32.mrb[0].mxu0
  %v3307 = vadd.f32 %v3114, %v3306
  %v3308 = vpop.f32.mrb[0].mxu0
  %v3309 = vadd.f32 %v3116, %v3308
  %v3310 = vpop.f32.mrb[0].mxu0
  %v3311 = vadd.f32 %v3118, %v3310
  %v3312 = vpop.f32.mrb[0].mxu0
  %v3313 = vadd.f32 %v3120, %v3312
  %3314 = vdwg.mxu0
  %3315 = vmatprep.subr.bf16.mxu0 %v1875
  %3316 = vmatpush1.bf16.xpose.msra.mxu0 %v1874
  %3317 = vmatprep.subr.bf16.mxu0 %v1881
  %3318 = vmatpush1.bf16.xpose.msra.mxu0 %v1880
  %3319 = vmatprep.subr.bf16.mxu0 %v1887
  %3320 = vmatpush1.bf16.xpose.msra.mxu0 %v1886
  %3321 = vmatprep.subr.bf16.mxu0 %v1893
  %3322 = vmatpush1.bf16.xpose.msra.mxu0 %v1892
  %3323 = vmatprep.subr.bf16.mxu0 %v1899
  %3324 = vmatpush1.bf16.xpose.msra.mxu0 %v1898
  %3325 = vmatprep.subr.bf16.mxu0 %v1905
  %3326 = vmatpush1.bf16.xpose.msra.mxu0 %v1904
  %3327 = vmatprep.subr.bf16.mxu0 %v1911
  %3328 = vmatpush1.bf16.xpose.msra.mxu0 %v1910
  %3329 = vmatprep.subr.bf16.mxu0 %v1917
  %3330 = vmatpush1.bf16.xpose.msra.mxu0 %v1916
  %3331 = vmatprep.subr.bf16.mxu0 %v1923
  %3332 = vmatpush1.bf16.xpose.msra.mxu0 %v1922
  %3333 = vmatprep.subr.bf16.mxu0 %v1929
  %3334 = vmatpush1.bf16.xpose.msra.mxu0 %v1928
  %3335 = vmatprep.subr.bf16.mxu0 %v1935
  %3336 = vmatpush1.bf16.xpose.msra.mxu0 %v1934
  %3337 = vmatprep.subr.bf16.mxu0 %v1941
  %3338 = vmatpush1.bf16.xpose.msra.mxu0 %v1940
  %3339 = vmatprep.subr.bf16.mxu0 %v1947
  %3340 = vmatpush1.bf16.xpose.msra.mxu0 %v1946
  %3341 = vmatprep.subr.bf16.mxu0 %v1953
  %3342 = vmatpush1.bf16.xpose.msra.mxu0 %v1952
  %3343 = vmatprep.subr.bf16.mxu0 %v1959
  %3344 = vmatpush1.bf16.xpose.msra.mxu0 %v1958
  %3345 = vmatprep.subr.bf16.mxu0 %v1965
  %3346 = vmatpush1.bf16.xpose.msra.mxu0 %v1964
  %3347 = vmatprep.mubr.bf16.mxu0 %v723
  %3348 = vmatmul.mubr.bf16.gmra.mrb[0].mxu0 %v722
  %v3349 = vpop.f32.mrb[0].mxu0
  %v3350 = vadd.f32 %v3157, %v3349
  %v3351 = vpop.f32.mrb[0].mxu0
  %v3352 = vadd.f32 %v3159, %v3351
  %v3353 = vpop.f32.mrb[0].mxu0
  %v3354 = vadd.f32 %v3161, %v3353
  %v3355 = vpop.f32.mrb[0].mxu0
  %v3356 = vadd.f32 %v3163, %v3355
  %3357 = vmatprep.mubr.bf16.mxu0 %v729
  %3358 = vmatmul.mubr.bf16.gmra.mrb[0].mxu0 %v728
  %v3359 = vpop.f32.mrb[0].mxu0
  %v3360 = vadd.f32 %v3167, %v3359
  %v3361 = vpop.f32.mrb[0].mxu0
  %v3362 = vadd.f32 %v3169, %v3361
  %v3363 = vpop.f32.mrb[0].mxu0
  %v3364 = vadd.f32 %v3171, %v3363
  %v3365 = vpop.f32.mrb[0].mxu0
  %v3366 = vadd.f32 %v3173, %v3365
  %3367 = vmatprep.mubr.bf16.mxu0 %v735
  %3368 = vmatmul.mubr.bf16.gmra.mrb[0].mxu0 %v734
  %v3369 = vpop.f32.mrb[0].mxu0
  %v3370 = vadd.f32 %v3177, %v3369
  %v3371 = vpop.f32.mrb[0].mxu0
  %v3372 = vadd.f32 %v3179, %v3371
  %v3373 = vpop.f32.mrb[0].mxu0
  %v3374 = vadd.f32 %v3181, %v3373
  %v3375 = vpop.f32.mrb[0].mxu0
  %v3376 = vadd.f32 %v3183, %v3375
  %3377 = vmatprep.mubr.bf16.mxu0 %v741
  %3378 = vmatmul.mubr.bf16.gmra.mrb[0].mxu0 %v740
  %v3379 = vpop.f32.mrb[0].mxu0
  %v3380 = vadd.f32 %v3187, %v3379
  %v3381 = vpop.f32.mrb[0].mxu0
  %v3382 = vadd.f32 %v3189, %v3381
  %v3383 = vpop.f32.mrb[0].mxu0
  %v3384 = vadd.f32 %v3191, %v3383
  %v3385 = vpop.f32.mrb[0].mxu0
  %v3386 = vadd.f32 %v3193, %v3385
  %3387 = vmatprep.mubr.bf16.mxu0 %v747
  %3388 = vmatmul.mubr.bf16.gmra.mrb[0].mxu0 %v746
  %v3389 = vpop.f32.mrb[0].mxu0
  %v3390 = vadd.f32 %v3197, %v3389
  %v3391 = vpop.f32.mrb[0].mxu0
  %v3392 = vadd.f32 %v3199, %v3391
  %v3393 = vpop.f32.mrb[0].mxu0
  %v3394 = vadd.f32 %v3201, %v3393
  %v3395 = vpop.f32.mrb[0].mxu0
  %v3396 = vadd.f32 %v3203, %v3395
  %3397 = vmatprep.mubr.bf16.mxu0 %v753
  %3398 = vmatmul.mubr.bf16.gmra.mrb[0].mxu0 %v752
  %v3399 = vpop.f32.mrb[0].mxu0
  %v3400 = vadd.f32 %v3207, %v3399
  %v3401 = vpop.f32.mrb[0].mxu0
  %v3402 = vadd.f32 %v3209, %v3401
  %v3403 = vpop.f32.mrb[0].mxu0
  %v3404 = vadd.f32 %v3211, %v3403
  %v3405 = vpop.f32.mrb[0].mxu0
  %v3406 = vadd.f32 %v3213, %v3405
  %3407 = vmatprep.mubr.bf16.mxu0 %v759
  %3408 = vmatmul.mubr.bf16.gmra.mrb[0].mxu0 %v758
  %v3409 = vpop.f32.mrb[0].mxu0
  %v3410 = vadd.f32 %v3217, %v3409
  %v3411 = vpop.f32.mrb[0].mxu0
  %v3412 = vadd.f32 %v3219, %v3411
  %v3413 = vpop.f32.mrb[0].mxu0
  %v3414 = vadd.f32 %v3221, %v3413
  %v3415 = vpop.f32.mrb[0].mxu0
  %v3416 = vadd.f32 %v3223, %v3415
  %3417 = vmatprep.mubr.bf16.mxu0 %v765
  %3418 = vmatmul.mubr.bf16.gmra.mrb[0].mxu0 %v764
  %v3419 = vpop.f32.mrb[0].mxu0
  %v3420 = vadd.f32 %v3227, %v3419
  %v3421 = vpop.f32.mrb[0].mxu0
  %v3422 = vadd.f32 %v3229, %v3421
  %v3423 = vpop.f32.mrb[0].mxu0
  %v3424 = vadd.f32 %v3231, %v3423
  %v3425 = vpop.f32.mrb[0].mxu0
  %v3426 = vadd.f32 %v3233, %v3425
  %3427 = vmatprep.mubr.bf16.mxu0 %v771
  %3428 = vmatmul.mubr.bf16.gmra.mrb[0].mxu0 %v770
  %v3429 = vpop.f32.mrb[0].mxu0
  %v3430 = vadd.f32 %v3237, %v3429
  %v3431 = vpop.f32.mrb[0].mxu0
  %v3432 = vadd.f32 %v3239, %v3431
  %v3433 = vpop.f32.mrb[0].mxu0
  %v3434 = vadd.f32 %v3241, %v3433
  %v3435 = vpop.f32.mrb[0].mxu0
  %v3436 = vadd.f32 %v3243, %v3435
  %3437 = vmatprep.mubr.bf16.mxu0 %v777
  %3438 = vmatmul.mubr.bf16.gmra.mrb[0].mxu0 %v776
  %v3439 = vpop.f32.mrb[0].mxu0
  %v3440 = vadd.f32 %v3247, %v3439
  %v3441 = vpop.f32.mrb[0].mxu0
  %v3442 = vadd.f32 %v3249, %v3441
  %v3443 = vpop.f32.mrb[0].mxu0
  %v3444 = vadd.f32 %v3251, %v3443
  %v3445 = vpop.f32.mrb[0].mxu0
  %v3446 = vadd.f32 %v3253, %v3445
  %3447 = vmatprep.mubr.bf16.mxu0 %v783
  %3448 = vmatmul.mubr.bf16.gmra.mrb[0].mxu0 %v782
  %v3449 = vpop.f32.mrb[0].mxu0
  %v3450 = vadd.f32 %v3257, %v3449
  %v3451 = vpop.f32.mrb[0].mxu0
  %v3452 = vadd.f32 %v3259, %v3451
  %v3453 = vpop.f32.mrb[0].mxu0
  %v3454 = vadd.f32 %v3261, %v3453
  %v3455 = vpop.f32.mrb[0].mxu0
  %v3456 = vadd.f32 %v3263, %v3455
  %3457 = vmatprep.mubr.bf16.mxu0 %v789
  %3458 = vmatmul.mubr.bf16.gmra.mrb[0].mxu0 %v788
  %v3459 = vpop.f32.mrb[0].mxu0
  %v3460 = vadd.f32 %v3267, %v3459
  %v3461 = vpop.f32.mrb[0].mxu0
  %v3462 = vadd.f32 %v3269, %v3461
  %v3463 = vpop.f32.mrb[0].mxu0
  %v3464 = vadd.f32 %v3271, %v3463
  %v3465 = vpop.f32.mrb[0].mxu0
  %v3466 = vadd.f32 %v3273, %v3465
  %3467 = vmatprep.mubr.bf16.mxu0 %v795
  %3468 = vmatmul.mubr.bf16.gmra.mrb[0].mxu0 %v794
  %v3469 = vpop.f32.mrb[0].mxu0
  %v3470 = vadd.f32 %v3277, %v3469
  %v3471 = vpop.f32.mrb[0].mxu0
  %v3472 = vadd.f32 %v3279, %v3471
  %v3473 = vpop.f32.mrb[0].mxu0
  %v3474 = vadd.f32 %v3281, %v3473
  %v3475 = vpop.f32.mrb[0].mxu0
  %v3476 = vadd.f32 %v3283, %v3475
  %3477 = vmatprep.mubr.bf16.mxu0 %v801
  %3478 = vmatmul.mubr.bf16.gmra.mrb[0].mxu0 %v800
  %v3479 = vpop.f32.mrb[0].mxu0
  %v3480 = vadd.f32 %v3287, %v3479
  %v3481 = vpop.f32.mrb[0].mxu0
  %v3482 = vadd.f32 %v3289, %v3481
  %v3483 = vpop.f32.mrb[0].mxu0
  %v3484 = vadd.f32 %v3291, %v3483
  %v3485 = vpop.f32.mrb[0].mxu0
  %v3486 = vadd.f32 %v3293, %v3485
  %3487 = vmatprep.mubr.bf16.mxu0 %v807
  %3488 = vmatmul.mubr.bf16.gmra.mrb[0].mxu0 %v806
  %v3489 = vpop.f32.mrb[0].mxu0
  %v3490 = vadd.f32 %v3297, %v3489
  %v3491 = vpop.f32.mrb[0].mxu0
  %v3492 = vadd.f32 %v3299, %v3491
  %v3493 = vpop.f32.mrb[0].mxu0
  %v3494 = vadd.f32 %v3301, %v3493
  %v3495 = vpop.f32.mrb[0].mxu0
  %v3496 = vadd.f32 %v3303, %v3495
  %3497 = vmatprep.mubr.bf16.mxu0 %v813
  %3498 = vmatmul.mubr.bf16.gmra.mrb[0].mxu0 %v812
  %v3499 = vpop.f32.mrb[0].mxu0
  %v3500 = vadd.f32 %v3307, %v3499
  %v3501 = vpop.f32.mrb[0].mxu0
  %v3502 = vadd.f32 %v3309, %v3501
  %v3503 = vpop.f32.mrb[0].mxu0
  %v3504 = vadd.f32 %v3311, %v3503
  %v3505 = vpop.f32.mrb[0].mxu0
  %v3506 = vadd.f32 %v3313, %v3505
  %3507 = vdwg.mxu0
  %3508 = vmatprep.subr.bf16.mxu0 %v1967
  %3509 = vmatpush1.bf16.xpose.msra.mxu0 %v1966
  %3510 = vmatprep.subr.bf16.mxu0 %v1973
  %3511 = vmatpush1.bf16.xpose.msra.mxu0 %v1972
  %3512 = vmatprep.subr.bf16.mxu0 %v1979
  %3513 = vmatpush1.bf16.xpose.msra.mxu0 %v1978
  %3514 = vmatprep.subr.bf16.mxu0 %v1985
  %3515 = vmatpush1.bf16.xpose.msra.mxu0 %v1984
  %3516 = vmatprep.subr.bf16.mxu0 %v1991
  %3517 = vmatpush1.bf16.xpose.msra.mxu0 %v1990
  %3518 = vmatprep.subr.bf16.mxu0 %v1997
  %3519 = vmatpush1.bf16.xpose.msra.mxu0 %v1996
  %3520 = vmatprep.subr.bf16.mxu0 %v2003
  %3521 = vmatpush1.bf16.xpose.msra.mxu0 %v2002
  %3522 = vmatprep.subr.bf16.mxu0 %v2009
  %3523 = vmatpush1.bf16.xpose.msra.mxu0 %v2008
  %3524 = vmatprep.subr.bf16.mxu0 %v2015
  %3525 = vmatpush1.bf16.xpose.msra.mxu0 %v2014
  %3526 = vmatprep.subr.bf16.mxu0 %v2021
  %3527 = vmatpush1.bf16.xpose.msra.mxu0 %v2020
  %3528 = vmatprep.subr.bf16.mxu0 %v2027
  %3529 = vmatpush1.bf16.xpose.msra.mxu0 %v2026
  %3530 = vmatprep.subr.bf16.mxu0 %v2033
  %3531 = vmatpush1.bf16.xpose.msra.mxu0 %v2032
  %3532 = vmatprep.subr.bf16.mxu0 %v2039
  %3533 = vmatpush1.bf16.xpose.msra.mxu0 %v2038
  %3534 = vmatprep.subr.bf16.mxu0 %v2045
  %3535 = vmatpush1.bf16.xpose.msra.mxu0 %v2044
  %3536 = vmatprep.subr.bf16.mxu0 %v2051
  %3537 = vmatpush1.bf16.xpose.msra.mxu0 %v2050
  %3538 = vmatprep.subr.bf16.mxu0 %v2057
  %3539 = vmatpush1.bf16.xpose.msra.mxu0 %v2056
  %3540 = vmatprep.mubr.bf16.mxu0 %v719
  %3541 = vmatmul.mubr.bf16.gmra.mrb[0].mxu0 %v718
  %v3542 = vpop.f32.mrb[0].mxu0
  %v3543 = vadd.f32 %v419, %v3542
  %v3544 = vpop.f32.mrb[0].mxu0
  %v3545 = vadd.f32 %v423, %v3544
  %v3546 = vpop.f32.mrb[0].mxu0
  %v3547 = vadd.f32 %v419, %v3546
  %v3548 = vpop.f32.mrb[0].mxu0
  %v3549 = vadd.f32 %v423, %v3548
  %3550 = vmatprep.mubr.bf16.mxu0 %v725
  %3551 = vmatmul.mubr.bf16.gmra.mrb[0].mxu0 %v724
  %v3552 = vpop.f32.mrb[0].mxu0
  %v3553 = vadd.f32 %v419, %v3552
  %v3554 = vpop.f32.mrb[0].mxu0
  %v3555 = vadd.f32 %v423, %v3554
  %v3556 = vpop.f32.mrb[0].mxu0
  %v3557 = vadd.f32 %v419, %v3556
  %v3558 = vpop.f32.mrb[0].mxu0
  %v3559 = vadd.f32 %v423, %v3558
  %3560 = vmatprep.mubr.bf16.mxu0 %v731
  %3561 = vmatmul.mubr.bf16.gmra.mrb[0].mxu0 %v730
  %v3562 = vpop.f32.mrb[0].mxu0
  %v3563 = vadd.f32 %v419, %v3562
  %v3564 = vpop.f32.mrb[0].mxu0
  %v3565 = vadd.f32 %v423, %v3564
  %v3566 = vpop.f32.mrb[0].mxu0
  %v3567 = vadd.f32 %v419, %v3566
  %v3568 = vpop.f32.mrb[0].mxu0
  %v3569 = vadd.f32 %v423, %v3568
  %3570 = vmatprep.mubr.bf16.mxu0 %v737
  %3571 = vmatmul.mubr.bf16.gmra.mrb[0].mxu0 %v736
  %v3572 = vpop.f32.mrb[0].mxu0
  %v3573 = vadd.f32 %v419, %v3572
  %v3574 = vpop.f32.mrb[0].mxu0
  %v3575 = vadd.f32 %v423, %v3574
  %v3576 = vpop.f32.mrb[0].mxu0
  %v3577 = vadd.f32 %v419, %v3576
  %v3578 = vpop.f32.mrb[0].mxu0
  %v3579 = vadd.f32 %v423, %v3578
  %3580 = vmatprep.mubr.bf16.mxu0 %v743
  %3581 = vmatmul.mubr.bf16.gmra.mrb[0].mxu0 %v742
  %v3582 = vpop.f32.mrb[0].mxu0
  %v3583 = vadd.f32 %v419, %v3582
  %v3584 = vpop.f32.mrb[0].mxu0
  %v3585 = vadd.f32 %v423, %v3584
  %v3586 = vpop.f32.mrb[0].mxu0
  %v3587 = vadd.f32 %v419, %v3586
  %v3588 = vpop.f32.mrb[0].mxu0
  %v3589 = vadd.f32 %v423, %v3588
  %3590 = vmatprep.mubr.bf16.mxu0 %v749
  %3591 = vmatmul.mubr.bf16.gmra.mrb[0].mxu0 %v748
  %v3592 = vpop.f32.mrb[0].mxu0
  %v3593 = vadd.f32 %v419, %v3592
  %v3594 = vpop.f32.mrb[0].mxu0
  %v3595 = vadd.f32 %v423, %v3594
  %v3596 = vpop.f32.mrb[0].mxu0
  %v3597 = vadd.f32 %v419, %v3596
  %v3598 = vpop.f32.mrb[0].mxu0
  %v3599 = vadd.f32 %v423, %v3598
  %3600 = vmatprep.mubr.bf16.mxu0 %v755
  %3601 = vmatmul.mubr.bf16.gmra.mrb[0].mxu0 %v754
  %v3602 = vpop.f32.mrb[0].mxu0
  %v3603 = vadd.f32 %v419, %v3602
  %v3604 = vpop.f32.mrb[0].mxu0
  %v3605 = vadd.f32 %v423, %v3604
  %v3606 = vpop.f32.mrb[0].mxu0
  %v3607 = vadd.f32 %v419, %v3606
  %v3608 = vpop.f32.mrb[0].mxu0
  %v3609 = vadd.f32 %v423, %v3608
  %3610 = vmatprep.mubr.bf16.mxu0 %v761
  %3611 = vmatmul.mubr.bf16.gmra.mrb[0].mxu0 %v760
  %v3612 = vpop.f32.mrb[0].mxu0
  %v3613 = vadd.f32 %v419, %v3612
  %v3614 = vpop.f32.mrb[0].mxu0
  %v3615 = vadd.f32 %v423, %v3614
  %v3616 = vpop.f32.mrb[0].mxu0
  %v3617 = vadd.f32 %v419, %v3616
  %v3618 = vpop.f32.mrb[0].mxu0
  %v3619 = vadd.f32 %v423, %v3618
  %3620 = vmatprep.mubr.bf16.mxu0 %v767
  %3621 = vmatmul.mubr.bf16.gmra.mrb[0].mxu0 %v766
  %v3622 = vpop.f32.mrb[0].mxu0
  %v3623 = vadd.f32 %v419, %v3622
  %v3624 = vpop.f32.mrb[0].mxu0
  %v3625 = vadd.f32 %v423, %v3624
  %v3626 = vpop.f32.mrb[0].mxu0
  %v3627 = vadd.f32 %v419, %v3626
  %v3628 = vpop.f32.mrb[0].mxu0
  %v3629 = vadd.f32 %v423, %v3628
  %3630 = vmatprep.mubr.bf16.mxu0 %v773
  %3631 = vmatmul.mubr.bf16.gmra.mrb[0].mxu0 %v772
  %v3632 = vpop.f32.mrb[0].mxu0
  %v3633 = vadd.f32 %v419, %v3632
  %v3634 = vpop.f32.mrb[0].mxu0
  %v3635 = vadd.f32 %v423, %v3634
  %v3636 = vpop.f32.mrb[0].mxu0
  %v3637 = vadd.f32 %v419, %v3636
  %v3638 = vpop.f32.mrb[0].mxu0
  %v3639 = vadd.f32 %v423, %v3638
  %3640 = vmatprep.mubr.bf16.mxu0 %v779
  %3641 = vmatmul.mubr.bf16.gmra.mrb[0].mxu0 %v778
  %v3642 = vpop.f32.mrb[0].mxu0
  %v3643 = vadd.f32 %v419, %v3642
  %v3644 = vpop.f32.mrb[0].mxu0
  %v3645 = vadd.f32 %v423, %v3644
  %v3646 = vpop.f32.mrb[0].mxu0
  %v3647 = vadd.f32 %v419, %v3646
  %v3648 = vpop.f32.mrb[0].mxu0
  %v3649 = vadd.f32 %v423, %v3648
  %3650 = vmatprep.mubr.bf16.mxu0 %v785
  %3651 = vmatmul.mubr.bf16.gmra.mrb[0].mxu0 %v784
  %v3652 = vpop.f32.mrb[0].mxu0
  %v3653 = vadd.f32 %v419, %v3652
  %v3654 = vpop.f32.mrb[0].mxu0
  %v3655 = vadd.f32 %v423, %v3654
  %v3656 = vpop.f32.mrb[0].mxu0
  %v3657 = vadd.f32 %v419, %v3656
  %v3658 = vpop.f32.mrb[0].mxu0
  %v3659 = vadd.f32 %v423, %v3658
  %3660 = vmatprep.mubr.bf16.mxu0 %v791
  %3661 = vmatmul.mubr.bf16.gmra.mrb[0].mxu0 %v790
  %v3662 = vpop.f32.mrb[0].mxu0
  %v3663 = vadd.f32 %v419, %v3662
  %v3664 = vpop.f32.mrb[0].mxu0
  %v3665 = vadd.f32 %v423, %v3664
  %v3666 = vpop.f32.mrb[0].mxu0
  %v3667 = vadd.f32 %v419, %v3666
  %v3668 = vpop.f32.mrb[0].mxu0
  %v3669 = vadd.f32 %v423, %v3668
  %3670 = vmatprep.mubr.bf16.mxu0 %v797
  %3671 = vmatmul.mubr.bf16.gmra.mrb[0].mxu0 %v796
  %v3672 = vpop.f32.mrb[0].mxu0
  %v3673 = vadd.f32 %v419, %v3672
  %v3674 = vpop.f32.mrb[0].mxu0
  %v3675 = vadd.f32 %v423, %v3674
  %v3676 = vpop.f32.mrb[0].mxu0
  %v3677 = vadd.f32 %v419, %v3676
  %v3678 = vpop.f32.mrb[0].mxu0
  %v3679 = vadd.f32 %v423, %v3678
  %3680 = vmatprep.mubr.bf16.mxu0 %v803
  %3681 = vmatmul.mubr.bf16.gmra.mrb[0].mxu0 %v802
  %v3682 = vpop.f32.mrb[0].mxu0
  %v3683 = vadd.f32 %v419, %v3682
  %v3684 = vpop.f32.mrb[0].mxu0
  %v3685 = vadd.f32 %v423, %v3684
  %v3686 = vpop.f32.mrb[0].mxu0
  %v3687 = vadd.f32 %v419, %v3686
  %v3688 = vpop.f32.mrb[0].mxu0
  %v3689 = vadd.f32 %v423, %v3688
  %3690 = vmatprep.mubr.bf16.mxu0 %v809
  %3691 = vmatmul.mubr.bf16.gmra.mrb[0].mxu0 %v808
  %v3692 = vpop.f32.mrb[0].mxu0
  %v3693 = vadd.f32 %v419, %v3692
  %v3694 = vpop.f32.mrb[0].mxu0
  %v3695 = vadd.f32 %v423, %v3694
  %v3696 = vpop.f32.mrb[0].mxu0
  %v3697 = vadd.f32 %v419, %v3696
  %v3698 = vpop.f32.mrb[0].mxu0
  %v3699 = vadd.f32 %v423, %v3698
  %3700 = vdwg.mxu0
  %3701 = vmatprep.subr.bf16.mxu0 %v1969
  %3702 = vmatpush1.bf16.xpose.msra.mxu0 %v1968
  %3703 = vmatprep.subr.bf16.mxu0 %v1975
  %3704 = vmatpush1.bf16.xpose.msra.mxu0 %v1974
  %3705 = vmatprep.subr.bf16.mxu0 %v1981
  %3706 = vmatpush1.bf16.xpose.msra.mxu0 %v1980
  %3707 = vmatprep.subr.bf16.mxu0 %v1987
  %3708 = vmatpush1.bf16.xpose.msra.mxu0 %v1986
  %3709 = vmatprep.subr.bf16.mxu0 %v1993
  %3710 = vmatpush1.bf16.xpose.msra.mxu0 %v1992
  %3711 = vmatprep.subr.bf16.mxu0 %v1999
  %3712 = vmatpush1.bf16.xpose.msra.mxu0 %v1998
  %3713 = vmatprep.subr.bf16.mxu0 %v2005
  %3714 = vmatpush1.bf16.xpose.msra.mxu0 %v2004
  %3715 = vmatprep.subr.bf16.mxu0 %v2011
  %3716 = vmatpush1.bf16.xpose.msra.mxu0 %v2010
  %3717 = vmatprep.subr.bf16.mxu0 %v2017
  %3718 = vmatpush1.bf16.xpose.msra.mxu0 %v2016
  %3719 = vmatprep.subr.bf16.mxu0 %v2023
  %3720 = vmatpush1.bf16.xpose.msra.mxu0 %v2022
  %3721 = vmatprep.subr.bf16.mxu0 %v2029
  %3722 = vmatpush1.bf16.xpose.msra.mxu0 %v2028
  %3723 = vmatprep.subr.bf16.mxu0 %v2035
  %3724 = vmatpush1.bf16.xpose.msra.mxu0 %v2034
  %3725 = vmatprep.subr.bf16.mxu0 %v2041
  %3726 = vmatpush1.bf16.xpose.msra.mxu0 %v2040
  %3727 = vmatprep.subr.bf16.mxu0 %v2047
  %3728 = vmatpush1.bf16.xpose.msra.mxu0 %v2046
  %3729 = vmatprep.subr.bf16.mxu0 %v2053
  %3730 = vmatpush1.bf16.xpose.msra.mxu0 %v2052
  %3731 = vmatprep.subr.bf16.mxu0 %v2059
  %3732 = vmatpush1.bf16.xpose.msra.mxu0 %v2058
  %3733 = vmatprep.mubr.bf16.mxu0 %v721
  %3734 = vmatmul.mubr.bf16.gmra.mrb[0].mxu0 %v720
  %v3735 = vpop.f32.mrb[0].mxu0
  %v3736 = vadd.f32 %v3543, %v3735
  %v3737 = vpop.f32.mrb[0].mxu0
  %v3738 = vadd.f32 %v3545, %v3737
  %v3739 = vpop.f32.mrb[0].mxu0
  %v3740 = vadd.f32 %v3547, %v3739
  %v3741 = vpop.f32.mrb[0].mxu0
  %v3742 = vadd.f32 %v3549, %v3741
  %3743 = vmatprep.mubr.bf16.mxu0 %v727
  %3744 = vmatmul.mubr.bf16.gmra.mrb[0].mxu0 %v726
  %v3745 = vpop.f32.mrb[0].mxu0
  %v3746 = vadd.f32 %v3553, %v3745
  %v3747 = vpop.f32.mrb[0].mxu0
  %v3748 = vadd.f32 %v3555, %v3747
  %v3749 = vpop.f32.mrb[0].mxu0
  %v3750 = vadd.f32 %v3557, %v3749
  %v3751 = vpop.f32.mrb[0].mxu0
  %v3752 = vadd.f32 %v3559, %v3751
  %3753 = vmatprep.mubr.bf16.mxu0 %v733
  %3754 = vmatmul.mubr.bf16.gmra.mrb[0].mxu0 %v732
  %v3755 = vpop.f32.mrb[0].mxu0
  %v3756 = vadd.f32 %v3563, %v3755
  %v3757 = vpop.f32.mrb[0].mxu0
  %v3758 = vadd.f32 %v3565, %v3757
  %v3759 = vpop.f32.mrb[0].mxu0
  %v3760 = vadd.f32 %v3567, %v3759
  %v3761 = vpop.f32.mrb[0].mxu0
  %v3762 = vadd.f32 %v3569, %v3761
  %3763 = vmatprep.mubr.bf16.mxu0 %v739
  %3764 = vmatmul.mubr.bf16.gmra.mrb[0].mxu0 %v738
  %v3765 = vpop.f32.mrb[0].mxu0
  %v3766 = vadd.f32 %v3573, %v3765
  %v3767 = vpop.f32.mrb[0].mxu0
  %v3768 = vadd.f32 %v3575, %v3767
  %v3769 = vpop.f32.mrb[0].mxu0
  %v3770 = vadd.f32 %v3577, %v3769
  %v3771 = vpop.f32.mrb[0].mxu0
  %v3772 = vadd.f32 %v3579, %v3771
  %3773 = vmatprep.mubr.bf16.mxu0 %v745
  %3774 = vmatmul.mubr.bf16.gmra.mrb[0].mxu0 %v744
  %v3775 = vpop.f32.mrb[0].mxu0
  %v3776 = vadd.f32 %v3583, %v3775
  %v3777 = vpop.f32.mrb[0].mxu0
  %v3778 = vadd.f32 %v3585, %v3777
  %v3779 = vpop.f32.mrb[0].mxu0
  %v3780 = vadd.f32 %v3587, %v3779
  %v3781 = vpop.f32.mrb[0].mxu0
  %v3782 = vadd.f32 %v3589, %v3781
  %3783 = vmatprep.mubr.bf16.mxu0 %v751
  %3784 = vmatmul.mubr.bf16.gmra.mrb[0].mxu0 %v750
  %v3785 = vpop.f32.mrb[0].mxu0
  %v3786 = vadd.f32 %v3593, %v3785
  %v3787 = vpop.f32.mrb[0].mxu0
  %v3788 = vadd.f32 %v3595, %v3787
  %v3789 = vpop.f32.mrb[0].mxu0
  %v3790 = vadd.f32 %v3597, %v3789
  %v3791 = vpop.f32.mrb[0].mxu0
  %v3792 = vadd.f32 %v3599, %v3791
  %3793 = vmatprep.mubr.bf16.mxu0 %v757
  %3794 = vmatmul.mubr.bf16.gmra.mrb[0].mxu0 %v756
  %v3795 = vpop.f32.mrb[0].mxu0
  %v3796 = vadd.f32 %v3603, %v3795
  %v3797 = vpop.f32.mrb[0].mxu0
  %v3798 = vadd.f32 %v3605, %v3797
  %v3799 = vpop.f32.mrb[0].mxu0
  %v3800 = vadd.f32 %v3607, %v3799
  %v3801 = vpop.f32.mrb[0].mxu0
  %v3802 = vadd.f32 %v3609, %v3801
  %3803 = vmatprep.mubr.bf16.mxu0 %v763
  %3804 = vmatmul.mubr.bf16.gmra.mrb[0].mxu0 %v762
  %v3805 = vpop.f32.mrb[0].mxu0
  %v3806 = vadd.f32 %v3613, %v3805
  %v3807 = vpop.f32.mrb[0].mxu0
  %v3808 = vadd.f32 %v3615, %v3807
  %v3809 = vpop.f32.mrb[0].mxu0
  %v3810 = vadd.f32 %v3617, %v3809
  %v3811 = vpop.f32.mrb[0].mxu0
  %v3812 = vadd.f32 %v3619, %v3811
  %3813 = vmatprep.mubr.bf16.mxu0 %v769
  %3814 = vmatmul.mubr.bf16.gmra.mrb[0].mxu0 %v768
  %v3815 = vpop.f32.mrb[0].mxu0
  %v3816 = vadd.f32 %v3623, %v3815
  %v3817 = vpop.f32.mrb[0].mxu0
  %v3818 = vadd.f32 %v3625, %v3817
  %v3819 = vpop.f32.mrb[0].mxu0
  %v3820 = vadd.f32 %v3627, %v3819
  %v3821 = vpop.f32.mrb[0].mxu0
  %v3822 = vadd.f32 %v3629, %v3821
  %3823 = vmatprep.mubr.bf16.mxu0 %v775
  %3824 = vmatmul.mubr.bf16.gmra.mrb[0].mxu0 %v774
  %v3825 = vpop.f32.mrb[0].mxu0
  %v3826 = vadd.f32 %v3633, %v3825
  %v3827 = vpop.f32.mrb[0].mxu0
  %v3828 = vadd.f32 %v3635, %v3827
  %v3829 = vpop.f32.mrb[0].mxu0
  %v3830 = vadd.f32 %v3637, %v3829
  %v3831 = vpop.f32.mrb[0].mxu0
  %v3832 = vadd.f32 %v3639, %v3831
  %3833 = vmatprep.mubr.bf16.mxu0 %v781
  %3834 = vmatmul.mubr.bf16.gmra.mrb[0].mxu0 %v780
  %v3835 = vpop.f32.mrb[0].mxu0
  %v3836 = vadd.f32 %v3643, %v3835
  %v3837 = vpop.f32.mrb[0].mxu0
  %v3838 = vadd.f32 %v3645, %v3837
  %v3839 = vpop.f32.mrb[0].mxu0
  %v3840 = vadd.f32 %v3647, %v3839
  %v3841 = vpop.f32.mrb[0].mxu0
  %v3842 = vadd.f32 %v3649, %v3841
  %3843 = vmatprep.mubr.bf16.mxu0 %v787
  %3844 = vmatmul.mubr.bf16.gmra.mrb[0].mxu0 %v786
  %v3845 = vpop.f32.mrb[0].mxu0
  %v3846 = vadd.f32 %v3653, %v3845
  %v3847 = vpop.f32.mrb[0].mxu0
  %v3848 = vadd.f32 %v3655, %v3847
  %v3849 = vpop.f32.mrb[0].mxu0
  %v3850 = vadd.f32 %v3657, %v3849
  %v3851 = vpop.f32.mrb[0].mxu0
  %v3852 = vadd.f32 %v3659, %v3851
  %3853 = vmatprep.mubr.bf16.mxu0 %v793
  %3854 = vmatmul.mubr.bf16.gmra.mrb[0].mxu0 %v792
  %v3855 = vpop.f32.mrb[0].mxu0
  %v3856 = vadd.f32 %v3663, %v3855
  %v3857 = vpop.f32.mrb[0].mxu0
  %v3858 = vadd.f32 %v3665, %v3857
  %v3859 = vpop.f32.mrb[0].mxu0
  %v3860 = vadd.f32 %v3667, %v3859
  %v3861 = vpop.f32.mrb[0].mxu0
  %v3862 = vadd.f32 %v3669, %v3861
  %3863 = vmatprep.mubr.bf16.mxu0 %v799
  %3864 = vmatmul.mubr.bf16.gmra.mrb[0].mxu0 %v798
  %v3865 = vpop.f32.mrb[0].mxu0
  %v3866 = vadd.f32 %v3673, %v3865
  %v3867 = vpop.f32.mrb[0].mxu0
  %v3868 = vadd.f32 %v3675, %v3867
  %v3869 = vpop.f32.mrb[0].mxu0
  %v3870 = vadd.f32 %v3677, %v3869
  %v3871 = vpop.f32.mrb[0].mxu0
  %v3872 = vadd.f32 %v3679, %v3871
  %3873 = vmatprep.mubr.bf16.mxu0 %v805
  %3874 = vmatmul.mubr.bf16.gmra.mrb[0].mxu0 %v804
  %v3875 = vpop.f32.mrb[0].mxu0
  %v3876 = vadd.f32 %v3683, %v3875
  %v3877 = vpop.f32.mrb[0].mxu0
  %v3878 = vadd.f32 %v3685, %v3877
  %v3879 = vpop.f32.mrb[0].mxu0
  %v3880 = vadd.f32 %v3687, %v3879
  %v3881 = vpop.f32.mrb[0].mxu0
  %v3882 = vadd.f32 %v3689, %v3881
  %3883 = vmatprep.mubr.bf16.mxu0 %v811
  %3884 = vmatmul.mubr.bf16.gmra.mrb[0].mxu0 %v810
  %v3885 = vpop.f32.mrb[0].mxu0
  %v3886 = vadd.f32 %v3693, %v3885
  %v3887 = vpop.f32.mrb[0].mxu0
  %v3888 = vadd.f32 %v3695, %v3887
  %v3889 = vpop.f32.mrb[0].mxu0
  %v3890 = vadd.f32 %v3697, %v3889
  %v3891 = vpop.f32.mrb[0].mxu0
  %v3892 = vadd.f32 %v3699, %v3891
  %3893 = vdwg.mxu0
  %3894 = vmatprep.subr.bf16.mxu0 %v1971
  %3895 = vmatpush1.bf16.xpose.msra.mxu0 %v1970
  %3896 = vmatprep.subr.bf16.mxu0 %v1977
  %3897 = vmatpush1.bf16.xpose.msra.mxu0 %v1976
  %3898 = vmatprep.subr.bf16.mxu0 %v1983
  %3899 = vmatpush1.bf16.xpose.msra.mxu0 %v1982
  %3900 = vmatprep.subr.bf16.mxu0 %v1989
  %3901 = vmatpush1.bf16.xpose.msra.mxu0 %v1988
  %3902 = vmatprep.subr.bf16.mxu0 %v1995
  %3903 = vmatpush1.bf16.xpose.msra.mxu0 %v1994
  %3904 = vmatprep.subr.bf16.mxu0 %v2001
  %3905 = vmatpush1.bf16.xpose.msra.mxu0 %v2000
  %3906 = vmatprep.subr.bf16.mxu0 %v2007
  %3907 = vmatpush1.bf16.xpose.msra.mxu0 %v2006
  %3908 = vmatprep.subr.bf16.mxu0 %v2013
  %3909 = vmatpush1.bf16.xpose.msra.mxu0 %v2012
  %3910 = vmatprep.subr.bf16.mxu0 %v2019
  %3911 = vmatpush1.bf16.xpose.msra.mxu0 %v2018
  %3912 = vmatprep.subr.bf16.mxu0 %v2025
  %3913 = vmatpush1.bf16.xpose.msra.mxu0 %v2024
  %3914 = vmatprep.subr.bf16.mxu0 %v2031
  %3915 = vmatpush1.bf16.xpose.msra.mxu0 %v2030
  %3916 = vmatprep.subr.bf16.mxu0 %v2037
  %3917 = vmatpush1.bf16.xpose.msra.mxu0 %v2036
  %3918 = vmatprep.subr.bf16.mxu0 %v2043
  %3919 = vmatpush1.bf16.xpose.msra.mxu0 %v2042
  %3920 = vmatprep.subr.bf16.mxu0 %v2049
  %3921 = vmatpush1.bf16.xpose.msra.mxu0 %v2048
  %3922 = vmatprep.subr.bf16.mxu0 %v2055
  %3923 = vmatpush1.bf16.xpose.msra.mxu0 %v2054
  %3924 = vmatprep.subr.bf16.mxu0 %v2061
  %3925 = vmatpush1.bf16.xpose.msra.mxu0 %v2060
  %3926 = vmatprep.mubr.bf16.mxu0 %v723
  %3927 = vmatmul.mubr.bf16.gmra.mrb[0].mxu0 %v722
  %v3928 = vpop.f32.mrb[0].mxu0
  %v3929 = vadd.f32 %v3736, %v3928
  %v3930 = vpop.f32.mrb[0].mxu0
  %v3931 = vadd.f32 %v3738, %v3930
  %v3932 = vpop.f32.mrb[0].mxu0
  %v3933 = vadd.f32 %v3740, %v3932
  %v3934 = vpop.f32.mrb[0].mxu0
  %v3935 = vadd.f32 %v3742, %v3934
  %3936 = vmatprep.mubr.bf16.mxu0 %v729
  %3937 = vmatmul.mubr.bf16.gmra.mrb[0].mxu0 %v728
  %v3938 = vpop.f32.mrb[0].mxu0
  %v3939 = vadd.f32 %v3746, %v3938
  %v3940 = vpop.f32.mrb[0].mxu0
  %v3941 = vadd.f32 %v3748, %v3940
  %v3942 = vpop.f32.mrb[0].mxu0
  %v3943 = vadd.f32 %v3750, %v3942
  %v3944 = vpop.f32.mrb[0].mxu0
  %v3945 = vadd.f32 %v3752, %v3944
  %3946 = vmatprep.mubr.bf16.mxu0 %v735
  %3947 = vmatmul.mubr.bf16.gmra.mrb[0].mxu0 %v734
  %v3948 = vpop.f32.mrb[0].mxu0
  %v3949 = vadd.f32 %v3756, %v3948
  %v3950 = vpop.f32.mrb[0].mxu0
  %v3951 = vadd.f32 %v3758, %v3950
  %v3952 = vpop.f32.mrb[0].mxu0
  %v3953 = vadd.f32 %v3760, %v3952
  %v3954 = vpop.f32.mrb[0].mxu0
  %v3955 = vadd.f32 %v3762, %v3954
  %3956 = vmatprep.mubr.bf16.mxu0 %v741
  %3957 = vmatmul.mubr.bf16.gmra.mrb[0].mxu0 %v740
  %v3958 = vpop.f32.mrb[0].mxu0
  %v3959 = vadd.f32 %v3766, %v3958
  %v3960 = vpop.f32.mrb[0].mxu0
  %v3961 = vadd.f32 %v3768, %v3960
  %v3962 = vpop.f32.mrb[0].mxu0
  %v3963 = vadd.f32 %v3770, %v3962
  %v3964 = vpop.f32.mrb[0].mxu0
  %v3965 = vadd.f32 %v3772, %v3964
  %3966 = vmatprep.mubr.bf16.mxu0 %v747
  %3967 = vmatmul.mubr.bf16.gmra.mrb[0].mxu0 %v746
  %v3968 = vpop.f32.mrb[0].mxu0
  %v3969 = vadd.f32 %v3776, %v3968
  %v3970 = vpop.f32.mrb[0].mxu0
  %v3971 = vadd.f32 %v3778, %v3970
  %v3972 = vpop.f32.mrb[0].mxu0
  %v3973 = vadd.f32 %v3780, %v3972
  %v3974 = vpop.f32.mrb[0].mxu0
  %v3975 = vadd.f32 %v3782, %v3974
  %3976 = vmatprep.mubr.bf16.mxu0 %v753
  %3977 = vmatmul.mubr.bf16.gmra.mrb[0].mxu0 %v752
  %v3978 = vpop.f32.mrb[0].mxu0
  %v3979 = vadd.f32 %v3786, %v3978
  %v3980 = vpop.f32.mrb[0].mxu0
  %v3981 = vadd.f32 %v3788, %v3980
  %v3982 = vpop.f32.mrb[0].mxu0
  %v3983 = vadd.f32 %v3790, %v3982
  %v3984 = vpop.f32.mrb[0].mxu0
  %v3985 = vadd.f32 %v3792, %v3984
  %3986 = vmatprep.mubr.bf16.mxu0 %v759
  %3987 = vmatmul.mubr.bf16.gmra.mrb[0].mxu0 %v758
  %v3988 = vpop.f32.mrb[0].mxu0
  %v3989 = vadd.f32 %v3796, %v3988
  %v3990 = vpop.f32.mrb[0].mxu0
  %v3991 = vadd.f32 %v3798, %v3990
  %v3992 = vpop.f32.mrb[0].mxu0
  %v3993 = vadd.f32 %v3800, %v3992
  %v3994 = vpop.f32.mrb[0].mxu0
  %v3995 = vadd.f32 %v3802, %v3994
  %3996 = vmatprep.mubr.bf16.mxu0 %v765
  %3997 = vmatmul.mubr.bf16.gmra.mrb[0].mxu0 %v764
  %v3998 = vpop.f32.mrb[0].mxu0
  %v3999 = vadd.f32 %v3806, %v3998
  %v4000 = vpop.f32.mrb[0].mxu0
  %v4001 = vadd.f32 %v3808, %v4000
  %v4002 = vpop.f32.mrb[0].mxu0
  %v4003 = vadd.f32 %v3810, %v4002
  %v4004 = vpop.f32.mrb[0].mxu0
  %v4005 = vadd.f32 %v3812, %v4004
  %4006 = vmatprep.mubr.bf16.mxu0 %v771
  %4007 = vmatmul.mubr.bf16.gmra.mrb[0].mxu0 %v770
  %v4008 = vpop.f32.mrb[0].mxu0
  %v4009 = vadd.f32 %v3816, %v4008
  %v4010 = vpop.f32.mrb[0].mxu0
  %v4011 = vadd.f32 %v3818, %v4010
  %v4012 = vpop.f32.mrb[0].mxu0
  %v4013 = vadd.f32 %v3820, %v4012
  %v4014 = vpop.f32.mrb[0].mxu0
  %v4015 = vadd.f32 %v3822, %v4014
  %4016 = vmatprep.mubr.bf16.mxu0 %v777
  %4017 = vmatmul.mubr.bf16.gmra.mrb[0].mxu0 %v776
  %v4018 = vpop.f32.mrb[0].mxu0
  %v4019 = vadd.f32 %v3826, %v4018
  %v4020 = vpop.f32.mrb[0].mxu0
  %v4021 = vadd.f32 %v3828, %v4020
  %v4022 = vpop.f32.mrb[0].mxu0
  %v4023 = vadd.f32 %v3830, %v4022
  %v4024 = vpop.f32.mrb[0].mxu0
  %v4025 = vadd.f32 %v3832, %v4024
  %4026 = vmatprep.mubr.bf16.mxu0 %v783
  %4027 = vmatmul.mubr.bf16.gmra.mrb[0].mxu0 %v782
  %v4028 = vpop.f32.mrb[0].mxu0
  %v4029 = vadd.f32 %v3836, %v4028
  %v4030 = vpop.f32.mrb[0].mxu0
  %v4031 = vadd.f32 %v3838, %v4030
  %v4032 = vpop.f32.mrb[0].mxu0
  %v4033 = vadd.f32 %v3840, %v4032
  %v4034 = vpop.f32.mrb[0].mxu0
  %v4035 = vadd.f32 %v3842, %v4034
  %4036 = vmatprep.mubr.bf16.mxu0 %v789
  %4037 = vmatmul.mubr.bf16.gmra.mrb[0].mxu0 %v788
  %v4038 = vpop.f32.mrb[0].mxu0
  %v4039 = vadd.f32 %v3846, %v4038
  %v4040 = vpop.f32.mrb[0].mxu0
  %v4041 = vadd.f32 %v3848, %v4040
  %v4042 = vpop.f32.mrb[0].mxu0
  %v4043 = vadd.f32 %v3850, %v4042
  %v4044 = vpop.f32.mrb[0].mxu0
  %v4045 = vadd.f32 %v3852, %v4044
  %4046 = vmatprep.mubr.bf16.mxu0 %v795
  %4047 = vmatmul.mubr.bf16.gmra.mrb[0].mxu0 %v794
  %v4048 = vpop.f32.mrb[0].mxu0
  %v4049 = vadd.f32 %v3856, %v4048
  %v4050 = vpop.f32.mrb[0].mxu0
  %v4051 = vadd.f32 %v3858, %v4050
  %v4052 = vpop.f32.mrb[0].mxu0
  %v4053 = vadd.f32 %v3860, %v4052
  %v4054 = vpop.f32.mrb[0].mxu0
  %v4055 = vadd.f32 %v3862, %v4054
  %4056 = vmatprep.mubr.bf16.mxu0 %v801
  %4057 = vmatmul.mubr.bf16.gmra.mrb[0].mxu0 %v800
  %v4058 = vpop.f32.mrb[0].mxu0
  %v4059 = vadd.f32 %v3866, %v4058
  %v4060 = vpop.f32.mrb[0].mxu0
  %v4061 = vadd.f32 %v3868, %v4060
  %v4062 = vpop.f32.mrb[0].mxu0
  %v4063 = vadd.f32 %v3870, %v4062
  %v4064 = vpop.f32.mrb[0].mxu0
  %v4065 = vadd.f32 %v3872, %v4064
  %4066 = vmatprep.mubr.bf16.mxu0 %v807
  %4067 = vmatmul.mubr.bf16.gmra.mrb[0].mxu0 %v806
  %v4068 = vpop.f32.mrb[0].mxu0
  %v4069 = vadd.f32 %v3876, %v4068
  %v4070 = vpop.f32.mrb[0].mxu0
  %v4071 = vadd.f32 %v3878, %v4070
  %v4072 = vpop.f32.mrb[0].mxu0
  %v4073 = vadd.f32 %v3880, %v4072
  %v4074 = vpop.f32.mrb[0].mxu0
  %v4075 = vadd.f32 %v3882, %v4074
  %4076 = vmatprep.mubr.bf16.mxu0 %v813
  %4077 = vmatmul.mubr.bf16.gmra.mrb[0].mxu0 %v812
  %v4078 = vpop.f32.mrb[0].mxu0
  %v4079 = vadd.f32 %v3886, %v4078
  %v4080 = vpop.f32.mrb[0].mxu0
  %v4081 = vadd.f32 %v3888, %v4080
  %v4082 = vpop.f32.mrb[0].mxu0
  %v4083 = vadd.f32 %v3890, %v4082
  %v4084 = vpop.f32.mrb[0].mxu0
  %v4085 = vadd.f32 %v3892, %v4084
  %4086 = vdwg.mxu0
  %v4087 = vpack.c.bf16 %v2775, %v2771
  %v4088 = vpack.c.bf16 %v2777, %v2773
  %v4089 = vpack.c.bf16 %v3354, %v3350
  %v4090 = vpack.c.bf16 %v3356, %v3352
  %v4091 = vpack.c.bf16 %v3933, %v3929
  %v4092 = vpack.c.bf16 %v3935, %v3931
  %v4093 = vpack.c.bf16 %v2785, %v2781
  %v4094 = vpack.c.bf16 %v2787, %v2783
  %v4095 = vpack.c.bf16 %v3364, %v3360
  %v4096 = vpack.c.bf16 %v3366, %v3362
  %v4097 = vpack.c.bf16 %v3943, %v3939
  %v4098 = vpack.c.bf16 %v3945, %v3941
  %v4099 = vpack.c.bf16 %v2795, %v2791
  %v4100 = vpack.c.bf16 %v2797, %v2793
  %v4101 = vpack.c.bf16 %v3374, %v3370
  %v4102 = vpack.c.bf16 %v3376, %v3372
  %v4103 = vpack.c.bf16 %v3953, %v3949
  %v4104 = vpack.c.bf16 %v3955, %v3951
  %v4105 = vpack.c.bf16 %v2805, %v2801
  %v4106 = vpack.c.bf16 %v2807, %v2803
  %v4107 = vpack.c.bf16 %v3384, %v3380
  %v4108 = vpack.c.bf16 %v3386, %v3382
  %v4109 = vpack.c.bf16 %v3963, %v3959
  %v4110 = vpack.c.bf16 %v3965, %v3961
  %v4111 = vpack.c.bf16 %v2815, %v2811
  %v4112 = vpack.c.bf16 %v2817, %v2813
  %v4113 = vpack.c.bf16 %v3394, %v3390
  %v4114 = vpack.c.bf16 %v3396, %v3392
  %v4115 = vpack.c.bf16 %v3973, %v3969
  %v4116 = vpack.c.bf16 %v3975, %v3971
  %v4117 = vpack.c.bf16 %v2825, %v2821
  %v4118 = vpack.c.bf16 %v2827, %v2823
  %v4119 = vpack.c.bf16 %v3404, %v3400
  %v4120 = vpack.c.bf16 %v3406, %v3402
  %v4121 = vpack.c.bf16 %v3983, %v3979
  %v4122 = vpack.c.bf16 %v3985, %v3981
  %v4123 = vpack.c.bf16 %v2835, %v2831
  %v4124 = vpack.c.bf16 %v2837, %v2833
  %v4125 = vpack.c.bf16 %v3414, %v3410
  %v4126 = vpack.c.bf16 %v3416, %v3412
  %v4127 = vpack.c.bf16 %v3993, %v3989
  %v4128 = vpack.c.bf16 %v3995, %v3991
  %v4129 = vpack.c.bf16 %v2845, %v2841
  %v4130 = vpack.c.bf16 %v2847, %v2843
  %v4131 = vpack.c.bf16 %v3424, %v3420
  %v4132 = vpack.c.bf16 %v3426, %v3422
  %v4133 = vpack.c.bf16 %v4003, %v3999
  %v4134 = vpack.c.bf16 %v4005, %v4001
  %v4135 = vpack.c.bf16 %v2855, %v2851
  %v4136 = vpack.c.bf16 %v2857, %v2853
  %v4137 = vpack.c.bf16 %v3434, %v3430
  %v4138 = vpack.c.bf16 %v3436, %v3432
  %v4139 = vpack.c.bf16 %v4013, %v4009
  %v4140 = vpack.c.bf16 %v4015, %v4011
  %v4141 = vpack.c.bf16 %v2865, %v2861
  %v4142 = vpack.c.bf16 %v2867, %v2863
  %v4143 = vpack.c.bf16 %v3444, %v3440
  %v4144 = vpack.c.bf16 %v3446, %v3442
  %v4145 = vpack.c.bf16 %v4023, %v4019
  %v4146 = vpack.c.bf16 %v4025, %v4021
  %v4147 = vpack.c.bf16 %v2875, %v2871
  %v4148 = vpack.c.bf16 %v2877, %v2873
  %v4149 = vpack.c.bf16 %v3454, %v3450
  %v4150 = vpack.c.bf16 %v3456, %v3452
  %v4151 = vpack.c.bf16 %v4033, %v4029
  %v4152 = vpack.c.bf16 %v4035, %v4031
  %v4153 = vpack.c.bf16 %v2885, %v2881
  %v4154 = vpack.c.bf16 %v2887, %v2883
  %v4155 = vpack.c.bf16 %v3464, %v3460
  %v4156 = vpack.c.bf16 %v3466, %v3462
  %v4157 = vpack.c.bf16 %v4043, %v4039
  %v4158 = vpack.c.bf16 %v4045, %v4041
  %v4159 = vpack.c.bf16 %v2895, %v2891
  %v4160 = vpack.c.bf16 %v2897, %v2893
  %v4161 = vpack.c.bf16 %v3474, %v3470
  %v4162 = vpack.c.bf16 %v3476, %v3472
  %v4163 = vpack.c.bf16 %v4053, %v4049
  %v4164 = vpack.c.bf16 %v4055, %v4051
  %v4165 = vpack.c.bf16 %v2905, %v2901
  %v4166 = vpack.c.bf16 %v2907, %v2903
  %v4167 = vpack.c.bf16 %v3484, %v3480
  %v4168 = vpack.c.bf16 %v3486, %v3482
  %v4169 = vpack.c.bf16 %v4063, %v4059
  %v4170 = vpack.c.bf16 %v4065, %v4061
  %v4171 = vpack.c.bf16 %v2915, %v2911
  %v4172 = vpack.c.bf16 %v2917, %v2913
  %v4173 = vpack.c.bf16 %v3494, %v3490
  %v4174 = vpack.c.bf16 %v3496, %v3492
  %v4175 = vpack.c.bf16 %v4073, %v4069
  %v4176 = vpack.c.bf16 %v4075, %v4071
  %v4177 = vpack.c.bf16 %v2925, %v2921
  %v4178 = vpack.c.bf16 %v2927, %v2923
  %v4179 = vpack.c.bf16 %v3504, %v3500
  %v4180 = vpack.c.bf16 %v3506, %v3502
  %v4181 = vpack.c.bf16 %v4083, %v4079
  %v4182 = vpack.c.bf16 %v4085, %v4081
  %v4279 = vunpack.c.l.b16 %v4087
  %v4280 = vunpack.c.l.b16 %v4088
  %v4281 = vunpack.c.l.b16 %v4089
  %v4282 = vunpack.c.l.b16 %v4090
  %v4283 = vunpack.c.l.b16 %v4091
  %v4284 = vunpack.c.l.b16 %v4092
  %v4285 = vunpack.c.h.b16 %v4087
  %v4286 = vunpack.c.h.b16 %v4088
  %v4287 = vunpack.c.h.b16 %v4089
  %v4288 = vunpack.c.h.b16 %v4090
  %v4289 = vunpack.c.h.b16 %v4091
  %v4290 = vunpack.c.h.b16 %v4092
  %v4291 = vunpack.c.l.b16 %v4093
  %v4292 = vunpack.c.l.b16 %v4094
  %v4293 = vunpack.c.l.b16 %v4095
  %v4294 = vunpack.c.l.b16 %v4096
  %v4295 = vunpack.c.l.b16 %v4097
  %v4296 = vunpack.c.l.b16 %v4098
  %v4297 = vunpack.c.h.b16 %v4093
  %v4298 = vunpack.c.h.b16 %v4094
  %v4299 = vunpack.c.h.b16 %v4095
  %v4300 = vunpack.c.h.b16 %v4096
  %v4301 = vunpack.c.h.b16 %v4097
  %v4302 = vunpack.c.h.b16 %v4098
  %v4303 = vunpack.c.l.b16 %v4099
  %v4304 = vunpack.c.l.b16 %v4100
  %v4305 = vunpack.c.l.b16 %v4101
  %v4306 = vunpack.c.l.b16 %v4102
  %v4307 = vunpack.c.l.b16 %v4103
  %v4308 = vunpack.c.l.b16 %v4104
  %v4309 = vunpack.c.h.b16 %v4099
  %v4310 = vunpack.c.h.b16 %v4100
  %v4311 = vunpack.c.h.b16 %v4101
  %v4312 = vunpack.c.h.b16 %v4102
  %v4313 = vunpack.c.h.b16 %v4103
  %v4314 = vunpack.c.h.b16 %v4104
  %v4315 = vunpack.c.l.b16 %v4105
  %v4316 = vunpack.c.l.b16 %v4106
  %v4317 = vunpack.c.l.b16 %v4107
  %v4318 = vunpack.c.l.b16 %v4108
  %v4319 = vunpack.c.l.b16 %v4109
  %v4320 = vunpack.c.l.b16 %v4110
  %v4321 = vunpack.c.h.b16 %v4105
  %v4322 = vunpack.c.h.b16 %v4106
  %v4323 = vunpack.c.h.b16 %v4107
  %v4324 = vunpack.c.h.b16 %v4108
  %v4325 = vunpack.c.h.b16 %v4109
  %v4326 = vunpack.c.h.b16 %v4110
  %v4327 = vunpack.c.l.b16 %v4111
  %v4328 = vunpack.c.l.b16 %v4112
  %v4329 = vunpack.c.l.b16 %v4113
  %v4330 = vunpack.c.l.b16 %v4114
  %v4331 = vunpack.c.l.b16 %v4115
  %v4332 = vunpack.c.l.b16 %v4116
  %v4333 = vunpack.c.h.b16 %v4111
  %v4334 = vunpack.c.h.b16 %v4112
  %v4335 = vunpack.c.h.b16 %v4113
  %v4336 = vunpack.c.h.b16 %v4114
  %v4337 = vunpack.c.h.b16 %v4115
  %v4338 = vunpack.c.h.b16 %v4116
  %v4339 = vunpack.c.l.b16 %v4117
  %v4340 = vunpack.c.l.b16 %v4118
  %v4341 = vunpack.c.l.b16 %v4119
  %v4342 = vunpack.c.l.b16 %v4120
  %v4343 = vunpack.c.l.b16 %v4121
  %v4344 = vunpack.c.l.b16 %v4122
  %v4345 = vunpack.c.h.b16 %v4117
  %v4346 = vunpack.c.h.b16 %v4118
  %v4347 = vunpack.c.h.b16 %v4119
  %v4348 = vunpack.c.h.b16 %v4120
  %v4349 = vunpack.c.h.b16 %v4121
  %v4350 = vunpack.c.h.b16 %v4122
  %v4351 = vunpack.c.l.b16 %v4123
  %v4352 = vunpack.c.l.b16 %v4124
  %v4353 = vunpack.c.l.b16 %v4125
  %v4354 = vunpack.c.l.b16 %v4126
  %v4355 = vunpack.c.l.b16 %v4127
  %v4356 = vunpack.c.l.b16 %v4128
  %v4357 = vunpack.c.h.b16 %v4123
  %v4358 = vunpack.c.h.b16 %v4124
  %v4359 = vunpack.c.h.b16 %v4125
  %v4360 = vunpack.c.h.b16 %v4126
  %v4361 = vunpack.c.h.b16 %v4127
  %v4362 = vunpack.c.h.b16 %v4128
  %v4363 = vunpack.c.l.b16 %v4129
  %v4364 = vunpack.c.l.b16 %v4130
  %v4365 = vunpack.c.l.b16 %v4131
  %v4366 = vunpack.c.l.b16 %v4132
  %v4367 = vunpack.c.l.b16 %v4133
  %v4368 = vunpack.c.l.b16 %v4134
  %v4369 = vunpack.c.h.b16 %v4129
  %v4370 = vunpack.c.h.b16 %v4130
  %v4371 = vunpack.c.h.b16 %v4131
  %v4372 = vunpack.c.h.b16 %v4132
  %v4373 = vunpack.c.h.b16 %v4133
  %v4374 = vunpack.c.h.b16 %v4134
  %v4375 = vunpack.c.l.b16 %v4135
  %v4376 = vunpack.c.l.b16 %v4136
  %v4377 = vunpack.c.l.b16 %v4137
  %v4378 = vunpack.c.l.b16 %v4138
  %v4379 = vunpack.c.l.b16 %v4139
  %v4380 = vunpack.c.l.b16 %v4140
  %v4381 = vunpack.c.h.b16 %v4135
  %v4382 = vunpack.c.h.b16 %v4136
  %v4383 = vunpack.c.h.b16 %v4137
  %v4384 = vunpack.c.h.b16 %v4138
  %v4385 = vunpack.c.h.b16 %v4139
  %v4386 = vunpack.c.h.b16 %v4140
  %v4387 = vunpack.c.l.b16 %v4141
  %v4388 = vunpack.c.l.b16 %v4142
  %v4389 = vunpack.c.l.b16 %v4143
  %v4390 = vunpack.c.l.b16 %v4144
  %v4391 = vunpack.c.l.b16 %v4145
  %v4392 = vunpack.c.l.b16 %v4146
  %v4393 = vunpack.c.h.b16 %v4141
  %v4394 = vunpack.c.h.b16 %v4142
  %v4395 = vunpack.c.h.b16 %v4143
  %v4396 = vunpack.c.h.b16 %v4144
  %v4397 = vunpack.c.h.b16 %v4145
  %v4398 = vunpack.c.h.b16 %v4146
  %v4399 = vunpack.c.l.b16 %v4147
  %v4400 = vunpack.c.l.b16 %v4148
  %v4401 = vunpack.c.l.b16 %v4149
  %v4402 = vunpack.c.l.b16 %v4150
  %v4403 = vunpack.c.l.b16 %v4151
  %v4404 = vunpack.c.l.b16 %v4152
  %v4405 = vunpack.c.h.b16 %v4147
  %v4406 = vunpack.c.h.b16 %v4148
  %v4407 = vunpack.c.h.b16 %v4149
  %v4408 = vunpack.c.h.b16 %v4150
  %v4409 = vunpack.c.h.b16 %v4151
  %v4410 = vunpack.c.h.b16 %v4152
  %v4411 = vunpack.c.l.b16 %v4153
  %v4412 = vunpack.c.l.b16 %v4154
  %v4413 = vunpack.c.l.b16 %v4155
  %v4414 = vunpack.c.l.b16 %v4156
  %v4415 = vunpack.c.l.b16 %v4157
  %v4416 = vunpack.c.l.b16 %v4158
  %v4417 = vunpack.c.h.b16 %v4153
  %v4418 = vunpack.c.h.b16 %v4154
  %v4419 = vunpack.c.h.b16 %v4155
  %v4420 = vunpack.c.h.b16 %v4156
  %v4421 = vunpack.c.h.b16 %v4157
  %v4422 = vunpack.c.h.b16 %v4158
  %v4423 = vunpack.c.l.b16 %v4159
  %v4424 = vunpack.c.l.b16 %v4160
  %v4425 = vunpack.c.l.b16 %v4161
  %v4426 = vunpack.c.l.b16 %v4162
  %v4427 = vunpack.c.l.b16 %v4163
  %v4428 = vunpack.c.l.b16 %v4164
  %v4429 = vunpack.c.h.b16 %v4159
  %v4430 = vunpack.c.h.b16 %v4160
  %v4431 = vunpack.c.h.b16 %v4161
  %v4432 = vunpack.c.h.b16 %v4162
  %v4433 = vunpack.c.h.b16 %v4163
  %v4434 = vunpack.c.h.b16 %v4164
  %v4435 = vunpack.c.l.b16 %v4165
  %v4436 = vunpack.c.l.b16 %v4166
  %v4437 = vunpack.c.l.b16 %v4167
  %v4438 = vunpack.c.l.b16 %v4168
  %v4439 = vunpack.c.l.b16 %v4169
  %v4440 = vunpack.c.l.b16 %v4170
  %v4441 = vunpack.c.h.b16 %v4165
  %v4442 = vunpack.c.h.b16 %v4166
  %v4443 = vunpack.c.h.b16 %v4167
  %v4444 = vunpack.c.h.b16 %v4168
  %v4445 = vunpack.c.h.b16 %v4169
  %v4446 = vunpack.c.h.b16 %v4170
  %v4447 = vunpack.c.l.b16 %v4171
  %v4448 = vunpack.c.l.b16 %v4172
  %v4449 = vunpack.c.l.b16 %v4173
  %v4450 = vunpack.c.l.b16 %v4174
  %v4451 = vunpack.c.l.b16 %v4175
  %v4452 = vunpack.c.l.b16 %v4176
  %v4453 = vunpack.c.h.b16 %v4171
  %v4454 = vunpack.c.h.b16 %v4172
  %v4455 = vunpack.c.h.b16 %v4173
  %v4456 = vunpack.c.h.b16 %v4174
  %v4457 = vunpack.c.h.b16 %v4175
  %v4458 = vunpack.c.h.b16 %v4176
  %v4459 = vunpack.c.l.b16 %v4177
  %v4460 = vunpack.c.l.b16 %v4178
  %v4461 = vunpack.c.l.b16 %v4179
  %v4462 = vunpack.c.l.b16 %v4180
  %v4463 = vunpack.c.l.b16 %v4181
  %v4464 = vunpack.c.l.b16 %v4182
  %v4465 = vunpack.c.h.b16 %v4177
  %v4466 = vunpack.c.h.b16 %v4178
  %v4467 = vunpack.c.h.b16 %v4179
  %v4468 = vunpack.c.h.b16 %v4180
  %v4469 = vunpack.c.h.b16 %v4181
  %v4470 = vunpack.c.h.b16 %v4182
  %v4471 = vpack.c.b16 %v4280, %v4279
  %v4472 = vpack.c.b16 %v4282, %v4281
  %v4473 = vpack.c.b16 %v4284, %v4283
  %v4474 = vpack.c.b16 %v4286, %v4285
  %v4475 = vpack.c.b16 %v4288, %v4287
  %v4476 = vpack.c.b16 %v4290, %v4289
  %v4477 = vpack.c.b16 %v4292, %v4291
  %v4478 = vpack.c.b16 %v4294, %v4293
  %v4479 = vpack.c.b16 %v4296, %v4295
  %v4480 = vpack.c.b16 %v4298, %v4297
  %v4481 = vpack.c.b16 %v4300, %v4299
  %v4482 = vpack.c.b16 %v4302, %v4301
  %v4483 = vpack.c.b16 %v4304, %v4303
  %v4484 = vpack.c.b16 %v4306, %v4305
  %v4485 = vpack.c.b16 %v4308, %v4307
  %v4486 = vpack.c.b16 %v4310, %v4309
  %v4487 = vpack.c.b16 %v4312, %v4311
  %v4488 = vpack.c.b16 %v4314, %v4313
  %v4489 = vpack.c.b16 %v4316, %v4315
  %v4490 = vpack.c.b16 %v4318, %v4317
  %v4491 = vpack.c.b16 %v4320, %v4319
  %v4492 = vpack.c.b16 %v4322, %v4321
  %v4493 = vpack.c.b16 %v4324, %v4323
  %v4494 = vpack.c.b16 %v4326, %v4325
  %v4495 = vpack.c.b16 %v4328, %v4327
  %v4496 = vpack.c.b16 %v4330, %v4329
  %v4497 = vpack.c.b16 %v4332, %v4331
  %v4498 = vpack.c.b16 %v4334, %v4333
  %v4499 = vpack.c.b16 %v4336, %v4335
  %v4500 = vpack.c.b16 %v4338, %v4337
  %v4501 = vpack.c.b16 %v4340, %v4339
  %v4502 = vpack.c.b16 %v4342, %v4341
  %v4503 = vpack.c.b16 %v4344, %v4343
  %v4504 = vpack.c.b16 %v4346, %v4345
  %v4505 = vpack.c.b16 %v4348, %v4347
  %v4506 = vpack.c.b16 %v4350, %v4349
  %v4507 = vpack.c.b16 %v4352, %v4351
  %v4508 = vpack.c.b16 %v4354, %v4353
  %v4509 = vpack.c.b16 %v4356, %v4355
  %v4510 = vpack.c.b16 %v4358, %v4357
  %v4511 = vpack.c.b16 %v4360, %v4359
  %v4512 = vpack.c.b16 %v4362, %v4361
  %v4513 = vpack.c.b16 %v4364, %v4363
  %v4514 = vpack.c.b16 %v4366, %v4365
  %v4515 = vpack.c.b16 %v4368, %v4367
  %v4516 = vpack.c.b16 %v4370, %v4369
  %v4517 = vpack.c.b16 %v4372, %v4371
  %v4518 = vpack.c.b16 %v4374, %v4373
  %v4519 = vpack.c.b16 %v4376, %v4375
  %v4520 = vpack.c.b16 %v4378, %v4377
  %v4521 = vpack.c.b16 %v4380, %v4379
  %v4522 = vpack.c.b16 %v4382, %v4381
  %v4523 = vpack.c.b16 %v4384, %v4383
  %v4524 = vpack.c.b16 %v4386, %v4385
  %v4525 = vpack.c.b16 %v4388, %v4387
  %v4526 = vpack.c.b16 %v4390, %v4389
  %v4527 = vpack.c.b16 %v4392, %v4391
  %v4528 = vpack.c.b16 %v4394, %v4393
  %v4529 = vpack.c.b16 %v4396, %v4395
  %v4530 = vpack.c.b16 %v4398, %v4397
  %v4531 = vpack.c.b16 %v4400, %v4399
  %v4532 = vpack.c.b16 %v4402, %v4401
  %v4533 = vpack.c.b16 %v4404, %v4403
  %v4534 = vpack.c.b16 %v4406, %v4405
  %v4535 = vpack.c.b16 %v4408, %v4407
  %v4536 = vpack.c.b16 %v4410, %v4409
  %v4537 = vpack.c.b16 %v4412, %v4411
  %v4538 = vpack.c.b16 %v4414, %v4413
  %v4539 = vpack.c.b16 %v4416, %v4415
  %v4540 = vpack.c.b16 %v4418, %v4417
  %v4541 = vpack.c.b16 %v4420, %v4419
  %v4542 = vpack.c.b16 %v4422, %v4421
  %v4543 = vpack.c.b16 %v4424, %v4423
  %v4544 = vpack.c.b16 %v4426, %v4425
  %v4545 = vpack.c.b16 %v4428, %v4427
  %v4546 = vpack.c.b16 %v4430, %v4429
  %v4547 = vpack.c.b16 %v4432, %v4431
  %v4548 = vpack.c.b16 %v4434, %v4433
  %v4549 = vpack.c.b16 %v4436, %v4435
  %v4550 = vpack.c.b16 %v4438, %v4437
  %v4551 = vpack.c.b16 %v4440, %v4439
  %v4552 = vpack.c.b16 %v4442, %v4441
  %v4553 = vpack.c.b16 %v4444, %v4443
  %v4554 = vpack.c.b16 %v4446, %v4445
  %v4555 = vpack.c.b16 %v4448, %v4447
  %v4556 = vpack.c.b16 %v4450, %v4449
  %v4557 = vpack.c.b16 %v4452, %v4451
  %v4558 = vpack.c.b16 %v4454, %v4453
  %v4559 = vpack.c.b16 %v4456, %v4455
  %v4560 = vpack.c.b16 %v4458, %v4457
  %v4561 = vpack.c.b16 %v4460, %v4459
  %v4562 = vpack.c.b16 %v4462, %v4461
  %v4563 = vpack.c.b16 %v4464, %v4463
  %v4564 = vpack.c.b16 %v4466, %v4465
  %v4565 = vpack.c.b16 %v4468, %v4467
  %v4566 = vpack.c.b16 %v4470, %v4469
  %4663 = vst [vmem:[%s3] sm:$0xff] %v4471
  %4664 = vst [vmem:[%s3 + $0x8] sm:$0xff] %v4472
  %4665 = vst [vmem:[%s3 + $0x10] sm:$0xff] %v4473
  %4666 = vst [vmem:[%s3 + $0x18] sm:$0xff] %v4474
  %4667 = vst [vmem:[%s3 + $0x20] sm:$0xff] %v4475
  %4668 = vst [vmem:[%s3 + $0x28] sm:$0xff] %v4476
  %4669 = vst [vmem:[%s3 + $0x30] sm:$0xff] %v4477
  %4670 = vst [vmem:[%s3 + $0x38] sm:$0xff] %v4478
  %4671 = vst [vmem:[%s3 + $0x40] sm:$0xff] %v4479
  %4672 = vst [vmem:[%s3 + $0x48] sm:$0xff] %v4480
  %4673 = vst [vmem:[%s3 + $0x50] sm:$0xff] %v4481
  %4674 = vst [vmem:[%s3 + $0x58] sm:$0xff] %v4482
  %4675 = vst [vmem:[%s3 + $0x60] sm:$0xff] %v4483
  %4676 = vst [vmem:[%s3 + $0x68] sm:$0xff] %v4484
  %4677 = vst [vmem:[%s3 + $0x70] sm:$0xff] %v4485
  %4678 = vst [vmem:[%s3 + $0x78] sm:$0xff] %v4486
  %4679 = vst [vmem:[%s3 + $0x80] sm:$0xff] %v4487
  %4680 = vst [vmem:[%s3 + $0x88] sm:$0xff] %v4488
  %4681 = vst [vmem:[%s3 + $0x90] sm:$0xff] %v4489
  %4682 = vst [vmem:[%s3 + $0x98] sm:$0xff] %v4490
  %4683 = vst [vmem:[%s3 + $0xa0] sm:$0xff] %v4491
  %4684 = vst [vmem:[%s3 + $0xa8] sm:$0xff] %v4492
  %4685 = vst [vmem:[%s3 + $0xb0] sm:$0xff] %v4493
  %4686 = vst [vmem:[%s3 + $0xb8] sm:$0xff] %v4494
  %4687 = vst [vmem:[%s3 + $0xc0] sm:$0xff] %v4495
  %4688 = vst [vmem:[%s3 + $0xc8] sm:$0xff] %v4496
  %4689 = vst [vmem:[%s3 + $0xd0] sm:$0xff] %v4497
  %4690 = vst [vmem:[%s3 + $0xd8] sm:$0xff] %v4498
  %4691 = vst [vmem:[%s3 + $0xe0] sm:$0xff] %v4499
  %4692 = vst [vmem:[%s3 + $0xe8] sm:$0xff] %v4500
  %4693 = vst [vmem:[%s3 + $0xf0] sm:$0xff] %v4501
  %4694 = vst [vmem:[%s3 + $0xf8] sm:$0xff] %v4502
  %4695 = vst [vmem:[%s3 + $0x100] sm:$0xff] %v4503
  %4696 = vst [vmem:[%s3 + $0x108] sm:$0xff] %v4504
  %4697 = vst [vmem:[%s3 + $0x110] sm:$0xff] %v4505
  %4698 = vst [vmem:[%s3 + $0x118] sm:$0xff] %v4506
  %4699 = vst [vmem:[%s3 + $0x120] sm:$0xff] %v4507
  %4700 = vst [vmem:[%s3 + $0x128] sm:$0xff] %v4508
  %4701 = vst [vmem:[%s3 + $0x130] sm:$0xff] %v4509
  %4702 = vst [vmem:[%s3 + $0x138] sm:$0xff] %v4510
  %4703 = vst [vmem:[%s3 + $0x140] sm:$0xff] %v4511
  %4704 = vst [vmem:[%s3 + $0x148] sm:$0xff] %v4512
  %4705 = vst [vmem:[%s3 + $0x150] sm:$0xff] %v4513
  %4706 = vst [vmem:[%s3 + $0x158] sm:$0xff] %v4514
  %4707 = vst [vmem:[%s3 + $0x160] sm:$0xff] %v4515
  %4708 = vst [vmem:[%s3 + $0x168] sm:$0xff] %v4516
  %4709 = vst [vmem:[%s3 + $0x170] sm:$0xff] %v4517
  %4710 = vst [vmem:[%s3 + $0x178] sm:$0xff] %v4518
  %4711 = vst [vmem:[%s3 + $0x180] sm:$0xff] %v4519
  %4712 = vst [vmem:[%s3 + $0x188] sm:$0xff] %v4520
  %4713 = vst [vmem:[%s3 + $0x190] sm:$0xff] %v4521
  %4714 = vst [vmem:[%s3 + $0x198] sm:$0xff] %v4522
  %4715 = vst [vmem:[%s3 + $0x1a0] sm:$0xff] %v4523
  %4716 = vst [vmem:[%s3 + $0x1a8] sm:$0xff] %v4524
  %4717 = vst [vmem:[%s3 + $0x1b0] sm:$0xff] %v4525
  %4718 = vst [vmem:[%s3 + $0x1b8] sm:$0xff] %v4526
  %4719 = vst [vmem:[%s3 + $0x1c0] sm:$0xff] %v4527
  %4720 = vst [vmem:[%s3 + $0x1c8] sm:$0xff] %v4528
  %4721 = vst [vmem:[%s3 + $0x1d0] sm:$0xff] %v4529
  %4722 = vst [vmem:[%s3 + $0x1d8] sm:$0xff] %v4530
  %4723 = vst [vmem:[%s3 + $0x1e0] sm:$0xff] %v4531
  %4724 = vst [vmem:[%s3 + $0x1e8] sm:$0xff] %v4532
  %4725 = vst [vmem:[%s3 + $0x1f0] sm:$0xff] %v4533
  %4726 = vst [vmem:[%s3 + $0x1f8] sm:$0xff] %v4534
  %4727 = vst [vmem:[%s3 + $0x200] sm:$0xff] %v4535
  %4728 = vst [vmem:[%s3 + $0x208] sm:$0xff] %v4536
  %4729 = vst [vmem:[%s3 + $0x210] sm:$0xff] %v4537
  %4730 = vst [vmem:[%s3 + $0x218] sm:$0xff] %v4538
  %4731 = vst [vmem:[%s3 + $0x220] sm:$0xff] %v4539
  %4732 = vst [vmem:[%s3 + $0x228] sm:$0xff] %v4540
  %4733 = vst [vmem:[%s3 + $0x230] sm:$0xff] %v4541
  %4734 = vst [vmem:[%s3 + $0x238] sm:$0xff] %v4542
  %4735 = vst [vmem:[%s3 + $0x240] sm:$0xff] %v4543
  %4736 = vst [vmem:[%s3 + $0x248] sm:$0xff] %v4544
  %4737 = vst [vmem:[%s3 + $0x250] sm:$0xff] %v4545
  %4738 = vst [vmem:[%s3 + $0x258] sm:$0xff] %v4546
  %4739 = vst [vmem:[%s3 + $0x260] sm:$0xff] %v4547
  %4740 = vst [vmem:[%s3 + $0x268] sm:$0xff] %v4548
  %4741 = vst [vmem:[%s3 + $0x270] sm:$0xff] %v4549
  %4742 = vst [vmem:[%s3 + $0x278] sm:$0xff] %v4550
  %4743 = vst [vmem:[%s3 + $0x280] sm:$0xff] %v4551
  %4744 = vst [vmem:[%s3 + $0x288] sm:$0xff] %v4552
  %4745 = vst [vmem:[%s3 + $0x290] sm:$0xff] %v4553
  %4746 = vst [vmem:[%s3 + $0x298] sm:$0xff] %v4554
  %4747 = vst [vmem:[%s3 + $0x2a0] sm:$0xff] %v4555
  %4748 = vst [vmem:[%s3 + $0x2a8] sm:$0xff] %v4556
  %4749 = vst [vmem:[%s3 + $0x2b0] sm:$0xff] %v4557
  %4750 = vst [vmem:[%s3 + $0x2b8] sm:$0xff] %v4558
  %4751 = vst [vmem:[%s3 + $0x2c0] sm:$0xff] %v4559
  %4752 = vst [vmem:[%s3 + $0x2c8] sm:$0xff] %v4560
  %4753 = vst [vmem:[%s3 + $0x2d0] sm:$0xff] %v4561
  %4754 = vst [vmem:[%s3 + $0x2d8] sm:$0xff] %v4562
  %4755 = vst [vmem:[%s3 + $0x2e0] sm:$0xff] %v4563
  %4756 = vst [vmem:[%s3 + $0x2e8] sm:$0xff] %v4564
  %4757 = vst [vmem:[%s3 + $0x2f0] sm:$0xff] %v4565
  %4758 = vst [vmem:[%s3 + $0x2f8] sm:$0xff] %v4566
  // Predicated region
  $region14: #{shared_transformer_forward.1} parent=0 // pred_check
    _
  $region15: #{shared_transformer_forward.1} parent=0 // pred_check_branch
    %4760 = sbr.rel (0) target = $region17
  $region16: #{shared_transformer_forward.1} parent=0 // pred_region
    _
  $region17: #{shared_transformer_forward.1} parent=0 // pred_fallthru
    _
  // Predicated region
  $region18: #{shared_transformer_forward.1} parent=0 // pred_check
    _
  $region19: #{shared_transformer_forward.1} parent=0 // pred_check_branch
    %4762 = sbr.rel (0) target = $region21
  $region20: #{shared_transformer_forward.1} parent=0 // pred_region
    _
  $region21: #{shared_transformer_forward.1} parent=0 // pred_fallthru
    _

</llo_original>
